<compile_context>
chip_gen: v6e
topology: v6e:2x2x1
jax: 0.10.0
libtpu: 0.0.40
codegen_flags: <defaults>
</compile_context>

<pallas_src>
import functools
import math

import jax
import jax.numpy as jnp
from jax import lax
from jax.experimental import pallas as pl
from jax.experimental.pallas import tpu as pltpu

# Full-precision f32 matmuls in the kernels and the reference so the numerical
# comparison is tight and deterministic across TPU generations.
jax.config.update("jax_default_matmul_precision", "highest")

NEG_INF = -1e30   # large-negative additive mask (keeps fully-masked rows finite)
LN_EPS = 1e-5     # nn.LayerNorm default eps


def _round_up(x, m):
    return ((x + m - 1) // m) * m


def _mask_bias(batch, seq, causal_mask, padding_mask):
    """Reference-side: fold causal + key-padding masks into (B, S, S) bias."""
    bias = jnp.zeros((batch, seq, seq), jnp.float32)
    if causal_mask is not None:
        bias = bias + jnp.where(causal_mask[None, :, :] == 0, NEG_INF, 0.0)
    if padding_mask is not None:
        bias = bias + jnp.where(padding_mask[:, None, :], NEG_INF, 0.0)
    return bias


# --------------------------------------------------------------------------
# Kernel 1: x + MultiHeadAttention(LayerNorm1(x))
# --------------------------------------------------------------------------
def _attn_residual_kernel(x_ref, g1_ref, bt1_ref, wqkv_ref, bqkv_ref, wo_ref,
                          cmask_ref, pmask_ref, o_ref, *, num_heads):
    x = x_ref[...]                                          # (S, E) f32
    s_len, emb = x.shape
    d_h = emb // num_heads

    # --- LayerNorm 1 ---
    mu = jnp.mean(x, axis=-1, keepdims=True)
    var = jnp.mean(jnp.square(x - mu), axis=-1, keepdims=True)
    xn = (x - mu) * lax.rsqrt(var + LN_EPS)
    xn = xn * g1_ref[...] + bt1_ref[...]

    # --- fused QKV projection: one (S, E) x (E, 3E) matmul ---
    qkv = jnp.dot(xn, wqkv_ref[...],
                  preferred_element_type=jnp.float32) + bqkv_ref[...]
    scale = 1.0 / math.sqrt(d_h)
    q = qkv[:, :emb] * scale                                # fold 1/sqrt(d_h) into Q
    k = qkv[:, emb:2 * emb]
    v = qkv[:, 2 * emb:]

    # --- additive mask bias built in VMEM (no (B,S,S) HBM traffic) ---
    bias = jnp.where(cmask_ref[...] == 0, NEG_INF, 0.0)            # (S, S)
    bias = bias + jnp.where(pmask_ref[...] != 0, NEG_INF, 0.0)     # (1, S) broadcast

    # --- per-head masked softmax attention (static unroll over heads) ---
    head_outs = []
    for h in range(num_heads):
        sl = slice(h * d_h, (h + 1) * d_h)
        qh, kh, vh = q[:, sl], k[:, sl], v[:, sl]
        scores = jnp.einsum("qd,kd->qk", qh, kh,
                            preferred_element_type=jnp.float32) + bias
        m = jnp.max(scores, axis=-1, keepdims=True)
        p = jnp.exp(scores - m)
        l = jnp.sum(p, axis=-1, keepdims=True)
        # normalize after P@V: (S, d_h) divide instead of (S, S)
        head_outs.append(
            jnp.dot(p, vh, preferred_element_type=jnp.float32) / l)

    cat = jnp.concatenate(head_outs, axis=-1)               # (S, E)
    attn = jnp.dot(cat, wo_ref[...], preferred_element_type=jnp.float32)

    # TODO(synk): nn.Dropout(p=0.1) is identity here (eval / inference mode).
    o_ref[...] = (x + attn).astype(o_ref.dtype)             # residual add


def attn_residual_pallas(x, gamma1, beta1, wq, bq, wk, bk, wv, bv, wo,
                         causal_mask=None, padding_mask=None, *, num_heads):
    B, S, E = x.shape

    # Fuse the QKV weights/biases (wrapper-side, constant-folded under jit).
    wqkv = jnp.concatenate([wq, wk, wv], axis=-1)           # (E, 3E)
    bqkv = jnp.concatenate([bq, bk, bv], axis=-1).reshape(1, 3 * E)

    cmask = (jnp.ones((S, S), jnp.int32) if causal_mask is None
             else causal_mask.astype(jnp.int32))
    pmask = (jnp.zeros((B, 1, S), jnp.int32) if padding_mask is None
             else padding_mask.astype(jnp.int32).reshape(B, 1, S))

    kern = functools.partial(_attn_residual_kernel, num_heads=num_heads)
    return pl.pallas_call(
        kern,
        out_shape=jax.ShapeDtypeStruct((B, S, E), x.dtype),
        grid_spec=pltpu.PrefetchScalarGridSpec(
            num_scalar_prefetch=0,
            grid=(B,),
            in_specs=[
                pl.BlockSpec((None, S, E), lambda b: (b, 0, 0)),   # x (one batch)
                pl.BlockSpec((1, E), lambda b: (0, 0)),            # gamma1
                pl.BlockSpec((1, E), lambda b: (0, 0)),            # beta1
                pl.BlockSpec((E, 3 * E), lambda b: (0, 0)),        # fused W_QKV
                pl.BlockSpec((1, 3 * E), lambda b: (0, 0)),        # fused b_QKV
                pl.BlockSpec((E, E), lambda b: (0, 0)),            # W_O
                pl.BlockSpec((S, S), lambda b: (0, 0)),            # causal mask (shared)
                pl.BlockSpec((None, 1, S), lambda b: (b, 0, 0)),   # key-padding mask
            ],
            out_specs=pl.BlockSpec((None, S, E), lambda b: (b, 0, 0)),
        ),
        compiler_params=pltpu.CompilerParams(
            dimension_semantics=("parallel",)),
    )(x, gamma1.reshape(1, E), beta1.reshape(1, E), wqkv, bqkv, wo, cmask, pmask)


# --------------------------------------------------------------------------
# Kernel 2: x + fc2(ReLU(fc1(LayerNorm2(x))))  — row-tiled, H-tiled accumulate
# --------------------------------------------------------------------------
def _ln_mlp_residual_kernel(x_ref, g2_ref, bt2_ref, w1_ref, b1_ref, w2_ref, b2_ref,
                            o_ref, ln_scratch, acc_scratch):
    h_idx = pl.program_id(1)

    @pl.when(h_idx == 0)
    def _init():
        x = x_ref[...]
        mu = jnp.mean(x, axis=-1, keepdims=True)
        var = jnp.mean(jnp.square(x - mu), axis=-1, keepdims=True)
        xn = (x - mu) * lax.rsqrt(var + LN_EPS)
        ln_scratch[...] = xn * g2_ref[...] + bt2_ref[...]
        acc_scratch[...] = jnp.zeros_like(acc_scratch)

    hidden = jnp.dot(ln_scratch[...], w1_ref[...],
                     preferred_element_type=jnp.float32) + b1_ref[...]
    hidden = jnp.maximum(hidden, 0.0)                       # ReLU (per H slice is exact)
    acc_scratch[...] += jnp.dot(hidden, w2_ref[...],
                                preferred_element_type=jnp.float32)

    @pl.when(h_idx == pl.num_programs(1) - 1)
    def _finalize():
        # TODO(synk): dropout (p=0.1) is identity here (eval / inference mode).
        o_ref[...] = (x_ref[...] + acc_scratch[...] + b2_ref[...]).astype(o_ref.dtype)


def ln_mlp_residual_pallas(x, gamma2, beta2, w1, b1, w2, b2, *, tm=256, th=512):
    B, S, E = x.shape
    H = w1.shape[1]
    M = B * S

    # Row tile: as large as possible up to `tm`, multiple of 8 (f32 sublane);
    # tail rows are zero-padded instead of asserting divisibility.
    tm_eff = min(tm, _round_up(M, 8))
    m_pad = _round_up(M, tm_eff)
    # Hidden tile (reduction axis, last grid dim); fall back to full H when it
    # does not divide evenly.
    th_eff = th if H % th == 0 else H

    x2d = x.reshape(M, E)
    if m_pad != M:
        x2d = jnp.pad(x2d, ((0, m_pad - M), (0, 0)))

    out = pl.pallas_call(
        _ln_mlp_residual_kernel,
        out_shape=jax.ShapeDtypeStruct((m_pad, E), x.dtype),
        grid_spec=pltpu.PrefetchScalarGridSpec(
            num_scalar_prefetch=0,
            grid=(m_pad // tm_eff, H // th_eff),
            in_specs=[
                pl.BlockSpec((tm_eff, E), lambda i, h: (i, 0)),    # token rows
                pl.BlockSpec((1, E), lambda i, h: (0, 0)),         # gamma2
                pl.BlockSpec((1, E), lambda i, h: (0, 0)),         # beta2
                pl.BlockSpec((E, th_eff), lambda i, h: (0, h)),    # fc1 weight slice
                pl.BlockSpec((1, th_eff), lambda i, h: (0, h)),    # fc1 bias slice
                pl.BlockSpec((th_eff, E), lambda i, h: (h, 0)),    # fc2 weight slice
                pl.BlockSpec((1, E), lambda i, h: (0, 0)),         # fc2 bias
            ],
            out_specs=pl.BlockSpec((tm_eff, E), lambda i, h: (i, 0)),
            scratch_shapes=[
                pltpu.VMEM((tm_eff, E), jnp.float32),   # LayerNorm2(x) tile
                pltpu.VMEM((tm_eff, E), jnp.float32),   # MLP accumulator
            ],
        ),
        compiler_params=pltpu.CompilerParams(
            dimension_semantics=("parallel", "arbitrary")),
    )(x2d, gamma2.reshape(1, E), beta2.reshape(1, E),
      w1, b1.reshape(1, H), w2, b2.reshape(1, E))

    return out[:M].reshape(B, S, E)


def decoder_block_pallas(x, params, causal_mask=None, padding_mask=None, *, num_heads):
    x = attn_residual_pallas(
        x, params["gamma1"], params["beta1"],
        params["wq"], params["bq"], params["wk"], params["bk"],
        params["wv"], params["bv"], params["wo"],
        causal_mask=causal_mask, padding_mask=padding_mask, num_heads=num_heads)
    x = ln_mlp_residual_pallas(
        x, params["gamma2"], params["beta2"],
        params["w1"], params["b1"], params["w2"], params["b2"])
    return x


# --------------------------------------------------------------------------
# Pure-JAX reference (mirrors the PyTorch DecoderBlock in eval mode)
# --------------------------------------------------------------------------
def _layernorm_ref(x, g, b):
    mu = x.mean(-1, keepdims=True)
    var = ((x - mu) ** 2).mean(-1, keepdims=True)
    return (x - mu) / jnp.sqrt(var + LN_EPS) * g + b


def decoder_block_reference(x, params, causal_mask=None, padding_mask=None, *, num_heads):
    B, S, E = x.shape
    d_h = E // num_heads
    bias = _mask_bias(B, S, causal_mask, padding_mask)

    xn = _layernorm_ref(x, params["gamma1"], params["beta1"])
    q = xn @ params["wq"] + params["bq"]
    k = xn @ params["wk"] + params["bk"]
    v = xn @ params["wv"] + params["bv"]
    qh = q.reshape(B, S, num_heads, d_h).transpose(0, 2, 1, 3)
    kh = k.reshape(B, S, num_heads, d_h).transpose(0, 2, 1, 3)
    vh = v.reshape(B, S, num_heads, d_h).transpose(0, 2, 1, 3)
    scores = jnp.einsum("bhqd,bhkd->bhqk", qh, kh) / math.sqrt(d_h) + bias[:, None]
    w = jax.nn.softmax(scores, axis=-1)
    attn = jnp.einsum("bhqk,bhkd->bhqd", w, vh)
    attn = attn.transpose(0, 2, 1, 3).reshape(B, S, E)
    x = x + attn @ params["wo"]

    xn2 = _layernorm_ref(x, params["gamma2"], params["beta2"])
    h = jnp.maximum(xn2 @ params["w1"] + params["b1"], 0.0)
    return x + h @ params["w2"] + params["b2"]


if __name__ == "__main__":
    B, S, E = 2, 8, 32
    num_heads = 4
    d_h = E // num_heads
    H = 4 * E

    key = jax.random.PRNGKey(0)
    keys = jax.random.split(key, 9)

    def xavier(k, shape):
        fan_in, fan_out = shape
        lim = math.sqrt(6.0 / (fan_in + fan_out))
        return jax.random.uniform(k, shape, minval=-lim, maxval=lim, dtype=jnp.float32)

    x = jax.random.normal(keys[0], (B, S, E), dtype=jnp.float32)

    # Attention params: per-head (E, d_h) Xavier blocks stacked along the last dim.
    wq = jnp.concatenate([xavier(k, (E, d_h)) for k in jax.random.split(keys[1], num_heads)], axis=-1)
    wk = jnp.concatenate([xavier(k, (E, d_h)) for k in jax.random.split(keys[2], num_heads)], axis=-1)
    wv = jnp.concatenate([xavier(k, (E, d_h)) for k in jax.random.split(keys[3], num_heads)], axis=-1)
    bq = jnp.zeros((E,), jnp.float32)
    bk = jnp.zeros((E,), jnp.float32)
    bv = jnp.zeros((E,), jnp.float32)
    wo = xavier(keys[4], (E, E))

    # MLP params (nn.Linear-style uniform init; weights stored transposed as (in, out)).
    lim1 = 1.0 / math.sqrt(E)
    lim2 = 1.0 / math.sqrt(H)
    w1 = jax.random.uniform(keys[5], (E, H), minval=-lim1, maxval=lim1, dtype=jnp.float32)
    b1 = jax.random.uniform(keys[6], (H,), minval=-lim1, maxval=lim1, dtype=jnp.float32)
    w2 = jax.random.uniform(keys[7], (H, E), minval=-lim2, maxval=lim2, dtype=jnp.float32)
    b2 = jax.random.uniform(keys[8], (E,), minval=-lim2, maxval=lim2, dtype=jnp.float32)

    params = dict(
        gamma1=jnp.ones((E,), jnp.float32), beta1=jnp.zeros((E,), jnp.float32),
        gamma2=jnp.ones((E,), jnp.float32), beta2=jnp.zeros((E,), jnp.float32),
        wq=wq, bq=bq, wk=wk, bk=bk, wv=wv, bv=bv, wo=wo,
        w1=w1, b1=b1, w2=w2, b2=b2)

    causal_mask = jnp.tril(jnp.ones((S, S), jnp.int32))                 # 1 = keep
    padding_mask = jnp.zeros((B, S), jnp.bool_).at[1, -2:].set(True)    # True = pad

    y = decoder_block_pallas(x, params, causal_mask=causal_mask,
                             padding_mask=padding_mask, num_heads=num_heads)
    jax.block_until_ready(y)

    y_ref = decoder_block_reference(x, params, causal_mask=causal_mask,
                                    padding_mask=padding_mask, num_heads=num_heads)
    assert y.shape == (B, S, E)
    err = jnp.max(jnp.abs(y - y_ref))
    assert jnp.allclose(y, y_ref, atol=2e-3, rtol=2e-3), f"mismatch vs reference, max abs err={err}"

    print("KERNEL_OK")
</pallas_src>

<mosaic_0001>
module attributes {stable_mosaic.version = 11 : i64} {
  func.func @_attn_residual_kernel(%arg0: i32, %arg1: memref<1x8x32xf32, #tpu.memory_space<vmem>>, %arg2: memref<1x32xf32, #tpu.memory_space<vmem>>, %arg3: memref<1x32xf32, #tpu.memory_space<vmem>>, %arg4: memref<32x96xf32, #tpu.memory_space<vmem>>, %arg5: memref<1x96xf32, #tpu.memory_space<vmem>>, %arg6: memref<32x32xf32, #tpu.memory_space<vmem>>, %arg7: memref<8x8xi32, #tpu.memory_space<vmem>>, %arg8: memref<1x1x8xi32, #tpu.memory_space<vmem>>, %arg9: memref<1x8x32xf32, #tpu.memory_space<vmem>>) attributes {dimension_semantics = [#tpu.dimension_semantics<parallel>], iteration_bounds = array<i64: 2>, scalar_prefetch = 0 : i64, scratch_operands = 0 : i64, tpu.core_type = #tpu.core_type<tc>, window_params = [{transform_indices = @transform_0, window_bounds = array<i64: 1, 8, 32>}, {pipeline_mode = #tpu.pipeline_mode<synchronous>, transform_indices = @transform_1, window_bounds = array<i64: 1, 32>}, {pipeline_mode = #tpu.pipeline_mode<synchronous>, transform_indices = @transform_2, window_bounds = array<i64: 1, 32>}, {pipeline_mode = #tpu.pipeline_mode<synchronous>, transform_indices = @transform_3, window_bounds = array<i64: 32, 96>}, {pipeline_mode = #tpu.pipeline_mode<synchronous>, transform_indices = @transform_4, window_bounds = array<i64: 1, 96>}, {pipeline_mode = #tpu.pipeline_mode<synchronous>, transform_indices = @transform_5, window_bounds = array<i64: 32, 32>}, {pipeline_mode = #tpu.pipeline_mode<synchronous>, transform_indices = @transform_6, window_bounds = array<i64: 8, 8>}, {transform_indices = @transform_7, window_bounds = array<i64: 1, 1, 8>}, {transform_indices = @transform_8, window_bounds = array<i64: 1, 8, 32>}]} {
    %c0 = arith.constant 0 : index
    %c0_0 = arith.constant 0 : index
    %c0_1 = arith.constant 0 : index
    %0 = vector.load %arg1[%c0, %c0_0, %c0_1] : memref<1x8x32xf32, #tpu.memory_space<vmem>>, vector<1x8x32xf32>
    %1 = vector.shape_cast %0 : vector<1x8x32xf32> to vector<8x32xf32>
    %cst = arith.constant dense<0.000000e+00> : vector<8xf32>
    %2 = vector.multi_reduction <add>, %1, %cst [1] : vector<8x32xf32> to vector<8xf32>
    %3 = vector.shape_cast %2 : vector<8xf32> to vector<8x1xf32>
    %cst_2 = arith.constant 3.200000e+01 : f32
    %4 = vector.broadcast %cst_2 : f32 to vector<8x1xf32>
    %5 = arith.divf %3, %4 : vector<8x1xf32>
    %6 = vector.broadcast %5 : vector<8x1xf32> to vector<8x32xf32>
    %7 = arith.subf %1, %6 : vector<8x32xf32>
    %8 = arith.mulf %7, %7 : vector<8x32xf32>
    %cst_3 = arith.constant dense<0.000000e+00> : vector<8xf32>
    %9 = vector.multi_reduction <add>, %8, %cst_3 [1] : vector<8x32xf32> to vector<8xf32>
    %10 = vector.shape_cast %9 : vector<8xf32> to vector<8x1xf32>
    %cst_4 = arith.constant 3.200000e+01 : f32
    %11 = vector.broadcast %cst_4 : f32 to vector<8x1xf32>
    %12 = arith.divf %10, %11 : vector<8x1xf32>
    %13 = vector.broadcast %5 : vector<8x1xf32> to vector<8x32xf32>
    %14 = arith.subf %1, %13 : vector<8x32xf32>
    %cst_5 = arith.constant 9.99999974E-6 : f32
    %15 = vector.broadcast %cst_5 : f32 to vector<8x1xf32>
    %16 = arith.addf %12, %15 : vector<8x1xf32>
    %17 = math.rsqrt %16 : vector<8x1xf32>
    %18 = vector.broadcast %17 : vector<8x1xf32> to vector<8x32xf32>
    %19 = arith.mulf %14, %18 : vector<8x32xf32>
    %c0_6 = arith.constant 0 : index
    %c0_7 = arith.constant 0 : index
    %20 = vector.load %arg2[%c0_6, %c0_7] : memref<1x32xf32, #tpu.memory_space<vmem>>, vector<1x32xf32>
    %21 = vector.broadcast %20 : vector<1x32xf32> to vector<8x32xf32>
    %22 = arith.mulf %19, %21 : vector<8x32xf32>
    %c0_8 = arith.constant 0 : index
    %c0_9 = arith.constant 0 : index
    %23 = vector.load %arg3[%c0_8, %c0_9] : memref<1x32xf32, #tpu.memory_space<vmem>>, vector<1x32xf32>
    %24 = vector.broadcast %23 : vector<1x32xf32> to vector<8x32xf32>
    %25 = arith.addf %22, %24 : vector<8x32xf32>
    %c0_10 = arith.constant 0 : index
    %c0_11 = arith.constant 0 : index
    %26 = vector.load %arg4[%c0_10, %c0_11] : memref<32x96xf32, #tpu.memory_space<vmem>>, vector<32x96xf32>
    %cst_12 = arith.constant dense<0.000000e+00> : vector<8x96xf32>
    %27 = tpu.matmul %25, %26, %cst_12 {dimension_numbers = #tpu.dot_dimension_numbers<[1], [0], [0], [1], [0, 0, 1, 1], [], []>, precision = #tpu.contract_precision<fp32>} : vector<8x32xf32>, vector<32x96xf32>, vector<8x96xf32> -> vector<8x96xf32>
    %c0_13 = arith.constant 0 : index
    %c0_14 = arith.constant 0 : index
    %28 = vector.load %arg5[%c0_13, %c0_14] : memref<1x96xf32, #tpu.memory_space<vmem>>, vector<1x96xf32>
    %29 = vector.broadcast %28 : vector<1x96xf32> to vector<8x96xf32>
    %30 = arith.addf %27, %29 : vector<8x96xf32>
    %31 = vector.extract_strided_slice %30 {offsets = [0, 0], sizes = [8, 32], strides = [1, 1]} : vector<8x96xf32> to vector<8x32xf32>
    %cst_15 = arith.constant 0.353553385 : f32
    %32 = vector.broadcast %cst_15 : f32 to vector<8x32xf32>
    %33 = arith.mulf %31, %32 : vector<8x32xf32>
    %34 = vector.extract_strided_slice %30 {offsets = [0, 32], sizes = [8, 32], strides = [1, 1]} : vector<8x96xf32> to vector<8x32xf32>
    %35 = vector.extract_strided_slice %30 {offsets = [0, 64], sizes = [8, 32], strides = [1, 1]} : vector<8x96xf32> to vector<8x32xf32>
    %c0_16 = arith.constant 0 : index
    %c0_17 = arith.constant 0 : index
    %36 = vector.load %arg7[%c0_16, %c0_17] : memref<8x8xi32, #tpu.memory_space<vmem>>, vector<8x8xi32>
    %c0_i32 = arith.constant 0 : i32
    %37 = vector.broadcast %c0_i32 : i32 to vector<8x8xi32>
    %38 = arith.cmpi eq, %36, %37 : vector<8x8xi32>
    %cst_18 = arith.constant -1.000000e+30 : f32
    %cst_19 = arith.constant 0.000000e+00 : f32
    %39 = vector.broadcast %cst_18 : f32 to vector<8x8xf32>
    %40 = vector.broadcast %cst_19 : f32 to vector<8x8xf32>
    %41 = arith.select %38, %39, %40 : vector<8x8xi1>, vector<8x8xf32>
    %c0_20 = arith.constant 0 : index
    %c0_21 = arith.constant 0 : index
    %c0_22 = arith.constant 0 : index
    %42 = vector.load %arg8[%c0_20, %c0_21, %c0_22] : memref<1x1x8xi32, #tpu.memory_space<vmem>>, vector<1x1x8xi32>
    %43 = vector.shape_cast %42 : vector<1x1x8xi32> to vector<1x8xi32>
    %c0_i32_23 = arith.constant 0 : i32
    %44 = vector.broadcast %c0_i32_23 : i32 to vector<1x8xi32>
    %45 = arith.cmpi ne, %43, %44 : vector<1x8xi32>
    %cst_24 = arith.constant -1.000000e+30 : f32
    %cst_25 = arith.constant 0.000000e+00 : f32
    %46 = vector.broadcast %cst_24 : f32 to vector<1x8xf32>
    %47 = vector.broadcast %cst_25 : f32 to vector<1x8xf32>
    %48 = arith.select %45, %46, %47 : vector<1x8xi1>, vector<1x8xf32>
    %49 = vector.broadcast %48 : vector<1x8xf32> to vector<8x8xf32>
    %50 = arith.addf %41, %49 : vector<8x8xf32>
    %51 = vector.extract_strided_slice %33 {offsets = [0, 0], sizes = [8, 8], strides = [1, 1]} : vector<8x32xf32> to vector<8x8xf32>
    %52 = vector.extract_strided_slice %34 {offsets = [0, 0], sizes = [8, 8], strides = [1, 1]} : vector<8x32xf32> to vector<8x8xf32>
    %53 = vector.extract_strided_slice %35 {offsets = [0, 0], sizes = [8, 8], strides = [1, 1]} : vector<8x32xf32> to vector<8x8xf32>
    "tpu.trace_start"() <{level = 10 : i32, message = "qd,kd->qk"}> : () -> ()
    %cst_26 = arith.constant dense<0.000000e+00> : vector<8x8xf32>
    %54 = tpu.matmul %51, %52, %cst_26 {dimension_numbers = #tpu.dot_dimension_numbers<[1], [1], [0], [0], [0, 0, 1, 0], [], []>, precision = #tpu.contract_precision<fp32>} : vector<8x8xf32>, vector<8x8xf32>, vector<8x8xf32> -> vector<8x8xf32>
    "tpu.trace_stop"() : () -> ()
    %55 = arith.addf %54, %50 : vector<8x8xf32>
    %cst_27 = arith.constant dense<0xFF800000> : vector<8xf32>
    %56 = vector.multi_reduction <maximumf>, %55, %cst_27 [1] : vector<8x8xf32> to vector<8xf32>
    %57 = vector.shape_cast %56 : vector<8xf32> to vector<8x1xf32>
    %58 = vector.broadcast %57 : vector<8x1xf32> to vector<8x8xf32>
    %59 = arith.subf %55, %58 : vector<8x8xf32>
    %60 = math.exp %59 : vector<8x8xf32>
    %cst_28 = arith.constant dense<0.000000e+00> : vector<8xf32>
    %61 = vector.multi_reduction <add>, %60, %cst_28 [1] : vector<8x8xf32> to vector<8xf32>
    %62 = vector.shape_cast %61 : vector<8xf32> to vector<8x1xf32>
    %cst_29 = arith.constant dense<0.000000e+00> : vector<8x8xf32>
    %63 = tpu.matmul %60, %53, %cst_29 {dimension_numbers = #tpu.dot_dimension_numbers<[1], [0], [0], [1], [0, 0, 1, 1], [], []>, precision = #tpu.contract_precision<fp32>} : vector<8x8xf32>, vector<8x8xf32>, vector<8x8xf32> -> vector<8x8xf32>
    %64 = vector.broadcast %62 : vector<8x1xf32> to vector<8x8xf32>
    %65 = arith.divf %63, %64 : vector<8x8xf32>
    %66 = vector.extract_strided_slice %33 {offsets = [0, 8], sizes = [8, 8], strides = [1, 1]} : vector<8x32xf32> to vector<8x8xf32>
    %67 = vector.extract_strided_slice %34 {offsets = [0, 8], sizes = [8, 8], strides = [1, 1]} : vector<8x32xf32> to vector<8x8xf32>
    %68 = vector.extract_strided_slice %35 {offsets = [0, 8], sizes = [8, 8], strides = [1, 1]} : vector<8x32xf32> to vector<8x8xf32>
    "tpu.trace_start"() <{level = 10 : i32, message = "qd,kd->qk"}> : () -> ()
    %cst_30 = arith.constant dense<0.000000e+00> : vector<8x8xf32>
    %69 = tpu.matmul %66, %67, %cst_30 {dimension_numbers = #tpu.dot_dimension_numbers<[1], [1], [0], [0], [0, 0, 1, 0], [], []>, precision = #tpu.contract_precision<fp32>} : vector<8x8xf32>, vector<8x8xf32>, vector<8x8xf32> -> vector<8x8xf32>
    "tpu.trace_stop"() : () -> ()
    %70 = arith.addf %69, %50 : vector<8x8xf32>
    %cst_31 = arith.constant dense<0xFF800000> : vector<8xf32>
    %71 = vector.multi_reduction <maximumf>, %70, %cst_31 [1] : vector<8x8xf32> to vector<8xf32>
    %72 = vector.shape_cast %71 : vector<8xf32> to vector<8x1xf32>
    %73 = vector.broadcast %72 : vector<8x1xf32> to vector<8x8xf32>
    %74 = arith.subf %70, %73 : vector<8x8xf32>
    %75 = math.exp %74 : vector<8x8xf32>
    %cst_32 = arith.constant dense<0.000000e+00> : vector<8xf32>
    %76 = vector.multi_reduction <add>, %75, %cst_32 [1] : vector<8x8xf32> to vector<8xf32>
    %77 = vector.shape_cast %76 : vector<8xf32> to vector<8x1xf32>
    %cst_33 = arith.constant dense<0.000000e+00> : vector<8x8xf32>
    %78 = tpu.matmul %75, %68, %cst_33 {dimension_numbers = #tpu.dot_dimension_numbers<[1], [0], [0], [1], [0, 0, 1, 1], [], []>, precision = #tpu.contract_precision<fp32>} : vector<8x8xf32>, vector<8x8xf32>, vector<8x8xf32> -> vector<8x8xf32>
    %79 = vector.broadcast %77 : vector<8x1xf32> to vector<8x8xf32>
    %80 = arith.divf %78, %79 : vector<8x8xf32>
    %81 = vector.extract_strided_slice %33 {offsets = [0, 16], sizes = [8, 8], strides = [1, 1]} : vector<8x32xf32> to vector<8x8xf32>
    %82 = vector.extract_strided_slice %34 {offsets = [0, 16], sizes = [8, 8], strides = [1, 1]} : vector<8x32xf32> to vector<8x8xf32>
    %83 = vector.extract_strided_slice %35 {offsets = [0, 16], sizes = [8, 8], strides = [1, 1]} : vector<8x32xf32> to vector<8x8xf32>
    "tpu.trace_start"() <{level = 10 : i32, message = "qd,kd->qk"}> : () -> ()
    %cst_34 = arith.constant dense<0.000000e+00> : vector<8x8xf32>
    %84 = tpu.matmul %81, %82, %cst_34 {dimension_numbers = #tpu.dot_dimension_numbers<[1], [1], [0], [0], [0, 0, 1, 0], [], []>, precision = #tpu.contract_precision<fp32>} : vector<8x8xf32>, vector<8x8xf32>, vector<8x8xf32> -> vector<8x8xf32>
    "tpu.trace_stop"() : () -> ()
    %85 = arith.addf %84, %50 : vector<8x8xf32>
    %cst_35 = arith.constant dense<0xFF800000> : vector<8xf32>
    %86 = vector.multi_reduction <maximumf>, %85, %cst_35 [1] : vector<8x8xf32> to vector<8xf32>
    %87 = vector.shape_cast %86 : vector<8xf32> to vector<8x1xf32>
    %88 = vector.broadcast %87 : vector<8x1xf32> to vector<8x8xf32>
    %89 = arith.subf %85, %88 : vector<8x8xf32>
    %90 = math.exp %89 : vector<8x8xf32>
    %cst_36 = arith.constant dense<0.000000e+00> : vector<8xf32>
    %91 = vector.multi_reduction <add>, %90, %cst_36 [1] : vector<8x8xf32> to vector<8xf32>
    %92 = vector.shape_cast %91 : vector<8xf32> to vector<8x1xf32>
    %cst_37 = arith.constant dense<0.000000e+00> : vector<8x8xf32>
    %93 = tpu.matmul %90, %83, %cst_37 {dimension_numbers = #tpu.dot_dimension_numbers<[1], [0], [0], [1], [0, 0, 1, 1], [], []>, precision = #tpu.contract_precision<fp32>} : vector<8x8xf32>, vector<8x8xf32>, vector<8x8xf32> -> vector<8x8xf32>
    %94 = vector.broadcast %92 : vector<8x1xf32> to vector<8x8xf32>
    %95 = arith.divf %93, %94 : vector<8x8xf32>
    %96 = vector.extract_strided_slice %33 {offsets = [0, 24], sizes = [8, 8], strides = [1, 1]} : vector<8x32xf32> to vector<8x8xf32>
    %97 = vector.extract_strided_slice %34 {offsets = [0, 24], sizes = [8, 8], strides = [1, 1]} : vector<8x32xf32> to vector<8x8xf32>
    %98 = vector.extract_strided_slice %35 {offsets = [0, 24], sizes = [8, 8], strides = [1, 1]} : vector<8x32xf32> to vector<8x8xf32>
    "tpu.trace_start"() <{level = 10 : i32, message = "qd,kd->qk"}> : () -> ()
    %cst_38 = arith.constant dense<0.000000e+00> : vector<8x8xf32>
    %99 = tpu.matmul %96, %97, %cst_38 {dimension_numbers = #tpu.dot_dimension_numbers<[1], [1], [0], [0], [0, 0, 1, 0], [], []>, precision = #tpu.contract_precision<fp32>} : vector<8x8xf32>, vector<8x8xf32>, vector<8x8xf32> -> vector<8x8xf32>
    "tpu.trace_stop"() : () -> ()
    %100 = arith.addf %99, %50 : vector<8x8xf32>
    %cst_39 = arith.constant dense<0xFF800000> : vector<8xf32>
    %101 = vector.multi_reduction <maximumf>, %100, %cst_39 [1] : vector<8x8xf32> to vector<8xf32>
    %102 = vector.shape_cast %101 : vector<8xf32> to vector<8x1xf32>
    %103 = vector.broadcast %102 : vector<8x1xf32> to vector<8x8xf32>
    %104 = arith.subf %100, %103 : vector<8x8xf32>
    %105 = math.exp %104 : vector<8x8xf32>
    %cst_40 = arith.constant dense<0.000000e+00> : vector<8xf32>
    %106 = vector.multi_reduction <add>, %105, %cst_40 [1] : vector<8x8xf32> to vector<8xf32>
    %107 = vector.shape_cast %106 : vector<8xf32> to vector<8x1xf32>
    %cst_41 = arith.constant dense<0.000000e+00> : vector<8x8xf32>
    %108 = tpu.matmul %105, %98, %cst_41 {dimension_numbers = #tpu.dot_dimension_numbers<[1], [0], [0], [1], [0, 0, 1, 1], [], []>, precision = #tpu.contract_precision<fp32>} : vector<8x8xf32>, vector<8x8xf32>, vector<8x8xf32> -> vector<8x8xf32>
    %109 = vector.broadcast %107 : vector<8x1xf32> to vector<8x8xf32>
    %110 = arith.divf %108, %109 : vector<8x8xf32>
    %111 = tpu.concatenate %65, %80, %95, %110 in 1 : vector<8x8xf32>, vector<8x8xf32>, vector<8x8xf32>, vector<8x8xf32> -> vector<8x32xf32>
    %c0_42 = arith.constant 0 : index
    %c0_43 = arith.constant 0 : index
    %112 = vector.load %arg6[%c0_42, %c0_43] : memref<32x32xf32, #tpu.memory_space<vmem>>, vector<32x32xf32>
    %cst_44 = arith.constant dense<0.000000e+00> : vector<8x32xf32>
    %113 = tpu.matmul %111, %112, %cst_44 {dimension_numbers = #tpu.dot_dimension_numbers<[1], [0], [0], [1], [0, 0, 1, 1], [], []>, precision = #tpu.contract_precision<fp32>} : vector<8x32xf32>, vector<32x32xf32>, vector<8x32xf32> -> vector<8x32xf32>
    %114 = arith.addf %1, %113 : vector<8x32xf32>
    %c0_45 = arith.constant 0 : index
    %c0_46 = arith.constant 0 : index
    %c0_47 = arith.constant 0 : index
    %115 = vector.load %arg9[%c0_45, %c0_46, %c0_47] : memref<1x8x32xf32, #tpu.memory_space<vmem>>, vector<1x8x32xf32>
    %116 = vector.shape_cast %115 : vector<1x8x32xf32> to vector<8x32xf32>
    %117 = vector.shape_cast %114 : vector<8x32xf32> to vector<1x8x32xf32>
    tpu.vector_store %arg9[%c0_45, %c0_46, %c0_47], %117 {strides = array<i32>} : memref<1x8x32xf32, #tpu.memory_space<vmem>>, vector<1x8x32xf32>,
    return
  }
  func.func @transform_0(%arg0: i32) -> (i32, i32, i32) {
    %c0_i32 = arith.constant 0 : i32
    %c0_i32_0 = arith.constant 0 : i32
    %c0_i32_1 = arith.constant 0 : i32
    return %arg0, %c0_i32, %c0_i32_0 : i32, i32, i32
  }
  func.func @transform_1(%arg0: i32) -> (i32, i32) {
    %c0_i32 = arith.constant 0 : i32
    %c0_i32_0 = arith.constant 0 : i32
    %c0_i32_1 = arith.constant 0 : i32
    return %c0_i32, %c0_i32_0 : i32, i32
  }
  func.func @transform_2(%arg0: i32) -> (i32, i32) {
    %c0_i32 = arith.constant 0 : i32
    %c0_i32_0 = arith.constant 0 : i32
    %c0_i32_1 = arith.constant 0 : i32
    return %c0_i32, %c0_i32_0 : i32, i32
  }
  func.func @transform_3(%arg0: i32) -> (i32, i32) {
    %c0_i32 = arith.constant 0 : i32
    %c0_i32_0 = arith.constant 0 : i32
    %c0_i32_1 = arith.constant 0 : i32
    return %c0_i32, %c0_i32_0 : i32, i32
  }
  func.func @transform_4(%arg0: i32) -> (i32, i32) {
    %c0_i32 = arith.constant 0 : i32
    %c0_i32_0 = arith.constant 0 : i32
    %c0_i32_1 = arith.constant 0 : i32
    return %c0_i32, %c0_i32_0 : i32, i32
  }
  func.func @transform_5(%arg0: i32) -> (i32, i32) {
    %c0_i32 = arith.constant 0 : i32
    %c0_i32_0 = arith.constant 0 : i32
    %c0_i32_1 = arith.constant 0 : i32
    return %c0_i32, %c0_i32_0 : i32, i32
  }
  func.func @transform_6(%arg0: i32) -> (i32, i32) {
    %c0_i32 = arith.constant 0 : i32
    %c0_i32_0 = arith.constant 0 : i32
    %c0_i32_1 = arith.constant 0 : i32
    return %c0_i32, %c0_i32_0 : i32, i32
  }
  func.func @transform_7(%arg0: i32) -> (i32, i32, i32) {
    %c0_i32 = arith.constant 0 : i32
    %c0_i32_0 = arith.constant 0 : i32
    %c0_i32_1 = arith.constant 0 : i32
    return %arg0, %c0_i32, %c0_i32_0 : i32, i32, i32
  }
  func.func @transform_8(%arg0: i32) -> (i32, i32, i32) {
    %c0_i32 = arith.constant 0 : i32
    %c0_i32_0 = arith.constant 0 : i32
    %c0_i32_1 = arith.constant 0 : i32
    return %arg0, %c0_i32, %c0_i32_0 : i32, i32, i32
  }
}

</mosaic_0001>

<llo_original>
// kernel: tpu_custom_call.1
$region0: #{tpu_custom_call.1}
  #allocation0 [shape = 'u32[]', space=smem, size = 0x4, offset = 0x4, fixed_abs, tag = 'smem constant byte address 0x4 - core index']
  #allocation1 [shape = 'u32[144,128]{1,0:T(1,128)}', space=vmem, size = 0x12000, scoped, tag = 'internal scratch']
  %s0 = inlined_call_operand.hbm [shape: f32[2,8,32], index: 0, kind: input, shape index: {}]
  %s1 = inlined_call_operand.hbm [shape: f32[1,32], index: 1, kind: input, shape index: {}]
  %s2 = inlined_call_operand.hbm [shape: f32[1,32], index: 2, kind: input, shape index: {}]
  %s3 = inlined_call_operand.hbm [shape: f32[32,96], index: 3, kind: input, shape index: {}]
  %s4 = inlined_call_operand.hbm [shape: f32[1,96], index: 4, kind: input, shape index: {}]
  %s5 = inlined_call_operand.hbm [shape: f32[32,32], index: 5, kind: input, shape index: {}]
  %s6 = inlined_call_operand.vmem [shape: s32[8,8], index: 6, kind: input, shape index: {}]
  %s7 = inlined_call_operand.vmem [shape: s32[2,1,8], index: 7, kind: input, shape index: {}]
  %s8 = inlined_call_operand.hbm [shape: f32[2,8,32], index: 8, kind: output, shape index: {}]
  %s9 = sld [smem:[#allocation0]]
  $region89: #{tpu_custom_call.1} parent=0
    _
  %s11 = ssub.s32 1, %s9
  %s12 = scalar_select 0, %s11, %s9
  $region1: #{tpu_custom_call.1} parent=0
    #allocation2 [shape = 'u8[8192]{0}', space=vmem, size = 0x2000, scoped, tag = 'input window, operand 0']
    #allocation3 [shape = 's32[2]{0}', space=sflag, size = 0x8, scoped, tag = 'scoped memory for tpu_custom_call.1']
    #allocation4 [shape = 's32[2]{0}', space=sflag, size = 0x8, scoped, tag = 'scoped memory for tpu_custom_call.1']
    #allocation5 [shape = 'u8[512]{0}', space=vmem, size = 0x400, scoped, tag = 'input window, operand 1, single buffered']
    #allocation6 [shape = 's32[1]{0}', space=sflag, size = 0x4, scoped, tag = 'scoped memory for tpu_custom_call.1']
    #allocation7 [shape = 'u8[512]{0}', space=vmem, size = 0x400, scoped, tag = 'input window, operand 2, single buffered']
    #allocation8 [shape = 'u8[16384]{0}', space=vmem, size = 0x4000, scoped, tag = 'input window, operand 3, single buffered']
    #allocation9 [shape = 's32[1]{0}', space=sflag, size = 0x4, scoped, tag = 'scoped memory for tpu_custom_call.1']
    #allocation10 [shape = 'u8[512]{0}', space=vmem, size = 0x400, scoped, tag = 'input window, operand 4, single buffered']
    #allocation11 [shape = 'u8[16384]{0}', space=vmem, size = 0x4000, scoped, tag = 'input window, operand 5, single buffered']
    #allocation12 [shape = 's32[1]{0}', space=sflag, size = 0x4, scoped, tag = 'scoped memory for tpu_custom_call.1']
    #allocation13 [shape = 'u8[8192]{0}', space=vmem, size = 0x2000, scoped, tag = 'output window, operand 0']
    %13 = vsyncpa [#allocation3], 0
    %s14 = scalar_lea.sflag [#allocation3], 1
    %15 = vsyncpa %s14, 0
    %16 = vsyncpa [#allocation6], 0
    %17 = vsyncpa [#allocation9], 0
    %18 = vsyncpa [#allocation12], 0
    %19 = vsyncpa [#allocation4], 0
    %s20 = scalar_lea.sflag [#allocation4], 1
    %21 = vsyncpa %s20, 0
    loop: start=0, step=1, limit=4
    $region2: #{tpu_custom_call.1} parent=1 // loop_pre_header
      _
    $region3: #{tpu_custom_call.1} parent=1 // loop_header
      %s23 = sphi 0, %s27
      %p24 = scmp.ge.s32.totalorder %s23, 4
      %s33 = sphi 0, %s35
      %s36 = sphi 0, %s33
      %s37 = sphi 0, %s36
      %s53 = sphi 0, %s37
      %s57 = sphi 0, %s57
      %s59 = sphi 0, %s57
      %s60 = sphi 0, %s59
      %s74 = sphi 0, %s60
      %s78 = sphi 0, %s78
      %s80 = sphi 0, %s78
      %s81 = sphi 0, %s80
      %s95 = sphi 0, %s81
      %s99 = sphi 0, %s99
      %s101 = sphi 0, %s99
      %s102 = sphi 0, %s101
      %s116 = sphi 0, %s102
      %s120 = sphi 0, %s120
      %s122 = sphi 0, %s120
      %s123 = sphi 0, %s122
      %s137 = sphi 0, %s123
      %s141 = sphi 0, %s141
      %s143 = sphi 0, %s141
      %s144 = sphi 0, %s143
      %s158 = sphi 0, %s144
      %s162 = sphi 0, %s162
      %s164 = sphi 0, %s162
      %s165 = sphi 0, %s164
      %s179 = sphi 0, %s165
      %s185 = sphi 0, %s187
      %s188 = sphi 0, %s185
      %s189 = sphi 0, %s188
      %s205 = sphi 0, %s189
      %s211 = sphi 0, %s213
      %s214 = sphi 0, %s211
      %s215 = sphi 0, %s214
      %s231 = sphi 0, %s215
    $region4: #{tpu_custom_call.1} parent=1 // loop_header_branch
      %26 = sbr.rel (%p24) target = $region8
    $region5: #{tpu_custom_call.1} parent=1 // loop_body
      %s28 = ssub.s32 %s23, 1
      %s29 = ssub.s32 %s23, 2
      %s30 = sadd.s32 %s23, 1
      %s31 = ssub.s32 %s23, %s30
      %p32 = scmp.eq.s32.totalorder %s31, 0
      %s34 = sadd.s32 %s33, 1
      %s35 = scalar_select %p32, %s33, %s34
      %p38 = pneg %p32
      %p39 = scmp.eq.s32.totalorder %s23, 1
      %p40 = por %p38, %p39
      %p41 = scmp.ne.s32.totalorder %s33, %s36
      %p42 = scmp.eq.s32.totalorder %s23, 0
      %p43 = por %p41, %p42
      %p44 = scmp.ne.s32.totalorder %s33, %s36
      %p45 = scmp.eq.s32.totalorder %s28, 1
      %p46 = por %p44, %p45
      %p47 = scmp.ne.s32.totalorder %s36, %s37
      %p48 = scmp.eq.s32.totalorder %s28, 0
      %p49 = por %p47, %p48
      %p50 = scmp.ne.s32.totalorder %s36, %s37
      %p51 = scmp.eq.s32.totalorder %s29, 1
      %p52 = por %p50, %p51
      %p54 = scmp.ne.s32.totalorder %s37, %s53
      %p55 = scmp.eq.s32.totalorder %s29, 0
      %p56 = por %p54, %p55
      %s58 = sadd.s32 %s57, 1
      %p61 = scmp.eq.s32.totalorder %s23, 1
      %p62 = scmp.ne.s32.totalorder %s57, %s59
      %p63 = scmp.eq.s32.totalorder %s23, 0
      %p64 = por %p62, %p63
      %p65 = scmp.ne.s32.totalorder %s57, %s59
      %p66 = scmp.eq.s32.totalorder %s28, 1
      %p67 = por %p65, %p66
      %p68 = scmp.ne.s32.totalorder %s59, %s60
      %p69 = scmp.eq.s32.totalorder %s28, 0
      %p70 = por %p68, %p69
      %p71 = scmp.ne.s32.totalorder %s59, %s60
      %p72 = scmp.eq.s32.totalorder %s29, 1
      %p73 = por %p71, %p72
      %p75 = scmp.ne.s32.totalorder %s60, %s74
      %p76 = scmp.eq.s32.totalorder %s29, 0
      %p77 = por %p75, %p76
      %s79 = sadd.s32 %s78, 1
      %p82 = scmp.eq.s32.totalorder %s23, 1
      %p83 = scmp.ne.s32.totalorder %s78, %s80
      %p84 = scmp.eq.s32.totalorder %s23, 0
      %p85 = por %p83, %p84
      %p86 = scmp.ne.s32.totalorder %s78, %s80
      %p87 = scmp.eq.s32.totalorder %s28, 1
      %p88 = por %p86, %p87
      %p89 = scmp.ne.s32.totalorder %s80, %s81
      %p90 = scmp.eq.s32.totalorder %s28, 0
      %p91 = por %p89, %p90
      %p92 = scmp.ne.s32.totalorder %s80, %s81
      %p93 = scmp.eq.s32.totalorder %s29, 1
      %p94 = por %p92, %p93
      %p96 = scmp.ne.s32.totalorder %s81, %s95
      %p97 = scmp.eq.s32.totalorder %s29, 0
      %p98 = por %p96, %p97
      %s100 = sadd.s32 %s99, 1
      %p103 = scmp.eq.s32.totalorder %s23, 1
      %p104 = scmp.ne.s32.totalorder %s99, %s101
      %p105 = scmp.eq.s32.totalorder %s23, 0
      %p106 = por %p104, %p105
      %p107 = scmp.ne.s32.totalorder %s99, %s101
      %p108 = scmp.eq.s32.totalorder %s28, 1
      %p109 = por %p107, %p108
      %p110 = scmp.ne.s32.totalorder %s101, %s102
      %p111 = scmp.eq.s32.totalorder %s28, 0
      %p112 = por %p110, %p111
      %p113 = scmp.ne.s32.totalorder %s101, %s102
      %p114 = scmp.eq.s32.totalorder %s29, 1
      %p115 = por %p113, %p114
      %p117 = scmp.ne.s32.totalorder %s102, %s116
      %p118 = scmp.eq.s32.totalorder %s29, 0
      %p119 = por %p117, %p118
      %s121 = sadd.s32 %s120, 1
      %p124 = scmp.eq.s32.totalorder %s23, 1
      %p125 = scmp.ne.s32.totalorder %s120, %s122
      %p126 = scmp.eq.s32.totalorder %s23, 0
      %p127 = por %p125, %p126
      %p128 = scmp.ne.s32.totalorder %s120, %s122
      %p129 = scmp.eq.s32.totalorder %s28, 1
      %p130 = por %p128, %p129
      %p131 = scmp.ne.s32.totalorder %s122, %s123
      %p132 = scmp.eq.s32.totalorder %s28, 0
      %p133 = por %p131, %p132
      %p134 = scmp.ne.s32.totalorder %s122, %s123
      %p135 = scmp.eq.s32.totalorder %s29, 1
      %p136 = por %p134, %p135
      %p138 = scmp.ne.s32.totalorder %s123, %s137
      %p139 = scmp.eq.s32.totalorder %s29, 0
      %p140 = por %p138, %p139
      %s142 = sadd.s32 %s141, 1
      %p145 = scmp.eq.s32.totalorder %s23, 1
      %p146 = scmp.ne.s32.totalorder %s141, %s143
      %p147 = scmp.eq.s32.totalorder %s23, 0
      %p148 = por %p146, %p147
      %p149 = scmp.ne.s32.totalorder %s141, %s143
      %p150 = scmp.eq.s32.totalorder %s28, 1
      %p151 = por %p149, %p150
      %p152 = scmp.ne.s32.totalorder %s143, %s144
      %p153 = scmp.eq.s32.totalorder %s28, 0
      %p154 = por %p152, %p153
      %p155 = scmp.ne.s32.totalorder %s143, %s144
      %p156 = scmp.eq.s32.totalorder %s29, 1
      %p157 = por %p155, %p156
      %p159 = scmp.ne.s32.totalorder %s144, %s158
      %p160 = scmp.eq.s32.totalorder %s29, 0
      %p161 = por %p159, %p160
      %s163 = sadd.s32 %s162, 1
      %p166 = scmp.eq.s32.totalorder %s23, 1
      %p167 = scmp.ne.s32.totalorder %s162, %s164
      %p168 = scmp.eq.s32.totalorder %s23, 0
      %p169 = por %p167, %p168
      %p170 = scmp.ne.s32.totalorder %s162, %s164
      %p171 = scmp.eq.s32.totalorder %s28, 1
      %p172 = por %p170, %p171
      %p173 = scmp.ne.s32.totalorder %s164, %s165
      %p174 = scmp.eq.s32.totalorder %s28, 0
      %p175 = por %p173, %p174
      %p176 = scmp.ne.s32.totalorder %s164, %s165
      %p177 = scmp.eq.s32.totalorder %s29, 1
      %p178 = por %p176, %p177
      %p180 = scmp.ne.s32.totalorder %s165, %s179
      %p181 = scmp.eq.s32.totalorder %s29, 0
      %p182 = por %p180, %p181
      %s183 = ssub.s32 %s23, %s30
      %p184 = scmp.eq.s32.totalorder %s183, 0
      %s186 = sadd.s32 %s185, 1
      %s187 = scalar_select %p184, %s185, %s186
      %p190 = pneg %p184
      %p191 = scmp.eq.s32.totalorder %s23, 1
      %p192 = por %p190, %p191
      %p193 = scmp.ne.s32.totalorder %s185, %s188
      %p194 = scmp.eq.s32.totalorder %s23, 0
      %p195 = por %p193, %p194
      %p196 = scmp.ne.s32.totalorder %s185, %s188
      %p197 = scmp.eq.s32.totalorder %s28, 1
      %p198 = por %p196, %p197
      %p199 = scmp.ne.s32.totalorder %s188, %s189
      %p200 = scmp.eq.s32.totalorder %s28, 0
      %p201 = por %p199, %p200
      %p202 = scmp.ne.s32.totalorder %s188, %s189
      %p203 = scmp.eq.s32.totalorder %s29, 1
      %p204 = por %p202, %p203
      %p206 = scmp.ne.s32.totalorder %s189, %s205
      %p207 = scmp.eq.s32.totalorder %s29, 0
      %p208 = por %p206, %p207
      %s209 = ssub.s32 %s23, %s30
      %p210 = scmp.eq.s32.totalorder %s209, 0
      %s212 = sadd.s32 %s211, 1
      %s213 = scalar_select %p210, %s211, %s212
      %p216 = pneg %p210
      %p217 = scmp.eq.s32.totalorder %s23, 1
      %p218 = por %p216, %p217
      %p219 = scmp.ne.s32.totalorder %s211, %s214
      %p220 = scmp.eq.s32.totalorder %s23, 0
      %p221 = por %p219, %p220
      %p222 = scmp.ne.s32.totalorder %s211, %s214
      %p223 = scmp.eq.s32.totalorder %s28, 1
      %p224 = por %p222, %p223
      %p225 = scmp.ne.s32.totalorder %s214, %s215
      %p226 = scmp.eq.s32.totalorder %s28, 0
      %p227 = por %p225, %p226
      %p228 = scmp.ne.s32.totalorder %s214, %s215
      %p229 = scmp.eq.s32.totalorder %s29, 1
      %p230 = por %p228, %p229
      %p232 = scmp.ne.s32.totalorder %s215, %s231
      %p233 = scmp.eq.s32.totalorder %s29, 0
      %p234 = por %p232, %p233
      %p235 = scmp.le.s32.totalorder 1, %s23
      %p236 = scmp.lt.s32.totalorder %s23, 3
      %p237 = pnand %p235, %p236
      %p238 = pneg %p237
      // Predicated region
      $region9: #{tpu_custom_call.1} parent=5 // pred_check
        _
      $region10: #{tpu_custom_call.1} parent=5 // pred_check_branch
        %240 = sbr.rel (%p237) target = $region12
      $region11: #{tpu_custom_call.1} parent=5 // pred_region
        %s241 = ssub.s32 %s23, 1
        // Predicated region
        $region13: #{tpu_custom_call.1} parent=11 // pred_check
          %p242 = pneg %p70
        $region14: #{tpu_custom_call.1} parent=11 // pred_check_branch
          %244 = sbr.rel (%p242) target = $region16
        $region15: #{tpu_custom_call.1} parent=11 // pred_region
          %s246 = ssub.s32 16, 16
          %247 = vsyncadd [#allocation6], %s246
          %s249 = sshll.u32 [#allocation5], 4
          %s250 = int_to_ptr.vmem [resolvable:$true] %s249
          %252 = dma.hbm_to_vmem [thread:$0]  %s1, 16, %s250, [#allocation6]
        $region16: #{tpu_custom_call.1} parent=11 // pred_fallthru
          _
        // Predicated region
        $region17: #{tpu_custom_call.1} parent=11 // pred_check
          %p253 = pneg %p91
        $region18: #{tpu_custom_call.1} parent=11 // pred_check_branch
          %255 = sbr.rel (%p253) target = $region20
        $region19: #{tpu_custom_call.1} parent=11 // pred_region
          %s257 = ssub.s32 16, 16
          %258 = vsyncadd [#allocation6], %s257
          %s260 = sshll.u32 [#allocation7], 4
          %s261 = int_to_ptr.vmem [resolvable:$true] %s260
          %263 = dma.hbm_to_vmem [thread:$0]  %s2, 16, %s261, [#allocation6]
        $region20: #{tpu_custom_call.1} parent=11 // pred_fallthru
          _
        // Predicated region
        $region21: #{tpu_custom_call.1} parent=11 // pred_check
          %p264 = pneg %p112
        $region22: #{tpu_custom_call.1} parent=11 // pred_check_branch
          %266 = sbr.rel (%p264) target = $region24
        $region23: #{tpu_custom_call.1} parent=11 // pred_region
          %s268 = ssub.s32 512, 512
          %269 = vsyncadd [#allocation9], %s268
          %s270 = sshll.u32 [#allocation8], 4
          %s271 = int_to_ptr.vmem [resolvable:$true] %s270
          %276 = dma.hbm_to_vmem [thread:$0]  %s3, 512, %s271, [#allocation9], 128, 128, 8
        $region24: #{tpu_custom_call.1} parent=11 // pred_fallthru
          _
        // Predicated region
        $region25: #{tpu_custom_call.1} parent=11 // pred_check
          %p277 = pneg %p133
        $region26: #{tpu_custom_call.1} parent=11 // pred_check_branch
          %279 = sbr.rel (%p277) target = $region28
        $region27: #{tpu_custom_call.1} parent=11 // pred_region
          %s281 = ssub.s32 16, 16
          %282 = vsyncadd [#allocation9], %s281
          %s284 = sshll.u32 [#allocation10], 4
          %s285 = int_to_ptr.vmem [resolvable:$true] %s284
          %287 = dma.hbm_to_vmem [thread:$0]  %s4, 16, %s285, [#allocation9]
        $region28: #{tpu_custom_call.1} parent=11 // pred_fallthru
          _
        // Predicated region
        $region29: #{tpu_custom_call.1} parent=11 // pred_check
          %p288 = pneg %p154
        $region30: #{tpu_custom_call.1} parent=11 // pred_check_branch
          %290 = sbr.rel (%p288) target = $region32
        $region31: #{tpu_custom_call.1} parent=11 // pred_region
          %s292 = ssub.s32 512, 512
          %293 = vsyncadd [#allocation12], %s292
          %s294 = sshll.u32 [#allocation11], 4
          %s295 = int_to_ptr.vmem [resolvable:$true] %s294
          %300 = dma.hbm_to_vmem [thread:$0]  %s5, 512, %s295, [#allocation12], 128, 128, 8
        $region32: #{tpu_custom_call.1} parent=11 // pred_fallthru
          _
        // Predicated region
        $region33: #{tpu_custom_call.1} parent=11 // pred_check
          %p301 = pneg %p175
        $region34: #{tpu_custom_call.1} parent=11 // pred_check_branch
          %303 = sbr.rel (%p301) target = $region36
        $region35: #{tpu_custom_call.1} parent=11 // pred_region
          _
        $region36: #{tpu_custom_call.1} parent=11 // pred_fallthru
          _
      $region12: #{tpu_custom_call.1} parent=5 // pred_fallthru
        _
      %p304 = scmp.lt.s32.totalorder %s23, 2
      // Predicated region
      $region37: #{tpu_custom_call.1} parent=5 // pred_check
        %p305 = pneg %p304
      $region38: #{tpu_custom_call.1} parent=5 // pred_check_branch
        %307 = sbr.rel (%p305) target = $region40
      $region39: #{tpu_custom_call.1} parent=5 // pred_region
        // Predicated region
        $region41: #{tpu_custom_call.1} parent=39 // pred_check
          %p308 = pneg %p43
        $region42: #{tpu_custom_call.1} parent=39 // pred_check_branch
          %310 = sbr.rel (%p308) target = $region44
        $region43: #{tpu_custom_call.1} parent=39 // pred_region
          %s311 = sand.u32 %s33, 1
          %s312 = scalar_lea.sflag [#allocation3], %s311
          %s313 = sand.u32 %s33, 1
          %s314 = smul.addr %s313, 8
          %s315 = scalar_lea.vmem [#allocation2], %s314
          %s317 = ssub.s32 128, 128
          %318 = vsyncadd %s312, %s317
          %s319 = smul.addr %s23, 128
          %s320 = scalar_lea.hbm %s0, %s319
          %s322 = sshll.u32 %s315, 4
          %s323 = int_to_ptr.vmem [resolvable:$true] %s322
          %325 = dma.hbm_to_vmem [thread:$0]  %s320, 128, %s323, %s312
        $region44: #{tpu_custom_call.1} parent=39 // pred_fallthru
          _
        // Predicated region
        $region45: #{tpu_custom_call.1} parent=39 // pred_check
          %p326 = pneg %p195
        $region46: #{tpu_custom_call.1} parent=39 // pred_check_branch
          %328 = sbr.rel (%p326) target = $region48
        $region47: #{tpu_custom_call.1} parent=39 // pred_region
          %p329 = scmp.lt.s32.totalorder %s23, 1
          %s330 = scalar_select %p329, %s23, 1
          %s331 = scalar_lea.vmem %s7, %s330
        $region48: #{tpu_custom_call.1} parent=39 // pred_fallthru
          _
      $region40: #{tpu_custom_call.1} parent=5 // pred_fallthru
        _
      %p332 = scmp.le.s32.totalorder 1, %s23
      %p333 = scmp.lt.s32.totalorder %s23, 3
      %p334 = pnand %p332, %p333
      %p335 = pneg %p334
      // Predicated region
      $region49: #{tpu_custom_call.1} parent=5 // pred_check
        _
      $region50: #{tpu_custom_call.1} parent=5 // pred_check_branch
        %337 = sbr.rel (%p334) target = $region52
      $region51: #{tpu_custom_call.1} parent=5 // pred_region
        %s338 = ssub.s32 %s23, 1
        %s339 = sand.u32 %s36, 1
        %s340 = scalar_lea.sflag [#allocation3], %s339
        %s341 = sand.u32 %s36, 1
        %s342 = smul.addr %s341, 8
        %s343 = scalar_lea.vmem [#allocation2], %s342
        // Predicated region
        $region53: #{tpu_custom_call.1} parent=51 // pred_check
          %p344 = pneg %p49
        $region54: #{tpu_custom_call.1} parent=51 // pred_check_branch
          %346 = sbr.rel (%p344) target = $region56
        $region55: #{tpu_custom_call.1} parent=51 // pred_region
          %347 = dma.done %s340, 128
        $region56: #{tpu_custom_call.1} parent=51 // pred_fallthru
          _
        // Predicated region
        $region57: #{tpu_custom_call.1} parent=51 // pred_check
          %p348 = pneg %p70
        $region58: #{tpu_custom_call.1} parent=51 // pred_check_branch
          %350 = sbr.rel (%p348) target = $region60
        $region59: #{tpu_custom_call.1} parent=51 // pred_region
          %351 = dma.done [#allocation6], 16
        $region60: #{tpu_custom_call.1} parent=51 // pred_fallthru
          _
        // Predicated region
        $region61: #{tpu_custom_call.1} parent=51 // pred_check
          %p352 = pneg %p91
        $region62: #{tpu_custom_call.1} parent=51 // pred_check_branch
          %354 = sbr.rel (%p352) target = $region64
        $region63: #{tpu_custom_call.1} parent=51 // pred_region
          %355 = dma.done [#allocation6], 16
        $region64: #{tpu_custom_call.1} parent=51 // pred_fallthru
          _
        // Predicated region
        $region65: #{tpu_custom_call.1} parent=51 // pred_check
          %p356 = pneg %p112
        $region66: #{tpu_custom_call.1} parent=51 // pred_check_branch
          %358 = sbr.rel (%p356) target = $region68
        $region67: #{tpu_custom_call.1} parent=51 // pred_region
          %359 = dma.done [#allocation9], 512
        $region68: #{tpu_custom_call.1} parent=51 // pred_fallthru
          _
        // Predicated region
        $region69: #{tpu_custom_call.1} parent=51 // pred_check
          %p360 = pneg %p133
        $region70: #{tpu_custom_call.1} parent=51 // pred_check_branch
          %362 = sbr.rel (%p360) target = $region72
        $region71: #{tpu_custom_call.1} parent=51 // pred_region
          %363 = dma.done [#allocation9], 16
        $region72: #{tpu_custom_call.1} parent=51 // pred_fallthru
          _
        // Predicated region
        $region73: #{tpu_custom_call.1} parent=51 // pred_check
          %p364 = pneg %p154
        $region74: #{tpu_custom_call.1} parent=51 // pred_check_branch
          %366 = sbr.rel (%p364) target = $region76
        $region75: #{tpu_custom_call.1} parent=51 // pred_region
          %367 = dma.done [#allocation12], 512
        $region76: #{tpu_custom_call.1} parent=51 // pred_fallthru
          _
        %s368 = sand.u32 %s36, 1
        %s369 = scalar_lea.sflag [#allocation3], %s368
        %s370 = sand.u32 %s36, 1
        %s371 = smul.addr %s370, 8
        %s372 = scalar_lea.vmem [#allocation2], %s371
        %p373 = pneg %p49
        %p374 = pneg %p46
        %p375 = pneg %p70
        %p376 = pneg %p67
        %p377 = pneg %p91
        %p378 = pneg %p88
        %p379 = pneg %p112
        %p380 = pneg %p109
        %p381 = pneg %p133
        %p382 = pneg %p130
        %p383 = pneg %p154
        %p384 = pneg %p151
        %p385 = pneg %p175
        %p386 = pneg %p172
        %p387 = scmp.lt.s32.totalorder %s28, 1
        %s388 = scalar_select %p387, %s28, 1
        %s389 = scalar_lea.vmem %s7, %s388
        %p390 = pneg %p201
        %p391 = pneg %p198
        %p392 = pneg %p227
        %p393 = pneg %p224
        %s394 = sand.u32 %s214, 1
        %s395 = scalar_lea.sflag [#allocation4], %s394
        %s396 = sand.u32 %s214, 1
        %s397 = smul.addr %s396, 8
        %s398 = scalar_lea.vmem [#allocation13], %s397
        %p399 = scmp.lt.s32.totalorder %s28, 1
        %s400 = scalar_select %p399, %s28, 1
        %s401 = scalar_lea.vmem %s7, %s400
        %v402 = vld [vmem:[%s343] sm:$0xff]
        %vm403 = vcmask 261120
        %v404 = vsel %vm403, %v402, 0.0
        %405 = vadd.xlane.f32.xlu0 %v404
        %v406 = vpop.xlane.xlu0 %405
        %v407 = vrcp.pop 32.0
        %v408 = vmul.f32 %v406, %v407
        %v409 = vsub.f32 %v402, %v408
        %v410 = vmul.f32 %v409, %v409
        %v411 = vsel %vm403, %v410, 0.0
        %412 = vadd.xlane.f32.xlu0 %v411
        %v413 = vpop.xlane.xlu0 %412
        %v414 = vmul.f32 %v413, %v407
        %v415 = vadd.f32 %v414, 1e-05
        %v416 = vrsqrt.pop %v415
        %v417 = vmul.f32 %v409, %v416
        %v418 = vld [vmem:[#allocation5] sm:$0x1]
        %v420 = vlaneseq
        %v421 = vshrl.u32 %v420, 7
        %v422 = vsub.s32 0, %v421
        %v423 = vrot.slane %v418, %v422
        %v425 = vmul.f32 %v417, %v423
        %v426 = vld [vmem:[#allocation7] sm:$0x1]
        %v428 = vlaneseq
        %v429 = vshrl.u32 %v428, 7
        %v430 = vsub.s32 0, %v429
        %v431 = vrot.slane %v426, %v430
        %v433 = vadd.f32 %v425, %v431
        %v434 = vld [vmem:[#allocation8] sm:$0xff]
        %v435 = vld [vmem:[#allocation8 + $0x8] sm:$0xff]
        %v436 = vld [vmem:[#allocation8 + $0x10] sm:$0xff]
        %v437 = vld [vmem:[#allocation8 + $0x18] sm:$0xff]
        %v438 = vld [vmem:[#allocation10] sm:$0x1]
        %v440 = vlaneseq
        %v441 = vshrl.u32 %v440, 7
        %v442 = vsub.s32 0, %v441
        %v443 = vrot.slane %v438, %v442
        %v446 = vsel %vm403, %v433, 0
        %448 = vmatprep.subr.mxu0 0.0
        %449 = vmatpush1.msra.mxu0 0.0
        %450 = vmatprep.subr.mxu0 0.0
        %451 = vmatpush1.msra.mxu0 0.0
        %452 = vmatprep.subr.mxu0 0.0
        %453 = vmatpush1.msra.mxu0 0.0
        %454 = vmatprep.subr.mxu0 0.0
        %455 = vmatpush1.msra.mxu0 0.0
        %456 = vmatprep.subr.mxu0 0.0
        %457 = vmatpush1.msra.mxu0 0.0
        %458 = vmatprep.subr.mxu0 0.0
        %459 = vmatpush1.msra.mxu0 0.0
        %460 = vmatprep.subr.mxu0 0.0
        %461 = vmatpush1.msra.mxu0 0.0
        %462 = vmatprep.subr.mxu0 0.0
        %463 = vmatpush1.msra.mxu0 0.0
        %464 = vmatprep.subr.mxu0 0.0
        %465 = vmatpush1.msra.mxu0 0.0
        %466 = vmatprep.subr.mxu0 0.0
        %467 = vmatpush1.msra.mxu0 0.0
        %468 = vmatprep.subr.mxu0 0.0
        %469 = vmatpush1.msra.mxu0 0.0
        %470 = vmatprep.subr.mxu0 0.0
        %471 = vmatpush1.msra.mxu0 0.0
        %472 = vmatprep.subr.mxu0 0.0
        %v473 = vand.u32 %v437, 4294901760
        %474 = vmatpush1.msra.mxu0 %v473
        %475 = vmatprep.subr.mxu0 0.0
        %v476 = vand.u32 %v436, 4294901760
        %477 = vmatpush1.msra.mxu0 %v476
        %478 = vmatprep.subr.mxu0 0.0
        %v479 = vand.u32 %v435, 4294901760
        %480 = vmatpush1.msra.mxu0 %v479
        %481 = vmatprep.subr.mxu0 0.0
        %v482 = vand.u32 %v434, 4294901760
        %483 = vmatpush1.msra.mxu0 %v482
        %484 = vmatprep.subr.mxu0 0.0
        %485 = vmatpush2.msra.mxu0 0.0
        %486 = vmatprep.subr.mxu0 0.0
        %487 = vmatpush2.msra.mxu0 0.0
        %488 = vmatprep.subr.mxu0 0.0
        %489 = vmatpush2.msra.mxu0 0.0
        %490 = vmatprep.subr.mxu0 0.0
        %491 = vmatpush2.msra.mxu0 0.0
        %492 = vmatprep.subr.mxu0 0.0
        %493 = vmatpush2.msra.mxu0 0.0
        %494 = vmatprep.subr.mxu0 0.0
        %495 = vmatpush2.msra.mxu0 0.0
        %496 = vmatprep.subr.mxu0 0.0
        %497 = vmatpush2.msra.mxu0 0.0
        %498 = vmatprep.subr.mxu0 0.0
        %499 = vmatpush2.msra.mxu0 0.0
        %500 = vmatprep.subr.mxu0 0.0
        %501 = vmatpush2.msra.mxu0 0.0
        %502 = vmatprep.subr.mxu0 0.0
        %503 = vmatpush2.msra.mxu0 0.0
        %504 = vmatprep.subr.mxu0 0.0
        %505 = vmatpush2.msra.mxu0 0.0
        %506 = vmatprep.subr.mxu0 0.0
        %507 = vmatpush2.msra.mxu0 0.0
        %508 = vmatprep.subr.mxu0 0.0
        %509 = vmatpush2.msra.mxu0 0.0
        %510 = vmatprep.subr.mxu0 0.0
        %511 = vmatpush2.msra.mxu0 0.0
        %512 = vmatprep.subr.mxu0 0.0
        %513 = vmatpush2.msra.mxu0 0.0
        %514 = vmatprep.subr.mxu0 0.0
        %515 = vmatpush2.msra.mxu0 0.0
        %516 = vmatprep.mubr.f32.mxu0 0.0
        %v517 = vand.u32 %v446, 4294901760
        %v518 = vsub.f32 %v446, %v517
        %v519 = vand.u32 %v518, 4294901760
        %v520 = vsub.f32 %v518, %v519
        %v521 = vand.u32 %v520, 4294901760
        %522 = vmatmul.mubr.f32.gmra.mxu0 %v521
        %v523 = vpop.f32.mrf.mxu0
        %v524 = vadd.f32 %v443, %v523
        %v525 = vpop.f32.mrf.mxu0
        %526 = vdwg.mxu0
        %527 = vmatprep.subr.mxu0 0.0
        %528 = vmatpush1.msra.mxu0 0.0
        %529 = vmatprep.subr.mxu0 0.0
        %530 = vmatpush1.msra.mxu0 0.0
        %531 = vmatprep.subr.mxu0 0.0
        %532 = vmatpush1.msra.mxu0 0.0
        %533 = vmatprep.subr.mxu0 0.0
        %534 = vmatpush1.msra.mxu0 0.0
        %535 = vmatprep.subr.mxu0 0.0
        %536 = vmatpush1.msra.mxu0 0.0
        %537 = vmatprep.subr.mxu0 0.0
        %538 = vmatpush1.msra.mxu0 0.0
        %539 = vmatprep.subr.mxu0 0.0
        %540 = vmatpush1.msra.mxu0 0.0
        %541 = vmatprep.subr.mxu0 0.0
        %542 = vmatpush1.msra.mxu0 0.0
        %543 = vmatprep.subr.mxu0 0.0
        %544 = vmatpush1.msra.mxu0 0.0
        %545 = vmatprep.subr.mxu0 0.0
        %546 = vmatpush1.msra.mxu0 0.0
        %547 = vmatprep.subr.mxu0 0.0
        %548 = vmatpush1.msra.mxu0 0.0
        %549 = vmatprep.subr.mxu0 0.0
        %550 = vmatpush1.msra.mxu0 0.0
        %551 = vmatprep.subr.mxu0 0.0
        %v552 = vand.u32 %v437, 4294901760
        %v553 = vsub.f32 %v437, %v552
        %v554 = vand.u32 %v553, 4294901760
        %v555 = vsub.f32 %v553, %v554
        %v556 = vand.u32 %v555, 4294901760
        %557 = vmatpush1.msra.mxu0 %v556
        %558 = vmatprep.subr.mxu0 0.0
        %v559 = vand.u32 %v436, 4294901760
        %v560 = vsub.f32 %v436, %v559
        %v561 = vand.u32 %v560, 4294901760
        %v562 = vsub.f32 %v560, %v561
        %v563 = vand.u32 %v562, 4294901760
        %564 = vmatpush1.msra.mxu0 %v563
        %565 = vmatprep.subr.mxu0 0.0
        %v566 = vand.u32 %v435, 4294901760
        %v567 = vsub.f32 %v435, %v566
        %v568 = vand.u32 %v567, 4294901760
        %v569 = vsub.f32 %v567, %v568
        %v570 = vand.u32 %v569, 4294901760
        %571 = vmatpush1.msra.mxu0 %v570
        %572 = vmatprep.subr.mxu0 0.0
        %v573 = vand.u32 %v434, 4294901760
        %v574 = vsub.f32 %v434, %v573
        %v575 = vand.u32 %v574, 4294901760
        %v576 = vsub.f32 %v574, %v575
        %v577 = vand.u32 %v576, 4294901760
        %578 = vmatpush1.msra.mxu0 %v577
        %579 = vmatprep.subr.mxu0 0.0
        %580 = vmatpush2.msra.mxu0 0.0
        %581 = vmatprep.subr.mxu0 0.0
        %582 = vmatpush2.msra.mxu0 0.0
        %583 = vmatprep.subr.mxu0 0.0
        %584 = vmatpush2.msra.mxu0 0.0
        %585 = vmatprep.subr.mxu0 0.0
        %586 = vmatpush2.msra.mxu0 0.0
        %587 = vmatprep.subr.mxu0 0.0
        %588 = vmatpush2.msra.mxu0 0.0
        %589 = vmatprep.subr.mxu0 0.0
        %590 = vmatpush2.msra.mxu0 0.0
        %591 = vmatprep.subr.mxu0 0.0
        %592 = vmatpush2.msra.mxu0 0.0
        %593 = vmatprep.subr.mxu0 0.0
        %594 = vmatpush2.msra.mxu0 0.0
        %595 = vmatprep.subr.mxu0 0.0
        %596 = vmatpush2.msra.mxu0 0.0
        %597 = vmatprep.subr.mxu0 0.0
        %598 = vmatpush2.msra.mxu0 0.0
        %599 = vmatprep.subr.mxu0 0.0
        %600 = vmatpush2.msra.mxu0 0.0
        %601 = vmatprep.subr.mxu0 0.0
        %602 = vmatpush2.msra.mxu0 0.0
        %603 = vmatprep.subr.mxu0 0.0
        %604 = vmatpush2.msra.mxu0 0.0
        %605 = vmatprep.subr.mxu0 0.0
        %606 = vmatpush2.msra.mxu0 0.0
        %607 = vmatprep.subr.mxu0 0.0
        %608 = vmatpush2.msra.mxu0 0.0
        %609 = vmatprep.subr.mxu0 0.0
        %610 = vmatpush2.msra.mxu0 0.0
        %611 = vmatprep.mubr.f32.mxu0 0.0
        %v612 = vand.u32 %v446, 4294901760
        %613 = vmatmul.mubr.f32.gmra.mxu0 %v612
        %v614 = vpop.f32.mrf.mxu0
        %v615 = vadd.f32 %v524, %v614
        %v616 = vpop.f32.mrf.mxu0
        %617 = vdwg.mxu0
        %618 = vmatprep.subr.mxu0 0.0
        %619 = vmatpush1.msra.mxu0 0.0
        %620 = vmatprep.subr.mxu0 0.0
        %621 = vmatpush1.msra.mxu0 0.0
        %622 = vmatprep.subr.mxu0 0.0
        %623 = vmatpush1.msra.mxu0 0.0
        %624 = vmatprep.subr.mxu0 0.0
        %625 = vmatpush1.msra.mxu0 0.0
        %626 = vmatprep.subr.mxu0 0.0
        %627 = vmatpush1.msra.mxu0 0.0
        %628 = vmatprep.subr.mxu0 0.0
        %629 = vmatpush1.msra.mxu0 0.0
        %630 = vmatprep.subr.mxu0 0.0
        %631 = vmatpush1.msra.mxu0 0.0
        %632 = vmatprep.subr.mxu0 0.0
        %633 = vmatpush1.msra.mxu0 0.0
        %634 = vmatprep.subr.mxu0 0.0
        %635 = vmatpush1.msra.mxu0 0.0
        %636 = vmatprep.subr.mxu0 0.0
        %637 = vmatpush1.msra.mxu0 0.0
        %638 = vmatprep.subr.mxu0 0.0
        %639 = vmatpush1.msra.mxu0 0.0
        %640 = vmatprep.subr.mxu0 0.0
        %641 = vmatpush1.msra.mxu0 0.0
        %642 = vmatprep.subr.mxu0 0.0
        %v643 = vand.u32 %v437, 4294901760
        %v644 = vsub.f32 %v437, %v643
        %645 = vmatpush1.msra.mxu0 %v644
        %646 = vmatprep.subr.mxu0 0.0
        %v647 = vand.u32 %v436, 4294901760
        %v648 = vsub.f32 %v436, %v647
        %649 = vmatpush1.msra.mxu0 %v648
        %650 = vmatprep.subr.mxu0 0.0
        %v651 = vand.u32 %v435, 4294901760
        %v652 = vsub.f32 %v435, %v651
        %653 = vmatpush1.msra.mxu0 %v652
        %654 = vmatprep.subr.mxu0 0.0
        %v655 = vand.u32 %v434, 4294901760
        %v656 = vsub.f32 %v434, %v655
        %657 = vmatpush1.msra.mxu0 %v656
        %658 = vmatprep.subr.mxu0 0.0
        %659 = vmatpush2.msra.mxu0 0.0
        %660 = vmatprep.subr.mxu0 0.0
        %661 = vmatpush2.msra.mxu0 0.0
        %662 = vmatprep.subr.mxu0 0.0
        %663 = vmatpush2.msra.mxu0 0.0
        %664 = vmatprep.subr.mxu0 0.0
        %665 = vmatpush2.msra.mxu0 0.0
        %666 = vmatprep.subr.mxu0 0.0
        %667 = vmatpush2.msra.mxu0 0.0
        %668 = vmatprep.subr.mxu0 0.0
        %669 = vmatpush2.msra.mxu0 0.0
        %670 = vmatprep.subr.mxu0 0.0
        %671 = vmatpush2.msra.mxu0 0.0
        %672 = vmatprep.subr.mxu0 0.0
        %673 = vmatpush2.msra.mxu0 0.0
        %674 = vmatprep.subr.mxu0 0.0
        %675 = vmatpush2.msra.mxu0 0.0
        %676 = vmatprep.subr.mxu0 0.0
        %677 = vmatpush2.msra.mxu0 0.0
        %678 = vmatprep.subr.mxu0 0.0
        %679 = vmatpush2.msra.mxu0 0.0
        %680 = vmatprep.subr.mxu0 0.0
        %681 = vmatpush2.msra.mxu0 0.0
        %682 = vmatprep.subr.mxu0 0.0
        %683 = vmatpush2.msra.mxu0 0.0
        %684 = vmatprep.subr.mxu0 0.0
        %685 = vmatpush2.msra.mxu0 0.0
        %686 = vmatprep.subr.mxu0 0.0
        %687 = vmatpush2.msra.mxu0 0.0
        %688 = vmatprep.subr.mxu0 0.0
        %689 = vmatpush2.msra.mxu0 0.0
        %690 = vmatprep.mubr.f32.mxu0 0.0
        %v691 = vand.u32 %v446, 4294901760
        %v692 = vsub.f32 %v446, %v691
        %693 = vmatmul.mubr.f32.gmra.mxu0 %v692
        %v694 = vpop.f32.mrf.mxu0
        %v695 = vadd.f32 %v615, %v694
        %v696 = vpop.f32.mrf.mxu0
        %697 = vdwg.mxu0
        %698 = vmatprep.subr.mxu0 0.0
        %699 = vmatpush1.msra.mxu0 0.0
        %700 = vmatprep.subr.mxu0 0.0
        %701 = vmatpush1.msra.mxu0 0.0
        %702 = vmatprep.subr.mxu0 0.0
        %703 = vmatpush1.msra.mxu0 0.0
        %704 = vmatprep.subr.mxu0 0.0
        %705 = vmatpush1.msra.mxu0 0.0
        %706 = vmatprep.subr.mxu0 0.0
        %707 = vmatpush1.msra.mxu0 0.0
        %708 = vmatprep.subr.mxu0 0.0
        %709 = vmatpush1.msra.mxu0 0.0
        %710 = vmatprep.subr.mxu0 0.0
        %711 = vmatpush1.msra.mxu0 0.0
        %712 = vmatprep.subr.mxu0 0.0
        %713 = vmatpush1.msra.mxu0 0.0
        %714 = vmatprep.subr.mxu0 0.0
        %715 = vmatpush1.msra.mxu0 0.0
        %716 = vmatprep.subr.mxu0 0.0
        %717 = vmatpush1.msra.mxu0 0.0
        %718 = vmatprep.subr.mxu0 0.0
        %719 = vmatpush1.msra.mxu0 0.0
        %720 = vmatprep.subr.mxu0 0.0
        %721 = vmatpush1.msra.mxu0 0.0
        %722 = vmatprep.subr.mxu0 0.0
        %v723 = vand.u32 %v437, 4294901760
        %724 = vmatpush1.msra.mxu0 %v723
        %725 = vmatprep.subr.mxu0 0.0
        %v726 = vand.u32 %v436, 4294901760
        %727 = vmatpush1.msra.mxu0 %v726
        %728 = vmatprep.subr.mxu0 0.0
        %v729 = vand.u32 %v435, 4294901760
        %730 = vmatpush1.msra.mxu0 %v729
        %731 = vmatprep.subr.mxu0 0.0
        %v732 = vand.u32 %v434, 4294901760
        %733 = vmatpush1.msra.mxu0 %v732
        %734 = vmatprep.subr.mxu0 0.0
        %735 = vmatpush2.msra.mxu0 0.0
        %736 = vmatprep.subr.mxu0 0.0
        %737 = vmatpush2.msra.mxu0 0.0
        %738 = vmatprep.subr.mxu0 0.0
        %739 = vmatpush2.msra.mxu0 0.0
        %740 = vmatprep.subr.mxu0 0.0
        %741 = vmatpush2.msra.mxu0 0.0
        %742 = vmatprep.subr.mxu0 0.0
        %743 = vmatpush2.msra.mxu0 0.0
        %744 = vmatprep.subr.mxu0 0.0
        %745 = vmatpush2.msra.mxu0 0.0
        %746 = vmatprep.subr.mxu0 0.0
        %747 = vmatpush2.msra.mxu0 0.0
        %748 = vmatprep.subr.mxu0 0.0
        %749 = vmatpush2.msra.mxu0 0.0
        %750 = vmatprep.subr.mxu0 0.0
        %751 = vmatpush2.msra.mxu0 0.0
        %752 = vmatprep.subr.mxu0 0.0
        %753 = vmatpush2.msra.mxu0 0.0
        %754 = vmatprep.subr.mxu0 0.0
        %755 = vmatpush2.msra.mxu0 0.0
        %756 = vmatprep.subr.mxu0 0.0
        %757 = vmatpush2.msra.mxu0 0.0
        %758 = vmatprep.subr.mxu0 0.0
        %759 = vmatpush2.msra.mxu0 0.0
        %760 = vmatprep.subr.mxu0 0.0
        %761 = vmatpush2.msra.mxu0 0.0
        %762 = vmatprep.subr.mxu0 0.0
        %763 = vmatpush2.msra.mxu0 0.0
        %764 = vmatprep.subr.mxu0 0.0
        %765 = vmatpush2.msra.mxu0 0.0
        %766 = vmatprep.mubr.f32.mxu0 0.0
        %v767 = vand.u32 %v446, 4294901760
        %v768 = vsub.f32 %v446, %v767
        %v769 = vand.u32 %v768, 4294901760
        %770 = vmatmul.mubr.f32.gmra.mxu0 %v769
        %v771 = vpop.f32.mrf.mxu0
        %v772 = vadd.f32 %v695, %v771
        %v773 = vpop.f32.mrf.mxu0
        %774 = vdwg.mxu0
        %775 = vmatprep.subr.mxu0 0.0
        %776 = vmatpush1.msra.mxu0 0.0
        %777 = vmatprep.subr.mxu0 0.0
        %778 = vmatpush1.msra.mxu0 0.0
        %779 = vmatprep.subr.mxu0 0.0
        %780 = vmatpush1.msra.mxu0 0.0
        %781 = vmatprep.subr.mxu0 0.0
        %782 = vmatpush1.msra.mxu0 0.0
        %783 = vmatprep.subr.mxu0 0.0
        %784 = vmatpush1.msra.mxu0 0.0
        %785 = vmatprep.subr.mxu0 0.0
        %786 = vmatpush1.msra.mxu0 0.0
        %787 = vmatprep.subr.mxu0 0.0
        %788 = vmatpush1.msra.mxu0 0.0
        %789 = vmatprep.subr.mxu0 0.0
        %790 = vmatpush1.msra.mxu0 0.0
        %791 = vmatprep.subr.mxu0 0.0
        %792 = vmatpush1.msra.mxu0 0.0
        %793 = vmatprep.subr.mxu0 0.0
        %794 = vmatpush1.msra.mxu0 0.0
        %795 = vmatprep.subr.mxu0 0.0
        %796 = vmatpush1.msra.mxu0 0.0
        %797 = vmatprep.subr.mxu0 0.0
        %798 = vmatpush1.msra.mxu0 0.0
        %799 = vmatprep.subr.mxu0 0.0
        %v800 = vand.u32 %v437, 4294901760
        %v801 = vsub.f32 %v437, %v800
        %v802 = vand.u32 %v801, 4294901760
        %803 = vmatpush1.msra.mxu0 %v802
        %804 = vmatprep.subr.mxu0 0.0
        %v805 = vand.u32 %v436, 4294901760
        %v806 = vsub.f32 %v436, %v805
        %v807 = vand.u32 %v806, 4294901760
        %808 = vmatpush1.msra.mxu0 %v807
        %809 = vmatprep.subr.mxu0 0.0
        %v810 = vand.u32 %v435, 4294901760
        %v811 = vsub.f32 %v435, %v810
        %v812 = vand.u32 %v811, 4294901760
        %813 = vmatpush1.msra.mxu0 %v812
        %814 = vmatprep.subr.mxu0 0.0
        %v815 = vand.u32 %v434, 4294901760
        %v816 = vsub.f32 %v434, %v815
        %v817 = vand.u32 %v816, 4294901760
        %818 = vmatpush1.msra.mxu0 %v817
        %819 = vmatprep.subr.mxu0 0.0
        %820 = vmatpush2.msra.mxu0 0.0
        %821 = vmatprep.subr.mxu0 0.0
        %822 = vmatpush2.msra.mxu0 0.0
        %823 = vmatprep.subr.mxu0 0.0
        %824 = vmatpush2.msra.mxu0 0.0
        %825 = vmatprep.subr.mxu0 0.0
        %826 = vmatpush2.msra.mxu0 0.0
        %827 = vmatprep.subr.mxu0 0.0
        %828 = vmatpush2.msra.mxu0 0.0
        %829 = vmatprep.subr.mxu0 0.0
        %830 = vmatpush2.msra.mxu0 0.0
        %831 = vmatprep.subr.mxu0 0.0
        %832 = vmatpush2.msra.mxu0 0.0
        %833 = vmatprep.subr.mxu0 0.0
        %834 = vmatpush2.msra.mxu0 0.0
        %835 = vmatprep.subr.mxu0 0.0
        %836 = vmatpush2.msra.mxu0 0.0
        %837 = vmatprep.subr.mxu0 0.0
        %838 = vmatpush2.msra.mxu0 0.0
        %839 = vmatprep.subr.mxu0 0.0
        %840 = vmatpush2.msra.mxu0 0.0
        %841 = vmatprep.subr.mxu0 0.0
        %842 = vmatpush2.msra.mxu0 0.0
        %843 = vmatprep.subr.mxu0 0.0
        %844 = vmatpush2.msra.mxu0 0.0
        %845 = vmatprep.subr.mxu0 0.0
        %846 = vmatpush2.msra.mxu0 0.0
        %847 = vmatprep.subr.mxu0 0.0
        %848 = vmatpush2.msra.mxu0 0.0
        %849 = vmatprep.subr.mxu0 0.0
        %850 = vmatpush2.msra.mxu0 0.0
        %851 = vmatprep.mubr.f32.mxu0 0.0
        %v852 = vand.u32 %v446, 4294901760
        %853 = vmatmul.mubr.f32.gmra.mxu0 %v852
        %v854 = vpop.f32.mrf.mxu0
        %v855 = vadd.f32 %v772, %v854
        %v856 = vpop.f32.mrf.mxu0
        %857 = vdwg.mxu0
        %858 = vmatprep.subr.mxu0 0.0
        %859 = vmatpush1.msra.mxu0 0.0
        %860 = vmatprep.subr.mxu0 0.0
        %861 = vmatpush1.msra.mxu0 0.0
        %862 = vmatprep.subr.mxu0 0.0
        %863 = vmatpush1.msra.mxu0 0.0
        %864 = vmatprep.subr.mxu0 0.0
        %865 = vmatpush1.msra.mxu0 0.0
        %866 = vmatprep.subr.mxu0 0.0
        %867 = vmatpush1.msra.mxu0 0.0
        %868 = vmatprep.subr.mxu0 0.0
        %869 = vmatpush1.msra.mxu0 0.0
        %870 = vmatprep.subr.mxu0 0.0
        %871 = vmatpush1.msra.mxu0 0.0
        %872 = vmatprep.subr.mxu0 0.0
        %873 = vmatpush1.msra.mxu0 0.0
        %874 = vmatprep.subr.mxu0 0.0
        %875 = vmatpush1.msra.mxu0 0.0
        %876 = vmatprep.subr.mxu0 0.0
        %877 = vmatpush1.msra.mxu0 0.0
        %878 = vmatprep.subr.mxu0 0.0
        %879 = vmatpush1.msra.mxu0 0.0
        %880 = vmatprep.subr.mxu0 0.0
        %881 = vmatpush1.msra.mxu0 0.0
        %882 = vmatprep.subr.mxu0 0.0
        %v883 = vand.u32 %v437, 4294901760
        %884 = vmatpush1.msra.mxu0 %v883
        %885 = vmatprep.subr.mxu0 0.0
        %v886 = vand.u32 %v436, 4294901760
        %887 = vmatpush1.msra.mxu0 %v886
        %888 = vmatprep.subr.mxu0 0.0
        %v889 = vand.u32 %v435, 4294901760
        %890 = vmatpush1.msra.mxu0 %v889
        %891 = vmatprep.subr.mxu0 0.0
        %v892 = vand.u32 %v434, 4294901760
        %893 = vmatpush1.msra.mxu0 %v892
        %894 = vmatprep.subr.mxu0 0.0
        %895 = vmatpush2.msra.mxu0 0.0
        %896 = vmatprep.subr.mxu0 0.0
        %897 = vmatpush2.msra.mxu0 0.0
        %898 = vmatprep.subr.mxu0 0.0
        %899 = vmatpush2.msra.mxu0 0.0
        %900 = vmatprep.subr.mxu0 0.0
        %901 = vmatpush2.msra.mxu0 0.0
        %902 = vmatprep.subr.mxu0 0.0
        %903 = vmatpush2.msra.mxu0 0.0
        %904 = vmatprep.subr.mxu0 0.0
        %905 = vmatpush2.msra.mxu0 0.0
        %906 = vmatprep.subr.mxu0 0.0
        %907 = vmatpush2.msra.mxu0 0.0
        %908 = vmatprep.subr.mxu0 0.0
        %909 = vmatpush2.msra.mxu0 0.0
        %910 = vmatprep.subr.mxu0 0.0
        %911 = vmatpush2.msra.mxu0 0.0
        %912 = vmatprep.subr.mxu0 0.0
        %913 = vmatpush2.msra.mxu0 0.0
        %914 = vmatprep.subr.mxu0 0.0
        %915 = vmatpush2.msra.mxu0 0.0
        %916 = vmatprep.subr.mxu0 0.0
        %917 = vmatpush2.msra.mxu0 0.0
        %918 = vmatprep.subr.mxu0 0.0
        %919 = vmatpush2.msra.mxu0 0.0
        %920 = vmatprep.subr.mxu0 0.0
        %921 = vmatpush2.msra.mxu0 0.0
        %922 = vmatprep.subr.mxu0 0.0
        %923 = vmatpush2.msra.mxu0 0.0
        %924 = vmatprep.subr.mxu0 0.0
        %925 = vmatpush2.msra.mxu0 0.0
        %926 = vmatprep.mubr.f32.mxu0 0.0
        %v927 = vand.u32 %v446, 4294901760
        %928 = vmatmul.mubr.f32.gmra.mxu0 %v927
        %v929 = vpop.f32.mrf.mxu0
        %v930 = vadd.f32 %v855, %v929
        %v931 = vpop.f32.mrf.mxu0
        %932 = vdwg.mxu0
        %v933 = vmul.f32 %v930, 0.35355338
        %v934 = vld [vmem:[%s6] sm:$0xff]
        %vm935 = vcmp.eq.s32.totalorder %v934, 0
        %v936 = vsel %vm935, -1e+30, 0.0
        %v937 = vld [vmem:[%s401] sm:$0x1]
        %vm938 = vcmp.ne.s32.totalorder %v937, 0
        %v939 = vsel %vm938, -1e+30, 0.0
        %v941 = vlaneseq
        %v942 = vshrl.u32 %v941, 7
        %v943 = vsub.s32 0, %v942
        %v944 = vrot.slane %v939, %v943
        %v946 = vadd.f32 %v936, %v944
        %948 = vrot.lane.b32.xlu0 %v930, 96
        %v949 = vpop.permute.xlu0 %948
        %vm950 = vcmask 64512
        %v952 = vsel %vm950, %v933, 0
        %v954 = vsel %vm950, %v949, 0
        %956 = vmatprep.subr.mxu0 0.0
        %957 = vmatpush1.xpose.msra.mxu0 0.0
        %958 = vmatprep.subr.mxu0 0.0
        %959 = vmatpush1.xpose.msra.mxu0 0.0
        %960 = vmatprep.subr.mxu0 0.0
        %961 = vmatpush1.xpose.msra.mxu0 0.0
        %962 = vmatprep.subr.mxu0 0.0
        %963 = vmatpush1.xpose.msra.mxu0 0.0
        %964 = vmatprep.subr.mxu0 0.0
        %965 = vmatpush1.xpose.msra.mxu0 0.0
        %966 = vmatprep.subr.mxu0 0.0
        %967 = vmatpush1.xpose.msra.mxu0 0.0
        %968 = vmatprep.subr.mxu0 0.0
        %969 = vmatpush1.xpose.msra.mxu0 0.0
        %970 = vmatprep.subr.mxu0 0.0
        %971 = vmatpush1.xpose.msra.mxu0 0.0
        %972 = vmatprep.subr.mxu0 0.0
        %973 = vmatpush1.xpose.msra.mxu0 0.0
        %974 = vmatprep.subr.mxu0 0.0
        %975 = vmatpush1.xpose.msra.mxu0 0.0
        %976 = vmatprep.subr.mxu0 0.0
        %977 = vmatpush1.xpose.msra.mxu0 0.0
        %978 = vmatprep.subr.mxu0 0.0
        %979 = vmatpush1.xpose.msra.mxu0 0.0
        %980 = vmatprep.subr.mxu0 0.0
        %981 = vmatpush1.xpose.msra.mxu0 0.0
        %982 = vmatprep.subr.mxu0 0.0
        %983 = vmatpush1.xpose.msra.mxu0 0.0
        %984 = vmatprep.subr.mxu0 0.0
        %985 = vmatpush1.xpose.msra.mxu0 0.0
        %986 = vmatprep.subr.mxu0 0.0
        %v987 = vand.u32 %v954, 4294901760
        %988 = vmatpush1.xpose.msra.mxu0 %v987
        %989 = vmatprep.subr.mxu0 0.0
        %990 = vmatpush2.xpose.msra.mxu0 0.0
        %991 = vmatprep.subr.mxu0 0.0
        %992 = vmatpush2.xpose.msra.mxu0 0.0
        %993 = vmatprep.subr.mxu0 0.0
        %994 = vmatpush2.xpose.msra.mxu0 0.0
        %995 = vmatprep.subr.mxu0 0.0
        %996 = vmatpush2.xpose.msra.mxu0 0.0
        %997 = vmatprep.subr.mxu0 0.0
        %998 = vmatpush2.xpose.msra.mxu0 0.0
        %999 = vmatprep.subr.mxu0 0.0
        %1000 = vmatpush2.xpose.msra.mxu0 0.0
        %1001 = vmatprep.subr.mxu0 0.0
        %1002 = vmatpush2.xpose.msra.mxu0 0.0
        %1003 = vmatprep.subr.mxu0 0.0
        %1004 = vmatpush2.xpose.msra.mxu0 0.0
        %1005 = vmatprep.subr.mxu0 0.0
        %1006 = vmatpush2.xpose.msra.mxu0 0.0
        %1007 = vmatprep.subr.mxu0 0.0
        %1008 = vmatpush2.xpose.msra.mxu0 0.0
        %1009 = vmatprep.subr.mxu0 0.0
        %1010 = vmatpush2.xpose.msra.mxu0 0.0
        %1011 = vmatprep.subr.mxu0 0.0
        %1012 = vmatpush2.xpose.msra.mxu0 0.0
        %1013 = vmatprep.subr.mxu0 0.0
        %1014 = vmatpush2.xpose.msra.mxu0 0.0
        %1015 = vmatprep.subr.mxu0 0.0
        %1016 = vmatpush2.xpose.msra.mxu0 0.0
        %1017 = vmatprep.subr.mxu0 0.0
        %1018 = vmatpush2.xpose.msra.mxu0 0.0
        %1019 = vmatprep.subr.mxu0 0.0
        %1020 = vmatpush2.xpose.msra.mxu0 0.0
        %1021 = vmatprep.mubr.f32.mxu0 0.0
        %v1022 = vand.u32 %v952, 4294901760
        %v1023 = vsub.f32 %v952, %v1022
        %v1024 = vand.u32 %v1023, 4294901760
        %v1025 = vsub.f32 %v1023, %v1024
        %v1026 = vand.u32 %v1025, 4294901760
        %1027 = vmatmul.mubr.f32.gmra.mxu0 %v1026
        %v1028 = vpop.f32.mrf.mxu0
        %v1029 = vadd.f32 %v946, %v1028
        %v1030 = vpop.f32.mrf.mxu0
        %1031 = vdwg.mxu0
        %1032 = vmatprep.subr.mxu0 0.0
        %1033 = vmatpush1.xpose.msra.mxu0 0.0
        %1034 = vmatprep.subr.mxu0 0.0
        %1035 = vmatpush1.xpose.msra.mxu0 0.0
        %1036 = vmatprep.subr.mxu0 0.0
        %1037 = vmatpush1.xpose.msra.mxu0 0.0
        %1038 = vmatprep.subr.mxu0 0.0
        %1039 = vmatpush1.xpose.msra.mxu0 0.0
        %1040 = vmatprep.subr.mxu0 0.0
        %1041 = vmatpush1.xpose.msra.mxu0 0.0
        %1042 = vmatprep.subr.mxu0 0.0
        %1043 = vmatpush1.xpose.msra.mxu0 0.0
        %1044 = vmatprep.subr.mxu0 0.0
        %1045 = vmatpush1.xpose.msra.mxu0 0.0
        %1046 = vmatprep.subr.mxu0 0.0
        %1047 = vmatpush1.xpose.msra.mxu0 0.0
        %1048 = vmatprep.subr.mxu0 0.0
        %1049 = vmatpush1.xpose.msra.mxu0 0.0
        %1050 = vmatprep.subr.mxu0 0.0
        %1051 = vmatpush1.xpose.msra.mxu0 0.0
        %1052 = vmatprep.subr.mxu0 0.0
        %1053 = vmatpush1.xpose.msra.mxu0 0.0
        %1054 = vmatprep.subr.mxu0 0.0
        %1055 = vmatpush1.xpose.msra.mxu0 0.0
        %1056 = vmatprep.subr.mxu0 0.0
        %1057 = vmatpush1.xpose.msra.mxu0 0.0
        %1058 = vmatprep.subr.mxu0 0.0
        %1059 = vmatpush1.xpose.msra.mxu0 0.0
        %1060 = vmatprep.subr.mxu0 0.0
        %1061 = vmatpush1.xpose.msra.mxu0 0.0
        %1062 = vmatprep.subr.mxu0 0.0
        %v1063 = vand.u32 %v954, 4294901760
        %v1064 = vsub.f32 %v954, %v1063
        %v1065 = vand.u32 %v1064, 4294901760
        %v1066 = vsub.f32 %v1064, %v1065
        %v1067 = vand.u32 %v1066, 4294901760
        %1068 = vmatpush1.xpose.msra.mxu0 %v1067
        %1069 = vmatprep.subr.mxu0 0.0
        %1070 = vmatpush2.xpose.msra.mxu0 0.0
        %1071 = vmatprep.subr.mxu0 0.0
        %1072 = vmatpush2.xpose.msra.mxu0 0.0
        %1073 = vmatprep.subr.mxu0 0.0
        %1074 = vmatpush2.xpose.msra.mxu0 0.0
        %1075 = vmatprep.subr.mxu0 0.0
        %1076 = vmatpush2.xpose.msra.mxu0 0.0
        %1077 = vmatprep.subr.mxu0 0.0
        %1078 = vmatpush2.xpose.msra.mxu0 0.0
        %1079 = vmatprep.subr.mxu0 0.0
        %1080 = vmatpush2.xpose.msra.mxu0 0.0
        %1081 = vmatprep.subr.mxu0 0.0
        %1082 = vmatpush2.xpose.msra.mxu0 0.0
        %1083 = vmatprep.subr.mxu0 0.0
        %1084 = vmatpush2.xpose.msra.mxu0 0.0
        %1085 = vmatprep.subr.mxu0 0.0
        %1086 = vmatpush2.xpose.msra.mxu0 0.0
        %1087 = vmatprep.subr.mxu0 0.0
        %1088 = vmatpush2.xpose.msra.mxu0 0.0
        %1089 = vmatprep.subr.mxu0 0.0
        %1090 = vmatpush2.xpose.msra.mxu0 0.0
        %1091 = vmatprep.subr.mxu0 0.0
        %1092 = vmatpush2.xpose.msra.mxu0 0.0
        %1093 = vmatprep.subr.mxu0 0.0
        %1094 = vmatpush2.xpose.msra.mxu0 0.0
        %1095 = vmatprep.subr.mxu0 0.0
        %1096 = vmatpush2.xpose.msra.mxu0 0.0
        %1097 = vmatprep.subr.mxu0 0.0
        %1098 = vmatpush2.xpose.msra.mxu0 0.0
        %1099 = vmatprep.subr.mxu0 0.0
        %1100 = vmatpush2.xpose.msra.mxu0 0.0
        %1101 = vmatprep.mubr.f32.mxu0 0.0
        %v1102 = vand.u32 %v952, 4294901760
        %1103 = vmatmul.mubr.f32.gmra.mxu0 %v1102
        %v1104 = vpop.f32.mrf.mxu0
        %v1105 = vadd.f32 %v1029, %v1104
        %v1106 = vpop.f32.mrf.mxu0
        %1107 = vdwg.mxu0
        %1108 = vmatprep.subr.mxu0 0.0
        %1109 = vmatpush1.xpose.msra.mxu0 0.0
        %1110 = vmatprep.subr.mxu0 0.0
        %1111 = vmatpush1.xpose.msra.mxu0 0.0
        %1112 = vmatprep.subr.mxu0 0.0
        %1113 = vmatpush1.xpose.msra.mxu0 0.0
        %1114 = vmatprep.subr.mxu0 0.0
        %1115 = vmatpush1.xpose.msra.mxu0 0.0
        %1116 = vmatprep.subr.mxu0 0.0
        %1117 = vmatpush1.xpose.msra.mxu0 0.0
        %1118 = vmatprep.subr.mxu0 0.0
        %1119 = vmatpush1.xpose.msra.mxu0 0.0
        %1120 = vmatprep.subr.mxu0 0.0
        %1121 = vmatpush1.xpose.msra.mxu0 0.0
        %1122 = vmatprep.subr.mxu0 0.0
        %1123 = vmatpush1.xpose.msra.mxu0 0.0
        %1124 = vmatprep.subr.mxu0 0.0
        %1125 = vmatpush1.xpose.msra.mxu0 0.0
        %1126 = vmatprep.subr.mxu0 0.0
        %1127 = vmatpush1.xpose.msra.mxu0 0.0
        %1128 = vmatprep.subr.mxu0 0.0
        %1129 = vmatpush1.xpose.msra.mxu0 0.0
        %1130 = vmatprep.subr.mxu0 0.0
        %1131 = vmatpush1.xpose.msra.mxu0 0.0
        %1132 = vmatprep.subr.mxu0 0.0
        %1133 = vmatpush1.xpose.msra.mxu0 0.0
        %1134 = vmatprep.subr.mxu0 0.0
        %1135 = vmatpush1.xpose.msra.mxu0 0.0
        %1136 = vmatprep.subr.mxu0 0.0
        %1137 = vmatpush1.xpose.msra.mxu0 0.0
        %1138 = vmatprep.subr.mxu0 0.0
        %v1139 = vand.u32 %v954, 4294901760
        %v1140 = vsub.f32 %v954, %v1139
        %1141 = vmatpush1.xpose.msra.mxu0 %v1140
        %1142 = vmatprep.subr.mxu0 0.0
        %1143 = vmatpush2.xpose.msra.mxu0 0.0
        %1144 = vmatprep.subr.mxu0 0.0
        %1145 = vmatpush2.xpose.msra.mxu0 0.0
        %1146 = vmatprep.subr.mxu0 0.0
        %1147 = vmatpush2.xpose.msra.mxu0 0.0
        %1148 = vmatprep.subr.mxu0 0.0
        %1149 = vmatpush2.xpose.msra.mxu0 0.0
        %1150 = vmatprep.subr.mxu0 0.0
        %1151 = vmatpush2.xpose.msra.mxu0 0.0
        %1152 = vmatprep.subr.mxu0 0.0
        %1153 = vmatpush2.xpose.msra.mxu0 0.0
        %1154 = vmatprep.subr.mxu0 0.0
        %1155 = vmatpush2.xpose.msra.mxu0 0.0
        %1156 = vmatprep.subr.mxu0 0.0
        %1157 = vmatpush2.xpose.msra.mxu0 0.0
        %1158 = vmatprep.subr.mxu0 0.0
        %1159 = vmatpush2.xpose.msra.mxu0 0.0
        %1160 = vmatprep.subr.mxu0 0.0
        %1161 = vmatpush2.xpose.msra.mxu0 0.0
        %1162 = vmatprep.subr.mxu0 0.0
        %1163 = vmatpush2.xpose.msra.mxu0 0.0
        %1164 = vmatprep.subr.mxu0 0.0
        %1165 = vmatpush2.xpose.msra.mxu0 0.0
        %1166 = vmatprep.subr.mxu0 0.0
        %1167 = vmatpush2.xpose.msra.mxu0 0.0
        %1168 = vmatprep.subr.mxu0 0.0
        %1169 = vmatpush2.xpose.msra.mxu0 0.0
        %1170 = vmatprep.subr.mxu0 0.0
        %1171 = vmatpush2.xpose.msra.mxu0 0.0
        %1172 = vmatprep.subr.mxu0 0.0
        %1173 = vmatpush2.xpose.msra.mxu0 0.0
        %1174 = vmatprep.mubr.f32.mxu0 0.0
        %v1175 = vand.u32 %v952, 4294901760
        %v1176 = vsub.f32 %v952, %v1175
        %1177 = vmatmul.mubr.f32.gmra.mxu0 %v1176
        %v1178 = vpop.f32.mrf.mxu0
        %v1179 = vadd.f32 %v1105, %v1178
        %v1180 = vpop.f32.mrf.mxu0
        %1181 = vdwg.mxu0
        %1182 = vmatprep.subr.mxu0 0.0
        %1183 = vmatpush1.xpose.msra.mxu0 0.0
        %1184 = vmatprep.subr.mxu0 0.0
        %1185 = vmatpush1.xpose.msra.mxu0 0.0
        %1186 = vmatprep.subr.mxu0 0.0
        %1187 = vmatpush1.xpose.msra.mxu0 0.0
        %1188 = vmatprep.subr.mxu0 0.0
        %1189 = vmatpush1.xpose.msra.mxu0 0.0
        %1190 = vmatprep.subr.mxu0 0.0
        %1191 = vmatpush1.xpose.msra.mxu0 0.0
        %1192 = vmatprep.subr.mxu0 0.0
        %1193 = vmatpush1.xpose.msra.mxu0 0.0
        %1194 = vmatprep.subr.mxu0 0.0
        %1195 = vmatpush1.xpose.msra.mxu0 0.0
        %1196 = vmatprep.subr.mxu0 0.0
        %1197 = vmatpush1.xpose.msra.mxu0 0.0
        %1198 = vmatprep.subr.mxu0 0.0
        %1199 = vmatpush1.xpose.msra.mxu0 0.0
        %1200 = vmatprep.subr.mxu0 0.0
        %1201 = vmatpush1.xpose.msra.mxu0 0.0
        %1202 = vmatprep.subr.mxu0 0.0
        %1203 = vmatpush1.xpose.msra.mxu0 0.0
        %1204 = vmatprep.subr.mxu0 0.0
        %1205 = vmatpush1.xpose.msra.mxu0 0.0
        %1206 = vmatprep.subr.mxu0 0.0
        %1207 = vmatpush1.xpose.msra.mxu0 0.0
        %1208 = vmatprep.subr.mxu0 0.0
        %1209 = vmatpush1.xpose.msra.mxu0 0.0
        %1210 = vmatprep.subr.mxu0 0.0
        %1211 = vmatpush1.xpose.msra.mxu0 0.0
        %1212 = vmatprep.subr.mxu0 0.0
        %v1213 = vand.u32 %v954, 4294901760
        %1214 = vmatpush1.xpose.msra.mxu0 %v1213
        %1215 = vmatprep.subr.mxu0 0.0
        %1216 = vmatpush2.xpose.msra.mxu0 0.0
        %1217 = vmatprep.subr.mxu0 0.0
        %1218 = vmatpush2.xpose.msra.mxu0 0.0
        %1219 = vmatprep.subr.mxu0 0.0
        %1220 = vmatpush2.xpose.msra.mxu0 0.0
        %1221 = vmatprep.subr.mxu0 0.0
        %1222 = vmatpush2.xpose.msra.mxu0 0.0
        %1223 = vmatprep.subr.mxu0 0.0
        %1224 = vmatpush2.xpose.msra.mxu0 0.0
        %1225 = vmatprep.subr.mxu0 0.0
        %1226 = vmatpush2.xpose.msra.mxu0 0.0
        %1227 = vmatprep.subr.mxu0 0.0
        %1228 = vmatpush2.xpose.msra.mxu0 0.0
        %1229 = vmatprep.subr.mxu0 0.0
        %1230 = vmatpush2.xpose.msra.mxu0 0.0
        %1231 = vmatprep.subr.mxu0 0.0
        %1232 = vmatpush2.xpose.msra.mxu0 0.0
        %1233 = vmatprep.subr.mxu0 0.0
        %1234 = vmatpush2.xpose.msra.mxu0 0.0
        %1235 = vmatprep.subr.mxu0 0.0
        %1236 = vmatpush2.xpose.msra.mxu0 0.0
        %1237 = vmatprep.subr.mxu0 0.0
        %1238 = vmatpush2.xpose.msra.mxu0 0.0
        %1239 = vmatprep.subr.mxu0 0.0
        %1240 = vmatpush2.xpose.msra.mxu0 0.0
        %1241 = vmatprep.subr.mxu0 0.0
        %1242 = vmatpush2.xpose.msra.mxu0 0.0
        %1243 = vmatprep.subr.mxu0 0.0
        %1244 = vmatpush2.xpose.msra.mxu0 0.0
        %1245 = vmatprep.subr.mxu0 0.0
        %1246 = vmatpush2.xpose.msra.mxu0 0.0
        %1247 = vmatprep.mubr.f32.mxu0 0.0
        %v1248 = vand.u32 %v952, 4294901760
        %v1249 = vsub.f32 %v952, %v1248
        %v1250 = vand.u32 %v1249, 4294901760
        %1251 = vmatmul.mubr.f32.gmra.mxu0 %v1250
        %v1252 = vpop.f32.mrf.mxu0
        %v1253 = vadd.f32 %v1179, %v1252
        %v1254 = vpop.f32.mrf.mxu0
        %1255 = vdwg.mxu0
        %1256 = vmatprep.subr.mxu0 0.0
        %1257 = vmatpush1.xpose.msra.mxu0 0.0
        %1258 = vmatprep.subr.mxu0 0.0
        %1259 = vmatpush1.xpose.msra.mxu0 0.0
        %1260 = vmatprep.subr.mxu0 0.0
        %1261 = vmatpush1.xpose.msra.mxu0 0.0
        %1262 = vmatprep.subr.mxu0 0.0
        %1263 = vmatpush1.xpose.msra.mxu0 0.0
        %1264 = vmatprep.subr.mxu0 0.0
        %1265 = vmatpush1.xpose.msra.mxu0 0.0
        %1266 = vmatprep.subr.mxu0 0.0
        %1267 = vmatpush1.xpose.msra.mxu0 0.0
        %1268 = vmatprep.subr.mxu0 0.0
        %1269 = vmatpush1.xpose.msra.mxu0 0.0
        %1270 = vmatprep.subr.mxu0 0.0
        %1271 = vmatpush1.xpose.msra.mxu0 0.0
        %1272 = vmatprep.subr.mxu0 0.0
        %1273 = vmatpush1.xpose.msra.mxu0 0.0
        %1274 = vmatprep.subr.mxu0 0.0
        %1275 = vmatpush1.xpose.msra.mxu0 0.0
        %1276 = vmatprep.subr.mxu0 0.0
        %1277 = vmatpush1.xpose.msra.mxu0 0.0
        %1278 = vmatprep.subr.mxu0 0.0
        %1279 = vmatpush1.xpose.msra.mxu0 0.0
        %1280 = vmatprep.subr.mxu0 0.0
        %1281 = vmatpush1.xpose.msra.mxu0 0.0
        %1282 = vmatprep.subr.mxu0 0.0
        %1283 = vmatpush1.xpose.msra.mxu0 0.0
        %1284 = vmatprep.subr.mxu0 0.0
        %1285 = vmatpush1.xpose.msra.mxu0 0.0
        %1286 = vmatprep.subr.mxu0 0.0
        %v1287 = vand.u32 %v954, 4294901760
        %v1288 = vsub.f32 %v954, %v1287
        %v1289 = vand.u32 %v1288, 4294901760
        %1290 = vmatpush1.xpose.msra.mxu0 %v1289
        %1291 = vmatprep.subr.mxu0 0.0
        %1292 = vmatpush2.xpose.msra.mxu0 0.0
        %1293 = vmatprep.subr.mxu0 0.0
        %1294 = vmatpush2.xpose.msra.mxu0 0.0
        %1295 = vmatprep.subr.mxu0 0.0
        %1296 = vmatpush2.xpose.msra.mxu0 0.0
        %1297 = vmatprep.subr.mxu0 0.0
        %1298 = vmatpush2.xpose.msra.mxu0 0.0
        %1299 = vmatprep.subr.mxu0 0.0
        %1300 = vmatpush2.xpose.msra.mxu0 0.0
        %1301 = vmatprep.subr.mxu0 0.0
        %1302 = vmatpush2.xpose.msra.mxu0 0.0
        %1303 = vmatprep.subr.mxu0 0.0
        %1304 = vmatpush2.xpose.msra.mxu0 0.0
        %1305 = vmatprep.subr.mxu0 0.0
        %1306 = vmatpush2.xpose.msra.mxu0 0.0
        %1307 = vmatprep.subr.mxu0 0.0
        %1308 = vmatpush2.xpose.msra.mxu0 0.0
        %1309 = vmatprep.subr.mxu0 0.0
        %1310 = vmatpush2.xpose.msra.mxu0 0.0
        %1311 = vmatprep.subr.mxu0 0.0
        %1312 = vmatpush2.xpose.msra.mxu0 0.0
        %1313 = vmatprep.subr.mxu0 0.0
        %1314 = vmatpush2.xpose.msra.mxu0 0.0
        %1315 = vmatprep.subr.mxu0 0.0
        %1316 = vmatpush2.xpose.msra.mxu0 0.0
        %1317 = vmatprep.subr.mxu0 0.0
        %1318 = vmatpush2.xpose.msra.mxu0 0.0
        %1319 = vmatprep.subr.mxu0 0.0
        %1320 = vmatpush2.xpose.msra.mxu0 0.0
        %1321 = vmatprep.subr.mxu0 0.0
        %1322 = vmatpush2.xpose.msra.mxu0 0.0
        %1323 = vmatprep.mubr.f32.mxu0 0.0
        %v1324 = vand.u32 %v952, 4294901760
        %1325 = vmatmul.mubr.f32.gmra.mxu0 %v1324
        %v1326 = vpop.f32.mrf.mxu0
        %v1327 = vadd.f32 %v1253, %v1326
        %v1328 = vpop.f32.mrf.mxu0
        %1329 = vdwg.mxu0
        %1330 = vmatprep.subr.mxu0 0.0
        %1331 = vmatpush1.xpose.msra.mxu0 0.0
        %1332 = vmatprep.subr.mxu0 0.0
        %1333 = vmatpush1.xpose.msra.mxu0 0.0
        %1334 = vmatprep.subr.mxu0 0.0
        %1335 = vmatpush1.xpose.msra.mxu0 0.0
        %1336 = vmatprep.subr.mxu0 0.0
        %1337 = vmatpush1.xpose.msra.mxu0 0.0
        %1338 = vmatprep.subr.mxu0 0.0
        %1339 = vmatpush1.xpose.msra.mxu0 0.0
        %1340 = vmatprep.subr.mxu0 0.0
        %1341 = vmatpush1.xpose.msra.mxu0 0.0
        %1342 = vmatprep.subr.mxu0 0.0
        %1343 = vmatpush1.xpose.msra.mxu0 0.0
        %1344 = vmatprep.subr.mxu0 0.0
        %1345 = vmatpush1.xpose.msra.mxu0 0.0
        %1346 = vmatprep.subr.mxu0 0.0
        %1347 = vmatpush1.xpose.msra.mxu0 0.0
        %1348 = vmatprep.subr.mxu0 0.0
        %1349 = vmatpush1.xpose.msra.mxu0 0.0
        %1350 = vmatprep.subr.mxu0 0.0
        %1351 = vmatpush1.xpose.msra.mxu0 0.0
        %1352 = vmatprep.subr.mxu0 0.0
        %1353 = vmatpush1.xpose.msra.mxu0 0.0
        %1354 = vmatprep.subr.mxu0 0.0
        %1355 = vmatpush1.xpose.msra.mxu0 0.0
        %1356 = vmatprep.subr.mxu0 0.0
        %1357 = vmatpush1.xpose.msra.mxu0 0.0
        %1358 = vmatprep.subr.mxu0 0.0
        %1359 = vmatpush1.xpose.msra.mxu0 0.0
        %1360 = vmatprep.subr.mxu0 0.0
        %v1361 = vand.u32 %v954, 4294901760
        %1362 = vmatpush1.xpose.msra.mxu0 %v1361
        %1363 = vmatprep.subr.mxu0 0.0
        %1364 = vmatpush2.xpose.msra.mxu0 0.0
        %1365 = vmatprep.subr.mxu0 0.0
        %1366 = vmatpush2.xpose.msra.mxu0 0.0
        %1367 = vmatprep.subr.mxu0 0.0
        %1368 = vmatpush2.xpose.msra.mxu0 0.0
        %1369 = vmatprep.subr.mxu0 0.0
        %1370 = vmatpush2.xpose.msra.mxu0 0.0
        %1371 = vmatprep.subr.mxu0 0.0
        %1372 = vmatpush2.xpose.msra.mxu0 0.0
        %1373 = vmatprep.subr.mxu0 0.0
        %1374 = vmatpush2.xpose.msra.mxu0 0.0
        %1375 = vmatprep.subr.mxu0 0.0
        %1376 = vmatpush2.xpose.msra.mxu0 0.0
        %1377 = vmatprep.subr.mxu0 0.0
        %1378 = vmatpush2.xpose.msra.mxu0 0.0
        %1379 = vmatprep.subr.mxu0 0.0
        %1380 = vmatpush2.xpose.msra.mxu0 0.0
        %1381 = vmatprep.subr.mxu0 0.0
        %1382 = vmatpush2.xpose.msra.mxu0 0.0
        %1383 = vmatprep.subr.mxu0 0.0
        %1384 = vmatpush2.xpose.msra.mxu0 0.0
        %1385 = vmatprep.subr.mxu0 0.0
        %1386 = vmatpush2.xpose.msra.mxu0 0.0
        %1387 = vmatprep.subr.mxu0 0.0
        %1388 = vmatpush2.xpose.msra.mxu0 0.0
        %1389 = vmatprep.subr.mxu0 0.0
        %1390 = vmatpush2.xpose.msra.mxu0 0.0
        %1391 = vmatprep.subr.mxu0 0.0
        %1392 = vmatpush2.xpose.msra.mxu0 0.0
        %1393 = vmatprep.subr.mxu0 0.0
        %1394 = vmatpush2.xpose.msra.mxu0 0.0
        %1395 = vmatprep.mubr.f32.mxu0 0.0
        %v1396 = vand.u32 %v952, 4294901760
        %1397 = vmatmul.mubr.f32.gmra.mxu0 %v1396
        %v1398 = vpop.f32.mrf.mxu0
        %v1399 = vadd.f32 %v1327, %v1398
        %v1400 = vpop.f32.mrf.mxu0
        %1401 = vdwg.mxu0
        %v1402 = vsel %vm950, %v1399, -inf
        %1403 = vmax.xlane.f32.xlu0 %v1402
        %v1404 = vpop.xlane.xlu0 %1403
        %v1405 = vsub.f32 %v1399, %v1404
        %v1406 = vmul.f32 %v1405, 1.442695
        %v1407 = vpow.pop %v1406
        %v1408 = vsel %vm950, %v1407, 0.0
        %1409 = vadd.xlane.f32.xlu0 %v1408
        %v1410 = vpop.xlane.xlu0 %1409
        %1411 = vrot.lane.b32.xlu0 %v930, 64
        %v1412 = vpop.permute.xlu0 %1411
        %v1415 = vsel %vm950, %v1407, 0
        %1417 = vmatprep.subr.mxu0 0.0
        %1418 = vmatpush1.msra.mxu0 0.0
        %1419 = vmatprep.subr.mxu0 0.0
        %1420 = vmatpush1.msra.mxu0 0.0
        %1421 = vmatprep.subr.mxu0 0.0
        %1422 = vmatpush1.msra.mxu0 0.0
        %1423 = vmatprep.subr.mxu0 0.0
        %1424 = vmatpush1.msra.mxu0 0.0
        %1425 = vmatprep.subr.mxu0 0.0
        %1426 = vmatpush1.msra.mxu0 0.0
        %1427 = vmatprep.subr.mxu0 0.0
        %1428 = vmatpush1.msra.mxu0 0.0
        %1429 = vmatprep.subr.mxu0 0.0
        %1430 = vmatpush1.msra.mxu0 0.0
        %1431 = vmatprep.subr.mxu0 0.0
        %1432 = vmatpush1.msra.mxu0 0.0
        %1433 = vmatprep.subr.mxu0 0.0
        %1434 = vmatpush1.msra.mxu0 0.0
        %1435 = vmatprep.subr.mxu0 0.0
        %1436 = vmatpush1.msra.mxu0 0.0
        %1437 = vmatprep.subr.mxu0 0.0
        %1438 = vmatpush1.msra.mxu0 0.0
        %1439 = vmatprep.subr.mxu0 0.0
        %1440 = vmatpush1.msra.mxu0 0.0
        %1441 = vmatprep.subr.mxu0 0.0
        %1442 = vmatpush1.msra.mxu0 0.0
        %1443 = vmatprep.subr.mxu0 0.0
        %1444 = vmatpush1.msra.mxu0 0.0
        %1445 = vmatprep.subr.mxu0 0.0
        %1446 = vmatpush1.msra.mxu0 0.0
        %1447 = vmatprep.subr.mxu0 0.0
        %v1448 = vand.u32 %v1412, 4294901760
        %1449 = vmatpush1.msra.mxu0 %v1448
        %1450 = vmatprep.subr.mxu0 0.0
        %1451 = vmatpush2.msra.mxu0 0.0
        %1452 = vmatprep.subr.mxu0 0.0
        %1453 = vmatpush2.msra.mxu0 0.0
        %1454 = vmatprep.subr.mxu0 0.0
        %1455 = vmatpush2.msra.mxu0 0.0
        %1456 = vmatprep.subr.mxu0 0.0
        %1457 = vmatpush2.msra.mxu0 0.0
        %1458 = vmatprep.subr.mxu0 0.0
        %1459 = vmatpush2.msra.mxu0 0.0
        %1460 = vmatprep.subr.mxu0 0.0
        %1461 = vmatpush2.msra.mxu0 0.0
        %1462 = vmatprep.subr.mxu0 0.0
        %1463 = vmatpush2.msra.mxu0 0.0
        %1464 = vmatprep.subr.mxu0 0.0
        %1465 = vmatpush2.msra.mxu0 0.0
        %1466 = vmatprep.subr.mxu0 0.0
        %1467 = vmatpush2.msra.mxu0 0.0
        %1468 = vmatprep.subr.mxu0 0.0
        %1469 = vmatpush2.msra.mxu0 0.0
        %1470 = vmatprep.subr.mxu0 0.0
        %1471 = vmatpush2.msra.mxu0 0.0
        %1472 = vmatprep.subr.mxu0 0.0
        %1473 = vmatpush2.msra.mxu0 0.0
        %1474 = vmatprep.subr.mxu0 0.0
        %1475 = vmatpush2.msra.mxu0 0.0
        %1476 = vmatprep.subr.mxu0 0.0
        %1477 = vmatpush2.msra.mxu0 0.0
        %1478 = vmatprep.subr.mxu0 0.0
        %1479 = vmatpush2.msra.mxu0 0.0
        %1480 = vmatprep.subr.mxu0 0.0
        %1481 = vmatpush2.msra.mxu0 0.0
        %1482 = vmatprep.mubr.f32.mxu0 0.0
        %v1483 = vand.u32 %v1415, 4294901760
        %v1484 = vsub.f32 %v1415, %v1483
        %v1485 = vand.u32 %v1484, 4294901760
        %v1486 = vsub.f32 %v1484, %v1485
        %v1487 = vand.u32 %v1486, 4294901760
        %1488 = vmatmul.mubr.f32.gmra.mxu0 %v1487
        %v1489 = vpop.f32.mrf.mxu0
        %v1490 = vadd.f32 0.0, %v1489
        %v1491 = vpop.f32.mrf.mxu0
        %1492 = vdwg.mxu0
        %1493 = vmatprep.subr.mxu0 0.0
        %1494 = vmatpush1.msra.mxu0 0.0
        %1495 = vmatprep.subr.mxu0 0.0
        %1496 = vmatpush1.msra.mxu0 0.0
        %1497 = vmatprep.subr.mxu0 0.0
        %1498 = vmatpush1.msra.mxu0 0.0
        %1499 = vmatprep.subr.mxu0 0.0
        %1500 = vmatpush1.msra.mxu0 0.0
        %1501 = vmatprep.subr.mxu0 0.0
        %1502 = vmatpush1.msra.mxu0 0.0
        %1503 = vmatprep.subr.mxu0 0.0
        %1504 = vmatpush1.msra.mxu0 0.0
        %1505 = vmatprep.subr.mxu0 0.0
        %1506 = vmatpush1.msra.mxu0 0.0
        %1507 = vmatprep.subr.mxu0 0.0
        %1508 = vmatpush1.msra.mxu0 0.0
        %1509 = vmatprep.subr.mxu0 0.0
        %1510 = vmatpush1.msra.mxu0 0.0
        %1511 = vmatprep.subr.mxu0 0.0
        %1512 = vmatpush1.msra.mxu0 0.0
        %1513 = vmatprep.subr.mxu0 0.0
        %1514 = vmatpush1.msra.mxu0 0.0
        %1515 = vmatprep.subr.mxu0 0.0
        %1516 = vmatpush1.msra.mxu0 0.0
        %1517 = vmatprep.subr.mxu0 0.0
        %1518 = vmatpush1.msra.mxu0 0.0
        %1519 = vmatprep.subr.mxu0 0.0
        %1520 = vmatpush1.msra.mxu0 0.0
        %1521 = vmatprep.subr.mxu0 0.0
        %1522 = vmatpush1.msra.mxu0 0.0
        %1523 = vmatprep.subr.mxu0 0.0
        %v1524 = vand.u32 %v1412, 4294901760
        %v1525 = vsub.f32 %v1412, %v1524
        %v1526 = vand.u32 %v1525, 4294901760
        %v1527 = vsub.f32 %v1525, %v1526
        %v1528 = vand.u32 %v1527, 4294901760
        %1529 = vmatpush1.msra.mxu0 %v1528
        %1530 = vmatprep.subr.mxu0 0.0
        %1531 = vmatpush2.msra.mxu0 0.0
        %1532 = vmatprep.subr.mxu0 0.0
        %1533 = vmatpush2.msra.mxu0 0.0
        %1534 = vmatprep.subr.mxu0 0.0
        %1535 = vmatpush2.msra.mxu0 0.0
        %1536 = vmatprep.subr.mxu0 0.0
        %1537 = vmatpush2.msra.mxu0 0.0
        %1538 = vmatprep.subr.mxu0 0.0
        %1539 = vmatpush2.msra.mxu0 0.0
        %1540 = vmatprep.subr.mxu0 0.0
        %1541 = vmatpush2.msra.mxu0 0.0
        %1542 = vmatprep.subr.mxu0 0.0
        %1543 = vmatpush2.msra.mxu0 0.0
        %1544 = vmatprep.subr.mxu0 0.0
        %1545 = vmatpush2.msra.mxu0 0.0
        %1546 = vmatprep.subr.mxu0 0.0
        %1547 = vmatpush2.msra.mxu0 0.0
        %1548 = vmatprep.subr.mxu0 0.0
        %1549 = vmatpush2.msra.mxu0 0.0
        %1550 = vmatprep.subr.mxu0 0.0
        %1551 = vmatpush2.msra.mxu0 0.0
        %1552 = vmatprep.subr.mxu0 0.0
        %1553 = vmatpush2.msra.mxu0 0.0
        %1554 = vmatprep.subr.mxu0 0.0
        %1555 = vmatpush2.msra.mxu0 0.0
        %1556 = vmatprep.subr.mxu0 0.0
        %1557 = vmatpush2.msra.mxu0 0.0
        %1558 = vmatprep.subr.mxu0 0.0
        %1559 = vmatpush2.msra.mxu0 0.0
        %1560 = vmatprep.subr.mxu0 0.0
        %1561 = vmatpush2.msra.mxu0 0.0
        %1562 = vmatprep.mubr.f32.mxu0 0.0
        %v1563 = vand.u32 %v1415, 4294901760
        %1564 = vmatmul.mubr.f32.gmra.mxu0 %v1563
        %v1565 = vpop.f32.mrf.mxu0
        %v1566 = vadd.f32 %v1490, %v1565
        %v1567 = vpop.f32.mrf.mxu0
        %1568 = vdwg.mxu0
        %1569 = vmatprep.subr.mxu0 0.0
        %1570 = vmatpush1.msra.mxu0 0.0
        %1571 = vmatprep.subr.mxu0 0.0
        %1572 = vmatpush1.msra.mxu0 0.0
        %1573 = vmatprep.subr.mxu0 0.0
        %1574 = vmatpush1.msra.mxu0 0.0
        %1575 = vmatprep.subr.mxu0 0.0
        %1576 = vmatpush1.msra.mxu0 0.0
        %1577 = vmatprep.subr.mxu0 0.0
        %1578 = vmatpush1.msra.mxu0 0.0
        %1579 = vmatprep.subr.mxu0 0.0
        %1580 = vmatpush1.msra.mxu0 0.0
        %1581 = vmatprep.subr.mxu0 0.0
        %1582 = vmatpush1.msra.mxu0 0.0
        %1583 = vmatprep.subr.mxu0 0.0
        %1584 = vmatpush1.msra.mxu0 0.0
        %1585 = vmatprep.subr.mxu0 0.0
        %1586 = vmatpush1.msra.mxu0 0.0
        %1587 = vmatprep.subr.mxu0 0.0
        %1588 = vmatpush1.msra.mxu0 0.0
        %1589 = vmatprep.subr.mxu0 0.0
        %1590 = vmatpush1.msra.mxu0 0.0
        %1591 = vmatprep.subr.mxu0 0.0
        %1592 = vmatpush1.msra.mxu0 0.0
        %1593 = vmatprep.subr.mxu0 0.0
        %1594 = vmatpush1.msra.mxu0 0.0
        %1595 = vmatprep.subr.mxu0 0.0
        %1596 = vmatpush1.msra.mxu0 0.0
        %1597 = vmatprep.subr.mxu0 0.0
        %1598 = vmatpush1.msra.mxu0 0.0
        %1599 = vmatprep.subr.mxu0 0.0
        %v1600 = vand.u32 %v1412, 4294901760
        %v1601 = vsub.f32 %v1412, %v1600
        %1602 = vmatpush1.msra.mxu0 %v1601
        %1603 = vmatprep.subr.mxu0 0.0
        %1604 = vmatpush2.msra.mxu0 0.0
        %1605 = vmatprep.subr.mxu0 0.0
        %1606 = vmatpush2.msra.mxu0 0.0
        %1607 = vmatprep.subr.mxu0 0.0
        %1608 = vmatpush2.msra.mxu0 0.0
        %1609 = vmatprep.subr.mxu0 0.0
        %1610 = vmatpush2.msra.mxu0 0.0
        %1611 = vmatprep.subr.mxu0 0.0
        %1612 = vmatpush2.msra.mxu0 0.0
        %1613 = vmatprep.subr.mxu0 0.0
        %1614 = vmatpush2.msra.mxu0 0.0
        %1615 = vmatprep.subr.mxu0 0.0
        %1616 = vmatpush2.msra.mxu0 0.0
        %1617 = vmatprep.subr.mxu0 0.0
        %1618 = vmatpush2.msra.mxu0 0.0
        %1619 = vmatprep.subr.mxu0 0.0
        %1620 = vmatpush2.msra.mxu0 0.0
        %1621 = vmatprep.subr.mxu0 0.0
        %1622 = vmatpush2.msra.mxu0 0.0
        %1623 = vmatprep.subr.mxu0 0.0
        %1624 = vmatpush2.msra.mxu0 0.0
        %1625 = vmatprep.subr.mxu0 0.0
        %1626 = vmatpush2.msra.mxu0 0.0
        %1627 = vmatprep.subr.mxu0 0.0
        %1628 = vmatpush2.msra.mxu0 0.0
        %1629 = vmatprep.subr.mxu0 0.0
        %1630 = vmatpush2.msra.mxu0 0.0
        %1631 = vmatprep.subr.mxu0 0.0
        %1632 = vmatpush2.msra.mxu0 0.0
        %1633 = vmatprep.subr.mxu0 0.0
        %1634 = vmatpush2.msra.mxu0 0.0
        %1635 = vmatprep.mubr.f32.mxu0 0.0
        %v1636 = vand.u32 %v1415, 4294901760
        %v1637 = vsub.f32 %v1415, %v1636
        %1638 = vmatmul.mubr.f32.gmra.mxu0 %v1637
        %v1639 = vpop.f32.mrf.mxu0
        %v1640 = vadd.f32 %v1566, %v1639
        %v1641 = vpop.f32.mrf.mxu0
        %1642 = vdwg.mxu0
        %1643 = vmatprep.subr.mxu0 0.0
        %1644 = vmatpush1.msra.mxu0 0.0
        %1645 = vmatprep.subr.mxu0 0.0
        %1646 = vmatpush1.msra.mxu0 0.0
        %1647 = vmatprep.subr.mxu0 0.0
        %1648 = vmatpush1.msra.mxu0 0.0
        %1649 = vmatprep.subr.mxu0 0.0
        %1650 = vmatpush1.msra.mxu0 0.0
        %1651 = vmatprep.subr.mxu0 0.0
        %1652 = vmatpush1.msra.mxu0 0.0
        %1653 = vmatprep.subr.mxu0 0.0
        %1654 = vmatpush1.msra.mxu0 0.0
        %1655 = vmatprep.subr.mxu0 0.0
        %1656 = vmatpush1.msra.mxu0 0.0
        %1657 = vmatprep.subr.mxu0 0.0
        %1658 = vmatpush1.msra.mxu0 0.0
        %1659 = vmatprep.subr.mxu0 0.0
        %1660 = vmatpush1.msra.mxu0 0.0
        %1661 = vmatprep.subr.mxu0 0.0
        %1662 = vmatpush1.msra.mxu0 0.0
        %1663 = vmatprep.subr.mxu0 0.0
        %1664 = vmatpush1.msra.mxu0 0.0
        %1665 = vmatprep.subr.mxu0 0.0
        %1666 = vmatpush1.msra.mxu0 0.0
        %1667 = vmatprep.subr.mxu0 0.0
        %1668 = vmatpush1.msra.mxu0 0.0
        %1669 = vmatprep.subr.mxu0 0.0
        %1670 = vmatpush1.msra.mxu0 0.0
        %1671 = vmatprep.subr.mxu0 0.0
        %1672 = vmatpush1.msra.mxu0 0.0
        %1673 = vmatprep.subr.mxu0 0.0
        %v1674 = vand.u32 %v1412, 4294901760
        %1675 = vmatpush1.msra.mxu0 %v1674
        %1676 = vmatprep.subr.mxu0 0.0
        %1677 = vmatpush2.msra.mxu0 0.0
        %1678 = vmatprep.subr.mxu0 0.0
        %1679 = vmatpush2.msra.mxu0 0.0
        %1680 = vmatprep.subr.mxu0 0.0
        %1681 = vmatpush2.msra.mxu0 0.0
        %1682 = vmatprep.subr.mxu0 0.0
        %1683 = vmatpush2.msra.mxu0 0.0
        %1684 = vmatprep.subr.mxu0 0.0
        %1685 = vmatpush2.msra.mxu0 0.0
        %1686 = vmatprep.subr.mxu0 0.0
        %1687 = vmatpush2.msra.mxu0 0.0
        %1688 = vmatprep.subr.mxu0 0.0
        %1689 = vmatpush2.msra.mxu0 0.0
        %1690 = vmatprep.subr.mxu0 0.0
        %1691 = vmatpush2.msra.mxu0 0.0
        %1692 = vmatprep.subr.mxu0 0.0
        %1693 = vmatpush2.msra.mxu0 0.0
        %1694 = vmatprep.subr.mxu0 0.0
        %1695 = vmatpush2.msra.mxu0 0.0
        %1696 = vmatprep.subr.mxu0 0.0
        %1697 = vmatpush2.msra.mxu0 0.0
        %1698 = vmatprep.subr.mxu0 0.0
        %1699 = vmatpush2.msra.mxu0 0.0
        %1700 = vmatprep.subr.mxu0 0.0
        %1701 = vmatpush2.msra.mxu0 0.0
        %1702 = vmatprep.subr.mxu0 0.0
        %1703 = vmatpush2.msra.mxu0 0.0
        %1704 = vmatprep.subr.mxu0 0.0
        %1705 = vmatpush2.msra.mxu0 0.0
        %1706 = vmatprep.subr.mxu0 0.0
        %1707 = vmatpush2.msra.mxu0 0.0
        %1708 = vmatprep.mubr.f32.mxu0 0.0
        %v1709 = vand.u32 %v1415, 4294901760
        %v1710 = vsub.f32 %v1415, %v1709
        %v1711 = vand.u32 %v1710, 4294901760
        %1712 = vmatmul.mubr.f32.gmra.mxu0 %v1711
        %v1713 = vpop.f32.mrf.mxu0
        %v1714 = vadd.f32 %v1640, %v1713
        %v1715 = vpop.f32.mrf.mxu0
        %1716 = vdwg.mxu0
        %1717 = vmatprep.subr.mxu0 0.0
        %1718 = vmatpush1.msra.mxu0 0.0
        %1719 = vmatprep.subr.mxu0 0.0
        %1720 = vmatpush1.msra.mxu0 0.0
        %1721 = vmatprep.subr.mxu0 0.0
        %1722 = vmatpush1.msra.mxu0 0.0
        %1723 = vmatprep.subr.mxu0 0.0
        %1724 = vmatpush1.msra.mxu0 0.0
        %1725 = vmatprep.subr.mxu0 0.0
        %1726 = vmatpush1.msra.mxu0 0.0
        %1727 = vmatprep.subr.mxu0 0.0
        %1728 = vmatpush1.msra.mxu0 0.0
        %1729 = vmatprep.subr.mxu0 0.0
        %1730 = vmatpush1.msra.mxu0 0.0
        %1731 = vmatprep.subr.mxu0 0.0
        %1732 = vmatpush1.msra.mxu0 0.0
        %1733 = vmatprep.subr.mxu0 0.0
        %1734 = vmatpush1.msra.mxu0 0.0
        %1735 = vmatprep.subr.mxu0 0.0
        %1736 = vmatpush1.msra.mxu0 0.0
        %1737 = vmatprep.subr.mxu0 0.0
        %1738 = vmatpush1.msra.mxu0 0.0
        %1739 = vmatprep.subr.mxu0 0.0
        %1740 = vmatpush1.msra.mxu0 0.0
        %1741 = vmatprep.subr.mxu0 0.0
        %1742 = vmatpush1.msra.mxu0 0.0
        %1743 = vmatprep.subr.mxu0 0.0
        %1744 = vmatpush1.msra.mxu0 0.0
        %1745 = vmatprep.subr.mxu0 0.0
        %1746 = vmatpush1.msra.mxu0 0.0
        %1747 = vmatprep.subr.mxu0 0.0
        %v1748 = vand.u32 %v1412, 4294901760
        %v1749 = vsub.f32 %v1412, %v1748
        %v1750 = vand.u32 %v1749, 4294901760
        %1751 = vmatpush1.msra.mxu0 %v1750
        %1752 = vmatprep.subr.mxu0 0.0
        %1753 = vmatpush2.msra.mxu0 0.0
        %1754 = vmatprep.subr.mxu0 0.0
        %1755 = vmatpush2.msra.mxu0 0.0
        %1756 = vmatprep.subr.mxu0 0.0
        %1757 = vmatpush2.msra.mxu0 0.0
        %1758 = vmatprep.subr.mxu0 0.0
        %1759 = vmatpush2.msra.mxu0 0.0
        %1760 = vmatprep.subr.mxu0 0.0
        %1761 = vmatpush2.msra.mxu0 0.0
        %1762 = vmatprep.subr.mxu0 0.0
        %1763 = vmatpush2.msra.mxu0 0.0
        %1764 = vmatprep.subr.mxu0 0.0
        %1765 = vmatpush2.msra.mxu0 0.0
        %1766 = vmatprep.subr.mxu0 0.0
        %1767 = vmatpush2.msra.mxu0 0.0
        %1768 = vmatprep.subr.mxu0 0.0
        %1769 = vmatpush2.msra.mxu0 0.0
        %1770 = vmatprep.subr.mxu0 0.0
        %1771 = vmatpush2.msra.mxu0 0.0
        %1772 = vmatprep.subr.mxu0 0.0
        %1773 = vmatpush2.msra.mxu0 0.0
        %1774 = vmatprep.subr.mxu0 0.0
        %1775 = vmatpush2.msra.mxu0 0.0
        %1776 = vmatprep.subr.mxu0 0.0
        %1777 = vmatpush2.msra.mxu0 0.0
        %1778 = vmatprep.subr.mxu0 0.0
        %1779 = vmatpush2.msra.mxu0 0.0
        %1780 = vmatprep.subr.mxu0 0.0
        %1781 = vmatpush2.msra.mxu0 0.0
        %1782 = vmatprep.subr.mxu0 0.0
        %1783 = vmatpush2.msra.mxu0 0.0
        %1784 = vmatprep.mubr.f32.mxu0 0.0
        %v1785 = vand.u32 %v1415, 4294901760
        %1786 = vmatmul.mubr.f32.gmra.mxu0 %v1785
        %v1787 = vpop.f32.mrf.mxu0
        %v1788 = vadd.f32 %v1714, %v1787
        %v1789 = vpop.f32.mrf.mxu0
        %1790 = vdwg.mxu0
        %1791 = vmatprep.subr.mxu0 0.0
        %1792 = vmatpush1.msra.mxu0 0.0
        %1793 = vmatprep.subr.mxu0 0.0
        %1794 = vmatpush1.msra.mxu0 0.0
        %1795 = vmatprep.subr.mxu0 0.0
        %1796 = vmatpush1.msra.mxu0 0.0
        %1797 = vmatprep.subr.mxu0 0.0
        %1798 = vmatpush1.msra.mxu0 0.0
        %1799 = vmatprep.subr.mxu0 0.0
        %1800 = vmatpush1.msra.mxu0 0.0
        %1801 = vmatprep.subr.mxu0 0.0
        %1802 = vmatpush1.msra.mxu0 0.0
        %1803 = vmatprep.subr.mxu0 0.0
        %1804 = vmatpush1.msra.mxu0 0.0
        %1805 = vmatprep.subr.mxu0 0.0
        %1806 = vmatpush1.msra.mxu0 0.0
        %1807 = vmatprep.subr.mxu0 0.0
        %1808 = vmatpush1.msra.mxu0 0.0
        %1809 = vmatprep.subr.mxu0 0.0
        %1810 = vmatpush1.msra.mxu0 0.0
        %1811 = vmatprep.subr.mxu0 0.0
        %1812 = vmatpush1.msra.mxu0 0.0
        %1813 = vmatprep.subr.mxu0 0.0
        %1814 = vmatpush1.msra.mxu0 0.0
        %1815 = vmatprep.subr.mxu0 0.0
        %1816 = vmatpush1.msra.mxu0 0.0
        %1817 = vmatprep.subr.mxu0 0.0
        %1818 = vmatpush1.msra.mxu0 0.0
        %1819 = vmatprep.subr.mxu0 0.0
        %1820 = vmatpush1.msra.mxu0 0.0
        %1821 = vmatprep.subr.mxu0 0.0
        %v1822 = vand.u32 %v1412, 4294901760
        %1823 = vmatpush1.msra.mxu0 %v1822
        %1824 = vmatprep.subr.mxu0 0.0
        %1825 = vmatpush2.msra.mxu0 0.0
        %1826 = vmatprep.subr.mxu0 0.0
        %1827 = vmatpush2.msra.mxu0 0.0
        %1828 = vmatprep.subr.mxu0 0.0
        %1829 = vmatpush2.msra.mxu0 0.0
        %1830 = vmatprep.subr.mxu0 0.0
        %1831 = vmatpush2.msra.mxu0 0.0
        %1832 = vmatprep.subr.mxu0 0.0
        %1833 = vmatpush2.msra.mxu0 0.0
        %1834 = vmatprep.subr.mxu0 0.0
        %1835 = vmatpush2.msra.mxu0 0.0
        %1836 = vmatprep.subr.mxu0 0.0
        %1837 = vmatpush2.msra.mxu0 0.0
        %1838 = vmatprep.subr.mxu0 0.0
        %1839 = vmatpush2.msra.mxu0 0.0
        %1840 = vmatprep.subr.mxu0 0.0
        %1841 = vmatpush2.msra.mxu0 0.0
        %1842 = vmatprep.subr.mxu0 0.0
        %1843 = vmatpush2.msra.mxu0 0.0
        %1844 = vmatprep.subr.mxu0 0.0
        %1845 = vmatpush2.msra.mxu0 0.0
        %1846 = vmatprep.subr.mxu0 0.0
        %1847 = vmatpush2.msra.mxu0 0.0
        %1848 = vmatprep.subr.mxu0 0.0
        %1849 = vmatpush2.msra.mxu0 0.0
        %1850 = vmatprep.subr.mxu0 0.0
        %1851 = vmatpush2.msra.mxu0 0.0
        %1852 = vmatprep.subr.mxu0 0.0
        %1853 = vmatpush2.msra.mxu0 0.0
        %1854 = vmatprep.subr.mxu0 0.0
        %1855 = vmatpush2.msra.mxu0 0.0
        %1856 = vmatprep.mubr.f32.mxu0 0.0
        %v1857 = vand.u32 %v1415, 4294901760
        %1858 = vmatmul.mubr.f32.gmra.mxu0 %v1857
        %v1859 = vpop.f32.mrf.mxu0
        %v1860 = vadd.f32 %v1788, %v1859
        %v1861 = vpop.f32.mrf.mxu0
        %1862 = vdwg.mxu0
        %v1863 = vrcp.pop %v1410
        %v1864 = vmul.f32 %v1860, %v1863
        %1865 = vrot.lane.b32.xlu0 %v933, 120
        %v1866 = vpop.permute.xlu0 %1865
        %1867 = vrot.lane.b32.xlu0 %v930, 88
        %v1868 = vpop.permute.xlu0 %1867
        %v1869 = vsel %vm950, %v1866, 0
        %v1871 = vsel %vm950, %v1868, 0
        %1873 = vmatprep.subr.mxu0 0.0
        %1874 = vmatpush1.xpose.msra.mxu0 0.0
        %1875 = vmatprep.subr.mxu0 0.0
        %1876 = vmatpush1.xpose.msra.mxu0 0.0
        %1877 = vmatprep.subr.mxu0 0.0
        %1878 = vmatpush1.xpose.msra.mxu0 0.0
        %1879 = vmatprep.subr.mxu0 0.0
        %1880 = vmatpush1.xpose.msra.mxu0 0.0
        %1881 = vmatprep.subr.mxu0 0.0
        %1882 = vmatpush1.xpose.msra.mxu0 0.0
        %1883 = vmatprep.subr.mxu0 0.0
        %1884 = vmatpush1.xpose.msra.mxu0 0.0
        %1885 = vmatprep.subr.mxu0 0.0
        %1886 = vmatpush1.xpose.msra.mxu0 0.0
        %1887 = vmatprep.subr.mxu0 0.0
        %1888 = vmatpush1.xpose.msra.mxu0 0.0
        %1889 = vmatprep.subr.mxu0 0.0
        %1890 = vmatpush1.xpose.msra.mxu0 0.0
        %1891 = vmatprep.subr.mxu0 0.0
        %1892 = vmatpush1.xpose.msra.mxu0 0.0
        %1893 = vmatprep.subr.mxu0 0.0
        %1894 = vmatpush1.xpose.msra.mxu0 0.0
        %1895 = vmatprep.subr.mxu0 0.0
        %1896 = vmatpush1.xpose.msra.mxu0 0.0
        %1897 = vmatprep.subr.mxu0 0.0
        %1898 = vmatpush1.xpose.msra.mxu0 0.0
        %1899 = vmatprep.subr.mxu0 0.0
        %1900 = vmatpush1.xpose.msra.mxu0 0.0
        %1901 = vmatprep.subr.mxu0 0.0
        %1902 = vmatpush1.xpose.msra.mxu0 0.0
        %1903 = vmatprep.subr.mxu0 0.0
        %v1904 = vand.u32 %v1871, 4294901760
        %1905 = vmatpush1.xpose.msra.mxu0 %v1904
        %1906 = vmatprep.subr.mxu0 0.0
        %1907 = vmatpush2.xpose.msra.mxu0 0.0
        %1908 = vmatprep.subr.mxu0 0.0
        %1909 = vmatpush2.xpose.msra.mxu0 0.0
        %1910 = vmatprep.subr.mxu0 0.0
        %1911 = vmatpush2.xpose.msra.mxu0 0.0
        %1912 = vmatprep.subr.mxu0 0.0
        %1913 = vmatpush2.xpose.msra.mxu0 0.0
        %1914 = vmatprep.subr.mxu0 0.0
        %1915 = vmatpush2.xpose.msra.mxu0 0.0
        %1916 = vmatprep.subr.mxu0 0.0
        %1917 = vmatpush2.xpose.msra.mxu0 0.0
        %1918 = vmatprep.subr.mxu0 0.0
        %1919 = vmatpush2.xpose.msra.mxu0 0.0
        %1920 = vmatprep.subr.mxu0 0.0
        %1921 = vmatpush2.xpose.msra.mxu0 0.0
        %1922 = vmatprep.subr.mxu0 0.0
        %1923 = vmatpush2.xpose.msra.mxu0 0.0
        %1924 = vmatprep.subr.mxu0 0.0
        %1925 = vmatpush2.xpose.msra.mxu0 0.0
        %1926 = vmatprep.subr.mxu0 0.0
        %1927 = vmatpush2.xpose.msra.mxu0 0.0
        %1928 = vmatprep.subr.mxu0 0.0
        %1929 = vmatpush2.xpose.msra.mxu0 0.0
        %1930 = vmatprep.subr.mxu0 0.0
        %1931 = vmatpush2.xpose.msra.mxu0 0.0
        %1932 = vmatprep.subr.mxu0 0.0
        %1933 = vmatpush2.xpose.msra.mxu0 0.0
        %1934 = vmatprep.subr.mxu0 0.0
        %1935 = vmatpush2.xpose.msra.mxu0 0.0
        %1936 = vmatprep.subr.mxu0 0.0
        %1937 = vmatpush2.xpose.msra.mxu0 0.0
        %1938 = vmatprep.mubr.f32.mxu0 0.0
        %v1939 = vand.u32 %v1869, 4294901760
        %v1940 = vsub.f32 %v1869, %v1939
        %v1941 = vand.u32 %v1940, 4294901760
        %v1942 = vsub.f32 %v1940, %v1941
        %v1943 = vand.u32 %v1942, 4294901760
        %1944 = vmatmul.mubr.f32.gmra.mxu0 %v1943
        %v1945 = vpop.f32.mrf.mxu0
        %v1946 = vadd.f32 %v946, %v1945
        %v1947 = vpop.f32.mrf.mxu0
        %1948 = vdwg.mxu0
        %1949 = vmatprep.subr.mxu0 0.0
        %1950 = vmatpush1.xpose.msra.mxu0 0.0
        %1951 = vmatprep.subr.mxu0 0.0
        %1952 = vmatpush1.xpose.msra.mxu0 0.0
        %1953 = vmatprep.subr.mxu0 0.0
        %1954 = vmatpush1.xpose.msra.mxu0 0.0
        %1955 = vmatprep.subr.mxu0 0.0
        %1956 = vmatpush1.xpose.msra.mxu0 0.0
        %1957 = vmatprep.subr.mxu0 0.0
        %1958 = vmatpush1.xpose.msra.mxu0 0.0
        %1959 = vmatprep.subr.mxu0 0.0
        %1960 = vmatpush1.xpose.msra.mxu0 0.0
        %1961 = vmatprep.subr.mxu0 0.0
        %1962 = vmatpush1.xpose.msra.mxu0 0.0
        %1963 = vmatprep.subr.mxu0 0.0
        %1964 = vmatpush1.xpose.msra.mxu0 0.0
        %1965 = vmatprep.subr.mxu0 0.0
        %1966 = vmatpush1.xpose.msra.mxu0 0.0
        %1967 = vmatprep.subr.mxu0 0.0
        %1968 = vmatpush1.xpose.msra.mxu0 0.0
        %1969 = vmatprep.subr.mxu0 0.0
        %1970 = vmatpush1.xpose.msra.mxu0 0.0
        %1971 = vmatprep.subr.mxu0 0.0
        %1972 = vmatpush1.xpose.msra.mxu0 0.0
        %1973 = vmatprep.subr.mxu0 0.0
        %1974 = vmatpush1.xpose.msra.mxu0 0.0
        %1975 = vmatprep.subr.mxu0 0.0
        %1976 = vmatpush1.xpose.msra.mxu0 0.0
        %1977 = vmatprep.subr.mxu0 0.0
        %1978 = vmatpush1.xpose.msra.mxu0 0.0
        %1979 = vmatprep.subr.mxu0 0.0
        %v1980 = vand.u32 %v1871, 4294901760
        %v1981 = vsub.f32 %v1871, %v1980
        %v1982 = vand.u32 %v1981, 4294901760
        %v1983 = vsub.f32 %v1981, %v1982
        %v1984 = vand.u32 %v1983, 4294901760
        %1985 = vmatpush1.xpose.msra.mxu0 %v1984
        %1986 = vmatprep.subr.mxu0 0.0
        %1987 = vmatpush2.xpose.msra.mxu0 0.0
        %1988 = vmatprep.subr.mxu0 0.0
        %1989 = vmatpush2.xpose.msra.mxu0 0.0
        %1990 = vmatprep.subr.mxu0 0.0
        %1991 = vmatpush2.xpose.msra.mxu0 0.0
        %1992 = vmatprep.subr.mxu0 0.0
        %1993 = vmatpush2.xpose.msra.mxu0 0.0
        %1994 = vmatprep.subr.mxu0 0.0
        %1995 = vmatpush2.xpose.msra.mxu0 0.0
        %1996 = vmatprep.subr.mxu0 0.0
        %1997 = vmatpush2.xpose.msra.mxu0 0.0
        %1998 = vmatprep.subr.mxu0 0.0
        %1999 = vmatpush2.xpose.msra.mxu0 0.0
        %2000 = vmatprep.subr.mxu0 0.0
        %2001 = vmatpush2.xpose.msra.mxu0 0.0
        %2002 = vmatprep.subr.mxu0 0.0
        %2003 = vmatpush2.xpose.msra.mxu0 0.0
        %2004 = vmatprep.subr.mxu0 0.0
        %2005 = vmatpush2.xpose.msra.mxu0 0.0
        %2006 = vmatprep.subr.mxu0 0.0
        %2007 = vmatpush2.xpose.msra.mxu0 0.0
        %2008 = vmatprep.subr.mxu0 0.0
        %2009 = vmatpush2.xpose.msra.mxu0 0.0
        %2010 = vmatprep.subr.mxu0 0.0
        %2011 = vmatpush2.xpose.msra.mxu0 0.0
        %2012 = vmatprep.subr.mxu0 0.0
        %2013 = vmatpush2.xpose.msra.mxu0 0.0
        %2014 = vmatprep.subr.mxu0 0.0
        %2015 = vmatpush2.xpose.msra.mxu0 0.0
        %2016 = vmatprep.subr.mxu0 0.0
        %2017 = vmatpush2.xpose.msra.mxu0 0.0
        %2018 = vmatprep.mubr.f32.mxu0 0.0
        %v2019 = vand.u32 %v1869, 4294901760
        %2020 = vmatmul.mubr.f32.gmra.mxu0 %v2019
        %v2021 = vpop.f32.mrf.mxu0
        %v2022 = vadd.f32 %v1946, %v2021
        %v2023 = vpop.f32.mrf.mxu0
        %2024 = vdwg.mxu0
        %2025 = vmatprep.subr.mxu0 0.0
        %2026 = vmatpush1.xpose.msra.mxu0 0.0
        %2027 = vmatprep.subr.mxu0 0.0
        %2028 = vmatpush1.xpose.msra.mxu0 0.0
        %2029 = vmatprep.subr.mxu0 0.0
        %2030 = vmatpush1.xpose.msra.mxu0 0.0
        %2031 = vmatprep.subr.mxu0 0.0
        %2032 = vmatpush1.xpose.msra.mxu0 0.0
        %2033 = vmatprep.subr.mxu0 0.0
        %2034 = vmatpush1.xpose.msra.mxu0 0.0
        %2035 = vmatprep.subr.mxu0 0.0
        %2036 = vmatpush1.xpose.msra.mxu0 0.0
        %2037 = vmatprep.subr.mxu0 0.0
        %2038 = vmatpush1.xpose.msra.mxu0 0.0
        %2039 = vmatprep.subr.mxu0 0.0
        %2040 = vmatpush1.xpose.msra.mxu0 0.0
        %2041 = vmatprep.subr.mxu0 0.0
        %2042 = vmatpush1.xpose.msra.mxu0 0.0
        %2043 = vmatprep.subr.mxu0 0.0
        %2044 = vmatpush1.xpose.msra.mxu0 0.0
        %2045 = vmatprep.subr.mxu0 0.0
        %2046 = vmatpush1.xpose.msra.mxu0 0.0
        %2047 = vmatprep.subr.mxu0 0.0
        %2048 = vmatpush1.xpose.msra.mxu0 0.0
        %2049 = vmatprep.subr.mxu0 0.0
        %2050 = vmatpush1.xpose.msra.mxu0 0.0
        %2051 = vmatprep.subr.mxu0 0.0
        %2052 = vmatpush1.xpose.msra.mxu0 0.0
        %2053 = vmatprep.subr.mxu0 0.0
        %2054 = vmatpush1.xpose.msra.mxu0 0.0
        %2055 = vmatprep.subr.mxu0 0.0
        %v2056 = vand.u32 %v1871, 4294901760
        %v2057 = vsub.f32 %v1871, %v2056
        %2058 = vmatpush1.xpose.msra.mxu0 %v2057
        %2059 = vmatprep.subr.mxu0 0.0
        %2060 = vmatpush2.xpose.msra.mxu0 0.0
        %2061 = vmatprep.subr.mxu0 0.0
        %2062 = vmatpush2.xpose.msra.mxu0 0.0
        %2063 = vmatprep.subr.mxu0 0.0
        %2064 = vmatpush2.xpose.msra.mxu0 0.0
        %2065 = vmatprep.subr.mxu0 0.0
        %2066 = vmatpush2.xpose.msra.mxu0 0.0
        %2067 = vmatprep.subr.mxu0 0.0
        %2068 = vmatpush2.xpose.msra.mxu0 0.0
        %2069 = vmatprep.subr.mxu0 0.0
        %2070 = vmatpush2.xpose.msra.mxu0 0.0
        %2071 = vmatprep.subr.mxu0 0.0
        %2072 = vmatpush2.xpose.msra.mxu0 0.0
        %2073 = vmatprep.subr.mxu0 0.0
        %2074 = vmatpush2.xpose.msra.mxu0 0.0
        %2075 = vmatprep.subr.mxu0 0.0
        %2076 = vmatpush2.xpose.msra.mxu0 0.0
        %2077 = vmatprep.subr.mxu0 0.0
        %2078 = vmatpush2.xpose.msra.mxu0 0.0
        %2079 = vmatprep.subr.mxu0 0.0
        %2080 = vmatpush2.xpose.msra.mxu0 0.0
        %2081 = vmatprep.subr.mxu0 0.0
        %2082 = vmatpush2.xpose.msra.mxu0 0.0
        %2083 = vmatprep.subr.mxu0 0.0
        %2084 = vmatpush2.xpose.msra.mxu0 0.0
        %2085 = vmatprep.subr.mxu0 0.0
        %2086 = vmatpush2.xpose.msra.mxu0 0.0
        %2087 = vmatprep.subr.mxu0 0.0
        %2088 = vmatpush2.xpose.msra.mxu0 0.0
        %2089 = vmatprep.subr.mxu0 0.0
        %2090 = vmatpush2.xpose.msra.mxu0 0.0
        %2091 = vmatprep.mubr.f32.mxu0 0.0
        %v2092 = vand.u32 %v1869, 4294901760
        %v2093 = vsub.f32 %v1869, %v2092
        %2094 = vmatmul.mubr.f32.gmra.mxu0 %v2093
        %v2095 = vpop.f32.mrf.mxu0
        %v2096 = vadd.f32 %v2022, %v2095
        %v2097 = vpop.f32.mrf.mxu0
        %2098 = vdwg.mxu0
        %2099 = vmatprep.subr.mxu0 0.0
        %2100 = vmatpush1.xpose.msra.mxu0 0.0
        %2101 = vmatprep.subr.mxu0 0.0
        %2102 = vmatpush1.xpose.msra.mxu0 0.0
        %2103 = vmatprep.subr.mxu0 0.0
        %2104 = vmatpush1.xpose.msra.mxu0 0.0
        %2105 = vmatprep.subr.mxu0 0.0
        %2106 = vmatpush1.xpose.msra.mxu0 0.0
        %2107 = vmatprep.subr.mxu0 0.0
        %2108 = vmatpush1.xpose.msra.mxu0 0.0
        %2109 = vmatprep.subr.mxu0 0.0
        %2110 = vmatpush1.xpose.msra.mxu0 0.0
        %2111 = vmatprep.subr.mxu0 0.0
        %2112 = vmatpush1.xpose.msra.mxu0 0.0
        %2113 = vmatprep.subr.mxu0 0.0
        %2114 = vmatpush1.xpose.msra.mxu0 0.0
        %2115 = vmatprep.subr.mxu0 0.0
        %2116 = vmatpush1.xpose.msra.mxu0 0.0
        %2117 = vmatprep.subr.mxu0 0.0
        %2118 = vmatpush1.xpose.msra.mxu0 0.0
        %2119 = vmatprep.subr.mxu0 0.0
        %2120 = vmatpush1.xpose.msra.mxu0 0.0
        %2121 = vmatprep.subr.mxu0 0.0
        %2122 = vmatpush1.xpose.msra.mxu0 0.0
        %2123 = vmatprep.subr.mxu0 0.0
        %2124 = vmatpush1.xpose.msra.mxu0 0.0
        %2125 = vmatprep.subr.mxu0 0.0
        %2126 = vmatpush1.xpose.msra.mxu0 0.0
        %2127 = vmatprep.subr.mxu0 0.0
        %2128 = vmatpush1.xpose.msra.mxu0 0.0
        %2129 = vmatprep.subr.mxu0 0.0
        %v2130 = vand.u32 %v1871, 4294901760
        %2131 = vmatpush1.xpose.msra.mxu0 %v2130
        %2132 = vmatprep.subr.mxu0 0.0
        %2133 = vmatpush2.xpose.msra.mxu0 0.0
        %2134 = vmatprep.subr.mxu0 0.0
        %2135 = vmatpush2.xpose.msra.mxu0 0.0
        %2136 = vmatprep.subr.mxu0 0.0
        %2137 = vmatpush2.xpose.msra.mxu0 0.0
        %2138 = vmatprep.subr.mxu0 0.0
        %2139 = vmatpush2.xpose.msra.mxu0 0.0
        %2140 = vmatprep.subr.mxu0 0.0
        %2141 = vmatpush2.xpose.msra.mxu0 0.0
        %2142 = vmatprep.subr.mxu0 0.0
        %2143 = vmatpush2.xpose.msra.mxu0 0.0
        %2144 = vmatprep.subr.mxu0 0.0
        %2145 = vmatpush2.xpose.msra.mxu0 0.0
        %2146 = vmatprep.subr.mxu0 0.0
        %2147 = vmatpush2.xpose.msra.mxu0 0.0
        %2148 = vmatprep.subr.mxu0 0.0
        %2149 = vmatpush2.xpose.msra.mxu0 0.0
        %2150 = vmatprep.subr.mxu0 0.0
        %2151 = vmatpush2.xpose.msra.mxu0 0.0
        %2152 = vmatprep.subr.mxu0 0.0
        %2153 = vmatpush2.xpose.msra.mxu0 0.0
        %2154 = vmatprep.subr.mxu0 0.0
        %2155 = vmatpush2.xpose.msra.mxu0 0.0
        %2156 = vmatprep.subr.mxu0 0.0
        %2157 = vmatpush2.xpose.msra.mxu0 0.0
        %2158 = vmatprep.subr.mxu0 0.0
        %2159 = vmatpush2.xpose.msra.mxu0 0.0
        %2160 = vmatprep.subr.mxu0 0.0
        %2161 = vmatpush2.xpose.msra.mxu0 0.0
        %2162 = vmatprep.subr.mxu0 0.0
        %2163 = vmatpush2.xpose.msra.mxu0 0.0
        %2164 = vmatprep.mubr.f32.mxu0 0.0
        %v2165 = vand.u32 %v1869, 4294901760
        %v2166 = vsub.f32 %v1869, %v2165
        %v2167 = vand.u32 %v2166, 4294901760
        %2168 = vmatmul.mubr.f32.gmra.mxu0 %v2167
        %v2169 = vpop.f32.mrf.mxu0
        %v2170 = vadd.f32 %v2096, %v2169
        %v2171 = vpop.f32.mrf.mxu0
        %2172 = vdwg.mxu0
        %2173 = vmatprep.subr.mxu0 0.0
        %2174 = vmatpush1.xpose.msra.mxu0 0.0
        %2175 = vmatprep.subr.mxu0 0.0
        %2176 = vmatpush1.xpose.msra.mxu0 0.0
        %2177 = vmatprep.subr.mxu0 0.0
        %2178 = vmatpush1.xpose.msra.mxu0 0.0
        %2179 = vmatprep.subr.mxu0 0.0
        %2180 = vmatpush1.xpose.msra.mxu0 0.0
        %2181 = vmatprep.subr.mxu0 0.0
        %2182 = vmatpush1.xpose.msra.mxu0 0.0
        %2183 = vmatprep.subr.mxu0 0.0
        %2184 = vmatpush1.xpose.msra.mxu0 0.0
        %2185 = vmatprep.subr.mxu0 0.0
        %2186 = vmatpush1.xpose.msra.mxu0 0.0
        %2187 = vmatprep.subr.mxu0 0.0
        %2188 = vmatpush1.xpose.msra.mxu0 0.0
        %2189 = vmatprep.subr.mxu0 0.0
        %2190 = vmatpush1.xpose.msra.mxu0 0.0
        %2191 = vmatprep.subr.mxu0 0.0
        %2192 = vmatpush1.xpose.msra.mxu0 0.0
        %2193 = vmatprep.subr.mxu0 0.0
        %2194 = vmatpush1.xpose.msra.mxu0 0.0
        %2195 = vmatprep.subr.mxu0 0.0
        %2196 = vmatpush1.xpose.msra.mxu0 0.0
        %2197 = vmatprep.subr.mxu0 0.0
        %2198 = vmatpush1.xpose.msra.mxu0 0.0
        %2199 = vmatprep.subr.mxu0 0.0
        %2200 = vmatpush1.xpose.msra.mxu0 0.0
        %2201 = vmatprep.subr.mxu0 0.0
        %2202 = vmatpush1.xpose.msra.mxu0 0.0
        %2203 = vmatprep.subr.mxu0 0.0
        %v2204 = vand.u32 %v1871, 4294901760
        %v2205 = vsub.f32 %v1871, %v2204
        %v2206 = vand.u32 %v2205, 4294901760
        %2207 = vmatpush1.xpose.msra.mxu0 %v2206
        %2208 = vmatprep.subr.mxu0 0.0
        %2209 = vmatpush2.xpose.msra.mxu0 0.0
        %2210 = vmatprep.subr.mxu0 0.0
        %2211 = vmatpush2.xpose.msra.mxu0 0.0
        %2212 = vmatprep.subr.mxu0 0.0
        %2213 = vmatpush2.xpose.msra.mxu0 0.0
        %2214 = vmatprep.subr.mxu0 0.0
        %2215 = vmatpush2.xpose.msra.mxu0 0.0
        %2216 = vmatprep.subr.mxu0 0.0
        %2217 = vmatpush2.xpose.msra.mxu0 0.0
        %2218 = vmatprep.subr.mxu0 0.0
        %2219 = vmatpush2.xpose.msra.mxu0 0.0
        %2220 = vmatprep.subr.mxu0 0.0
        %2221 = vmatpush2.xpose.msra.mxu0 0.0
        %2222 = vmatprep.subr.mxu0 0.0
        %2223 = vmatpush2.xpose.msra.mxu0 0.0
        %2224 = vmatprep.subr.mxu0 0.0
        %2225 = vmatpush2.xpose.msra.mxu0 0.0
        %2226 = vmatprep.subr.mxu0 0.0
        %2227 = vmatpush2.xpose.msra.mxu0 0.0
        %2228 = vmatprep.subr.mxu0 0.0
        %2229 = vmatpush2.xpose.msra.mxu0 0.0
        %2230 = vmatprep.subr.mxu0 0.0
        %2231 = vmatpush2.xpose.msra.mxu0 0.0
        %2232 = vmatprep.subr.mxu0 0.0
        %2233 = vmatpush2.xpose.msra.mxu0 0.0
        %2234 = vmatprep.subr.mxu0 0.0
        %2235 = vmatpush2.xpose.msra.mxu0 0.0
        %2236 = vmatprep.subr.mxu0 0.0
        %2237 = vmatpush2.xpose.msra.mxu0 0.0
        %2238 = vmatprep.subr.mxu0 0.0
        %2239 = vmatpush2.xpose.msra.mxu0 0.0
        %2240 = vmatprep.mubr.f32.mxu0 0.0
        %v2241 = vand.u32 %v1869, 4294901760
        %2242 = vmatmul.mubr.f32.gmra.mxu0 %v2241
        %v2243 = vpop.f32.mrf.mxu0
        %v2244 = vadd.f32 %v2170, %v2243
        %v2245 = vpop.f32.mrf.mxu0
        %2246 = vdwg.mxu0
        %2247 = vmatprep.subr.mxu0 0.0
        %2248 = vmatpush1.xpose.msra.mxu0 0.0
        %2249 = vmatprep.subr.mxu0 0.0
        %2250 = vmatpush1.xpose.msra.mxu0 0.0
        %2251 = vmatprep.subr.mxu0 0.0
        %2252 = vmatpush1.xpose.msra.mxu0 0.0
        %2253 = vmatprep.subr.mxu0 0.0
        %2254 = vmatpush1.xpose.msra.mxu0 0.0
        %2255 = vmatprep.subr.mxu0 0.0
        %2256 = vmatpush1.xpose.msra.mxu0 0.0
        %2257 = vmatprep.subr.mxu0 0.0
        %2258 = vmatpush1.xpose.msra.mxu0 0.0
        %2259 = vmatprep.subr.mxu0 0.0
        %2260 = vmatpush1.xpose.msra.mxu0 0.0
        %2261 = vmatprep.subr.mxu0 0.0
        %2262 = vmatpush1.xpose.msra.mxu0 0.0
        %2263 = vmatprep.subr.mxu0 0.0
        %2264 = vmatpush1.xpose.msra.mxu0 0.0
        %2265 = vmatprep.subr.mxu0 0.0
        %2266 = vmatpush1.xpose.msra.mxu0 0.0
        %2267 = vmatprep.subr.mxu0 0.0
        %2268 = vmatpush1.xpose.msra.mxu0 0.0
        %2269 = vmatprep.subr.mxu0 0.0
        %2270 = vmatpush1.xpose.msra.mxu0 0.0
        %2271 = vmatprep.subr.mxu0 0.0
        %2272 = vmatpush1.xpose.msra.mxu0 0.0
        %2273 = vmatprep.subr.mxu0 0.0
        %2274 = vmatpush1.xpose.msra.mxu0 0.0
        %2275 = vmatprep.subr.mxu0 0.0
        %2276 = vmatpush1.xpose.msra.mxu0 0.0
        %2277 = vmatprep.subr.mxu0 0.0
        %v2278 = vand.u32 %v1871, 4294901760
        %2279 = vmatpush1.xpose.msra.mxu0 %v2278
        %2280 = vmatprep.subr.mxu0 0.0
        %2281 = vmatpush2.xpose.msra.mxu0 0.0
        %2282 = vmatprep.subr.mxu0 0.0
        %2283 = vmatpush2.xpose.msra.mxu0 0.0
        %2284 = vmatprep.subr.mxu0 0.0
        %2285 = vmatpush2.xpose.msra.mxu0 0.0
        %2286 = vmatprep.subr.mxu0 0.0
        %2287 = vmatpush2.xpose.msra.mxu0 0.0
        %2288 = vmatprep.subr.mxu0 0.0
        %2289 = vmatpush2.xpose.msra.mxu0 0.0
        %2290 = vmatprep.subr.mxu0 0.0
        %2291 = vmatpush2.xpose.msra.mxu0 0.0
        %2292 = vmatprep.subr.mxu0 0.0
        %2293 = vmatpush2.xpose.msra.mxu0 0.0
        %2294 = vmatprep.subr.mxu0 0.0
        %2295 = vmatpush2.xpose.msra.mxu0 0.0
        %2296 = vmatprep.subr.mxu0 0.0
        %2297 = vmatpush2.xpose.msra.mxu0 0.0
        %2298 = vmatprep.subr.mxu0 0.0
        %2299 = vmatpush2.xpose.msra.mxu0 0.0
        %2300 = vmatprep.subr.mxu0 0.0
        %2301 = vmatpush2.xpose.msra.mxu0 0.0
        %2302 = vmatprep.subr.mxu0 0.0
        %2303 = vmatpush2.xpose.msra.mxu0 0.0
        %2304 = vmatprep.subr.mxu0 0.0
        %2305 = vmatpush2.xpose.msra.mxu0 0.0
        %2306 = vmatprep.subr.mxu0 0.0
        %2307 = vmatpush2.xpose.msra.mxu0 0.0
        %2308 = vmatprep.subr.mxu0 0.0
        %2309 = vmatpush2.xpose.msra.mxu0 0.0
        %2310 = vmatprep.subr.mxu0 0.0
        %2311 = vmatpush2.xpose.msra.mxu0 0.0
        %2312 = vmatprep.mubr.f32.mxu0 0.0
        %v2313 = vand.u32 %v1869, 4294901760
        %2314 = vmatmul.mubr.f32.gmra.mxu0 %v2313
        %v2315 = vpop.f32.mrf.mxu0
        %v2316 = vadd.f32 %v2244, %v2315
        %v2317 = vpop.f32.mrf.mxu0
        %2318 = vdwg.mxu0
        %v2319 = vsel %vm950, %v2316, -inf
        %2320 = vmax.xlane.f32.xlu0 %v2319
        %v2321 = vpop.xlane.xlu0 %2320
        %v2322 = vsub.f32 %v2316, %v2321
        %v2323 = vmul.f32 %v2322, 1.442695
        %v2324 = vpow.pop %v2323
        %v2325 = vsel %vm950, %v2324, 0.0
        %2326 = vadd.xlane.f32.xlu0 %v2325
        %v2327 = vpop.xlane.xlu0 %2326
        %2328 = vrot.lane.b32.xlu0 %v930, 56
        %v2329 = vpop.permute.xlu0 %2328
        %v2332 = vsel %vm950, %v2324, 0
        %2334 = vmatprep.subr.mxu0 0.0
        %2335 = vmatpush1.msra.mxu0 0.0
        %2336 = vmatprep.subr.mxu0 0.0
        %2337 = vmatpush1.msra.mxu0 0.0
        %2338 = vmatprep.subr.mxu0 0.0
        %2339 = vmatpush1.msra.mxu0 0.0
        %2340 = vmatprep.subr.mxu0 0.0
        %2341 = vmatpush1.msra.mxu0 0.0
        %2342 = vmatprep.subr.mxu0 0.0
        %2343 = vmatpush1.msra.mxu0 0.0
        %2344 = vmatprep.subr.mxu0 0.0
        %2345 = vmatpush1.msra.mxu0 0.0
        %2346 = vmatprep.subr.mxu0 0.0
        %2347 = vmatpush1.msra.mxu0 0.0
        %2348 = vmatprep.subr.mxu0 0.0
        %2349 = vmatpush1.msra.mxu0 0.0
        %2350 = vmatprep.subr.mxu0 0.0
        %2351 = vmatpush1.msra.mxu0 0.0
        %2352 = vmatprep.subr.mxu0 0.0
        %2353 = vmatpush1.msra.mxu0 0.0
        %2354 = vmatprep.subr.mxu0 0.0
        %2355 = vmatpush1.msra.mxu0 0.0
        %2356 = vmatprep.subr.mxu0 0.0
        %2357 = vmatpush1.msra.mxu0 0.0
        %2358 = vmatprep.subr.mxu0 0.0
        %2359 = vmatpush1.msra.mxu0 0.0
        %2360 = vmatprep.subr.mxu0 0.0
        %2361 = vmatpush1.msra.mxu0 0.0
        %2362 = vmatprep.subr.mxu0 0.0
        %2363 = vmatpush1.msra.mxu0 0.0
        %2364 = vmatprep.subr.mxu0 0.0
        %v2365 = vand.u32 %v2329, 4294901760
        %2366 = vmatpush1.msra.mxu0 %v2365
        %2367 = vmatprep.subr.mxu0 0.0
        %2368 = vmatpush2.msra.mxu0 0.0
        %2369 = vmatprep.subr.mxu0 0.0
        %2370 = vmatpush2.msra.mxu0 0.0
        %2371 = vmatprep.subr.mxu0 0.0
        %2372 = vmatpush2.msra.mxu0 0.0
        %2373 = vmatprep.subr.mxu0 0.0
        %2374 = vmatpush2.msra.mxu0 0.0
        %2375 = vmatprep.subr.mxu0 0.0
        %2376 = vmatpush2.msra.mxu0 0.0
        %2377 = vmatprep.subr.mxu0 0.0
        %2378 = vmatpush2.msra.mxu0 0.0
        %2379 = vmatprep.subr.mxu0 0.0
        %2380 = vmatpush2.msra.mxu0 0.0
        %2381 = vmatprep.subr.mxu0 0.0
        %2382 = vmatpush2.msra.mxu0 0.0
        %2383 = vmatprep.subr.mxu0 0.0
        %2384 = vmatpush2.msra.mxu0 0.0
        %2385 = vmatprep.subr.mxu0 0.0
        %2386 = vmatpush2.msra.mxu0 0.0
        %2387 = vmatprep.subr.mxu0 0.0
        %2388 = vmatpush2.msra.mxu0 0.0
        %2389 = vmatprep.subr.mxu0 0.0
        %2390 = vmatpush2.msra.mxu0 0.0
        %2391 = vmatprep.subr.mxu0 0.0
        %2392 = vmatpush2.msra.mxu0 0.0
        %2393 = vmatprep.subr.mxu0 0.0
        %2394 = vmatpush2.msra.mxu0 0.0
        %2395 = vmatprep.subr.mxu0 0.0
        %2396 = vmatpush2.msra.mxu0 0.0
        %2397 = vmatprep.subr.mxu0 0.0
        %2398 = vmatpush2.msra.mxu0 0.0
        %2399 = vmatprep.mubr.f32.mxu0 0.0
        %v2400 = vand.u32 %v2332, 4294901760
        %v2401 = vsub.f32 %v2332, %v2400
        %v2402 = vand.u32 %v2401, 4294901760
        %v2403 = vsub.f32 %v2401, %v2402
        %v2404 = vand.u32 %v2403, 4294901760
        %2405 = vmatmul.mubr.f32.gmra.mxu0 %v2404
        %v2406 = vpop.f32.mrf.mxu0
        %v2407 = vadd.f32 0.0, %v2406
        %v2408 = vpop.f32.mrf.mxu0
        %2409 = vdwg.mxu0
        %2410 = vmatprep.subr.mxu0 0.0
        %2411 = vmatpush1.msra.mxu0 0.0
        %2412 = vmatprep.subr.mxu0 0.0
        %2413 = vmatpush1.msra.mxu0 0.0
        %2414 = vmatprep.subr.mxu0 0.0
        %2415 = vmatpush1.msra.mxu0 0.0
        %2416 = vmatprep.subr.mxu0 0.0
        %2417 = vmatpush1.msra.mxu0 0.0
        %2418 = vmatprep.subr.mxu0 0.0
        %2419 = vmatpush1.msra.mxu0 0.0
        %2420 = vmatprep.subr.mxu0 0.0
        %2421 = vmatpush1.msra.mxu0 0.0
        %2422 = vmatprep.subr.mxu0 0.0
        %2423 = vmatpush1.msra.mxu0 0.0
        %2424 = vmatprep.subr.mxu0 0.0
        %2425 = vmatpush1.msra.mxu0 0.0
        %2426 = vmatprep.subr.mxu0 0.0
        %2427 = vmatpush1.msra.mxu0 0.0
        %2428 = vmatprep.subr.mxu0 0.0
        %2429 = vmatpush1.msra.mxu0 0.0
        %2430 = vmatprep.subr.mxu0 0.0
        %2431 = vmatpush1.msra.mxu0 0.0
        %2432 = vmatprep.subr.mxu0 0.0
        %2433 = vmatpush1.msra.mxu0 0.0
        %2434 = vmatprep.subr.mxu0 0.0
        %2435 = vmatpush1.msra.mxu0 0.0
        %2436 = vmatprep.subr.mxu0 0.0
        %2437 = vmatpush1.msra.mxu0 0.0
        %2438 = vmatprep.subr.mxu0 0.0
        %2439 = vmatpush1.msra.mxu0 0.0
        %2440 = vmatprep.subr.mxu0 0.0
        %v2441 = vand.u32 %v2329, 4294901760
        %v2442 = vsub.f32 %v2329, %v2441
        %v2443 = vand.u32 %v2442, 4294901760
        %v2444 = vsub.f32 %v2442, %v2443
        %v2445 = vand.u32 %v2444, 4294901760
        %2446 = vmatpush1.msra.mxu0 %v2445
        %2447 = vmatprep.subr.mxu0 0.0
        %2448 = vmatpush2.msra.mxu0 0.0
        %2449 = vmatprep.subr.mxu0 0.0
        %2450 = vmatpush2.msra.mxu0 0.0
        %2451 = vmatprep.subr.mxu0 0.0
        %2452 = vmatpush2.msra.mxu0 0.0
        %2453 = vmatprep.subr.mxu0 0.0
        %2454 = vmatpush2.msra.mxu0 0.0
        %2455 = vmatprep.subr.mxu0 0.0
        %2456 = vmatpush2.msra.mxu0 0.0
        %2457 = vmatprep.subr.mxu0 0.0
        %2458 = vmatpush2.msra.mxu0 0.0
        %2459 = vmatprep.subr.mxu0 0.0
        %2460 = vmatpush2.msra.mxu0 0.0
        %2461 = vmatprep.subr.mxu0 0.0
        %2462 = vmatpush2.msra.mxu0 0.0
        %2463 = vmatprep.subr.mxu0 0.0
        %2464 = vmatpush2.msra.mxu0 0.0
        %2465 = vmatprep.subr.mxu0 0.0
        %2466 = vmatpush2.msra.mxu0 0.0
        %2467 = vmatprep.subr.mxu0 0.0
        %2468 = vmatpush2.msra.mxu0 0.0
        %2469 = vmatprep.subr.mxu0 0.0
        %2470 = vmatpush2.msra.mxu0 0.0
        %2471 = vmatprep.subr.mxu0 0.0
        %2472 = vmatpush2.msra.mxu0 0.0
        %2473 = vmatprep.subr.mxu0 0.0
        %2474 = vmatpush2.msra.mxu0 0.0
        %2475 = vmatprep.subr.mxu0 0.0
        %2476 = vmatpush2.msra.mxu0 0.0
        %2477 = vmatprep.subr.mxu0 0.0
        %2478 = vmatpush2.msra.mxu0 0.0
        %2479 = vmatprep.mubr.f32.mxu0 0.0
        %v2480 = vand.u32 %v2332, 4294901760
        %2481 = vmatmul.mubr.f32.gmra.mxu0 %v2480
        %v2482 = vpop.f32.mrf.mxu0
        %v2483 = vadd.f32 %v2407, %v2482
        %v2484 = vpop.f32.mrf.mxu0
        %2485 = vdwg.mxu0
        %2486 = vmatprep.subr.mxu0 0.0
        %2487 = vmatpush1.msra.mxu0 0.0
        %2488 = vmatprep.subr.mxu0 0.0
        %2489 = vmatpush1.msra.mxu0 0.0
        %2490 = vmatprep.subr.mxu0 0.0
        %2491 = vmatpush1.msra.mxu0 0.0
        %2492 = vmatprep.subr.mxu0 0.0
        %2493 = vmatpush1.msra.mxu0 0.0
        %2494 = vmatprep.subr.mxu0 0.0
        %2495 = vmatpush1.msra.mxu0 0.0
        %2496 = vmatprep.subr.mxu0 0.0
        %2497 = vmatpush1.msra.mxu0 0.0
        %2498 = vmatprep.subr.mxu0 0.0
        %2499 = vmatpush1.msra.mxu0 0.0
        %2500 = vmatprep.subr.mxu0 0.0
        %2501 = vmatpush1.msra.mxu0 0.0
        %2502 = vmatprep.subr.mxu0 0.0
        %2503 = vmatpush1.msra.mxu0 0.0
        %2504 = vmatprep.subr.mxu0 0.0
        %2505 = vmatpush1.msra.mxu0 0.0
        %2506 = vmatprep.subr.mxu0 0.0
        %2507 = vmatpush1.msra.mxu0 0.0
        %2508 = vmatprep.subr.mxu0 0.0
        %2509 = vmatpush1.msra.mxu0 0.0
        %2510 = vmatprep.subr.mxu0 0.0
        %2511 = vmatpush1.msra.mxu0 0.0
        %2512 = vmatprep.subr.mxu0 0.0
        %2513 = vmatpush1.msra.mxu0 0.0
        %2514 = vmatprep.subr.mxu0 0.0
        %2515 = vmatpush1.msra.mxu0 0.0
        %2516 = vmatprep.subr.mxu0 0.0
        %v2517 = vand.u32 %v2329, 4294901760
        %v2518 = vsub.f32 %v2329, %v2517
        %2519 = vmatpush1.msra.mxu0 %v2518
        %2520 = vmatprep.subr.mxu0 0.0
        %2521 = vmatpush2.msra.mxu0 0.0
        %2522 = vmatprep.subr.mxu0 0.0
        %2523 = vmatpush2.msra.mxu0 0.0
        %2524 = vmatprep.subr.mxu0 0.0
        %2525 = vmatpush2.msra.mxu0 0.0
        %2526 = vmatprep.subr.mxu0 0.0
        %2527 = vmatpush2.msra.mxu0 0.0
        %2528 = vmatprep.subr.mxu0 0.0
        %2529 = vmatpush2.msra.mxu0 0.0
        %2530 = vmatprep.subr.mxu0 0.0
        %2531 = vmatpush2.msra.mxu0 0.0
        %2532 = vmatprep.subr.mxu0 0.0
        %2533 = vmatpush2.msra.mxu0 0.0
        %2534 = vmatprep.subr.mxu0 0.0
        %2535 = vmatpush2.msra.mxu0 0.0
        %2536 = vmatprep.subr.mxu0 0.0
        %2537 = vmatpush2.msra.mxu0 0.0
        %2538 = vmatprep.subr.mxu0 0.0
        %2539 = vmatpush2.msra.mxu0 0.0
        %2540 = vmatprep.subr.mxu0 0.0
        %2541 = vmatpush2.msra.mxu0 0.0
        %2542 = vmatprep.subr.mxu0 0.0
        %2543 = vmatpush2.msra.mxu0 0.0
        %2544 = vmatprep.subr.mxu0 0.0
        %2545 = vmatpush2.msra.mxu0 0.0
        %2546 = vmatprep.subr.mxu0 0.0
        %2547 = vmatpush2.msra.mxu0 0.0
        %2548 = vmatprep.subr.mxu0 0.0
        %2549 = vmatpush2.msra.mxu0 0.0
        %2550 = vmatprep.subr.mxu0 0.0
        %2551 = vmatpush2.msra.mxu0 0.0
        %2552 = vmatprep.mubr.f32.mxu0 0.0
        %v2553 = vand.u32 %v2332, 4294901760
        %v2554 = vsub.f32 %v2332, %v2553
        %2555 = vmatmul.mubr.f32.gmra.mxu0 %v2554
        %v2556 = vpop.f32.mrf.mxu0
        %v2557 = vadd.f32 %v2483, %v2556
        %v2558 = vpop.f32.mrf.mxu0
        %2559 = vdwg.mxu0
        %2560 = vmatprep.subr.mxu0 0.0
        %2561 = vmatpush1.msra.mxu0 0.0
        %2562 = vmatprep.subr.mxu0 0.0
        %2563 = vmatpush1.msra.mxu0 0.0
        %2564 = vmatprep.subr.mxu0 0.0
        %2565 = vmatpush1.msra.mxu0 0.0
        %2566 = vmatprep.subr.mxu0 0.0
        %2567 = vmatpush1.msra.mxu0 0.0
        %2568 = vmatprep.subr.mxu0 0.0
        %2569 = vmatpush1.msra.mxu0 0.0
        %2570 = vmatprep.subr.mxu0 0.0
        %2571 = vmatpush1.msra.mxu0 0.0
        %2572 = vmatprep.subr.mxu0 0.0
        %2573 = vmatpush1.msra.mxu0 0.0
        %2574 = vmatprep.subr.mxu0 0.0
        %2575 = vmatpush1.msra.mxu0 0.0
        %2576 = vmatprep.subr.mxu0 0.0
        %2577 = vmatpush1.msra.mxu0 0.0
        %2578 = vmatprep.subr.mxu0 0.0
        %2579 = vmatpush1.msra.mxu0 0.0
        %2580 = vmatprep.subr.mxu0 0.0
        %2581 = vmatpush1.msra.mxu0 0.0
        %2582 = vmatprep.subr.mxu0 0.0
        %2583 = vmatpush1.msra.mxu0 0.0
        %2584 = vmatprep.subr.mxu0 0.0
        %2585 = vmatpush1.msra.mxu0 0.0
        %2586 = vmatprep.subr.mxu0 0.0
        %2587 = vmatpush1.msra.mxu0 0.0
        %2588 = vmatprep.subr.mxu0 0.0
        %2589 = vmatpush1.msra.mxu0 0.0
        %2590 = vmatprep.subr.mxu0 0.0
        %v2591 = vand.u32 %v2329, 4294901760
        %2592 = vmatpush1.msra.mxu0 %v2591
        %2593 = vmatprep.subr.mxu0 0.0
        %2594 = vmatpush2.msra.mxu0 0.0
        %2595 = vmatprep.subr.mxu0 0.0
        %2596 = vmatpush2.msra.mxu0 0.0
        %2597 = vmatprep.subr.mxu0 0.0
        %2598 = vmatpush2.msra.mxu0 0.0
        %2599 = vmatprep.subr.mxu0 0.0
        %2600 = vmatpush2.msra.mxu0 0.0
        %2601 = vmatprep.subr.mxu0 0.0
        %2602 = vmatpush2.msra.mxu0 0.0
        %2603 = vmatprep.subr.mxu0 0.0
        %2604 = vmatpush2.msra.mxu0 0.0
        %2605 = vmatprep.subr.mxu0 0.0
        %2606 = vmatpush2.msra.mxu0 0.0
        %2607 = vmatprep.subr.mxu0 0.0
        %2608 = vmatpush2.msra.mxu0 0.0
        %2609 = vmatprep.subr.mxu0 0.0
        %2610 = vmatpush2.msra.mxu0 0.0
        %2611 = vmatprep.subr.mxu0 0.0
        %2612 = vmatpush2.msra.mxu0 0.0
        %2613 = vmatprep.subr.mxu0 0.0
        %2614 = vmatpush2.msra.mxu0 0.0
        %2615 = vmatprep.subr.mxu0 0.0
        %2616 = vmatpush2.msra.mxu0 0.0
        %2617 = vmatprep.subr.mxu0 0.0
        %2618 = vmatpush2.msra.mxu0 0.0
        %2619 = vmatprep.subr.mxu0 0.0
        %2620 = vmatpush2.msra.mxu0 0.0
        %2621 = vmatprep.subr.mxu0 0.0
        %2622 = vmatpush2.msra.mxu0 0.0
        %2623 = vmatprep.subr.mxu0 0.0
        %2624 = vmatpush2.msra.mxu0 0.0
        %2625 = vmatprep.mubr.f32.mxu0 0.0
        %v2626 = vand.u32 %v2332, 4294901760
        %v2627 = vsub.f32 %v2332, %v2626
        %v2628 = vand.u32 %v2627, 4294901760
        %2629 = vmatmul.mubr.f32.gmra.mxu0 %v2628
        %v2630 = vpop.f32.mrf.mxu0
        %v2631 = vadd.f32 %v2557, %v2630
        %v2632 = vpop.f32.mrf.mxu0
        %2633 = vdwg.mxu0
        %2634 = vmatprep.subr.mxu0 0.0
        %2635 = vmatpush1.msra.mxu0 0.0
        %2636 = vmatprep.subr.mxu0 0.0
        %2637 = vmatpush1.msra.mxu0 0.0
        %2638 = vmatprep.subr.mxu0 0.0
        %2639 = vmatpush1.msra.mxu0 0.0
        %2640 = vmatprep.subr.mxu0 0.0
        %2641 = vmatpush1.msra.mxu0 0.0
        %2642 = vmatprep.subr.mxu0 0.0
        %2643 = vmatpush1.msra.mxu0 0.0
        %2644 = vmatprep.subr.mxu0 0.0
        %2645 = vmatpush1.msra.mxu0 0.0
        %2646 = vmatprep.subr.mxu0 0.0
        %2647 = vmatpush1.msra.mxu0 0.0
        %2648 = vmatprep.subr.mxu0 0.0
        %2649 = vmatpush1.msra.mxu0 0.0
        %2650 = vmatprep.subr.mxu0 0.0
        %2651 = vmatpush1.msra.mxu0 0.0
        %2652 = vmatprep.subr.mxu0 0.0
        %2653 = vmatpush1.msra.mxu0 0.0
        %2654 = vmatprep.subr.mxu0 0.0
        %2655 = vmatpush1.msra.mxu0 0.0
        %2656 = vmatprep.subr.mxu0 0.0
        %2657 = vmatpush1.msra.mxu0 0.0
        %2658 = vmatprep.subr.mxu0 0.0
        %2659 = vmatpush1.msra.mxu0 0.0
        %2660 = vmatprep.subr.mxu0 0.0
        %2661 = vmatpush1.msra.mxu0 0.0
        %2662 = vmatprep.subr.mxu0 0.0
        %2663 = vmatpush1.msra.mxu0 0.0
        %2664 = vmatprep.subr.mxu0 0.0
        %v2665 = vand.u32 %v2329, 4294901760
        %v2666 = vsub.f32 %v2329, %v2665
        %v2667 = vand.u32 %v2666, 4294901760
        %2668 = vmatpush1.msra.mxu0 %v2667
        %2669 = vmatprep.subr.mxu0 0.0
        %2670 = vmatpush2.msra.mxu0 0.0
        %2671 = vmatprep.subr.mxu0 0.0
        %2672 = vmatpush2.msra.mxu0 0.0
        %2673 = vmatprep.subr.mxu0 0.0
        %2674 = vmatpush2.msra.mxu0 0.0
        %2675 = vmatprep.subr.mxu0 0.0
        %2676 = vmatpush2.msra.mxu0 0.0
        %2677 = vmatprep.subr.mxu0 0.0
        %2678 = vmatpush2.msra.mxu0 0.0
        %2679 = vmatprep.subr.mxu0 0.0
        %2680 = vmatpush2.msra.mxu0 0.0
        %2681 = vmatprep.subr.mxu0 0.0
        %2682 = vmatpush2.msra.mxu0 0.0
        %2683 = vmatprep.subr.mxu0 0.0
        %2684 = vmatpush2.msra.mxu0 0.0
        %2685 = vmatprep.subr.mxu0 0.0
        %2686 = vmatpush2.msra.mxu0 0.0
        %2687 = vmatprep.subr.mxu0 0.0
        %2688 = vmatpush2.msra.mxu0 0.0
        %2689 = vmatprep.subr.mxu0 0.0
        %2690 = vmatpush2.msra.mxu0 0.0
        %2691 = vmatprep.subr.mxu0 0.0
        %2692 = vmatpush2.msra.mxu0 0.0
        %2693 = vmatprep.subr.mxu0 0.0
        %2694 = vmatpush2.msra.mxu0 0.0
        %2695 = vmatprep.subr.mxu0 0.0
        %2696 = vmatpush2.msra.mxu0 0.0
        %2697 = vmatprep.subr.mxu0 0.0
        %2698 = vmatpush2.msra.mxu0 0.0
        %2699 = vmatprep.subr.mxu0 0.0
        %2700 = vmatpush2.msra.mxu0 0.0
        %2701 = vmatprep.mubr.f32.mxu0 0.0
        %v2702 = vand.u32 %v2332, 4294901760
        %2703 = vmatmul.mubr.f32.gmra.mxu0 %v2702
        %v2704 = vpop.f32.mrf.mxu0
        %v2705 = vadd.f32 %v2631, %v2704
        %v2706 = vpop.f32.mrf.mxu0
        %2707 = vdwg.mxu0
        %2708 = vmatprep.subr.mxu0 0.0
        %2709 = vmatpush1.msra.mxu0 0.0
        %2710 = vmatprep.subr.mxu0 0.0
        %2711 = vmatpush1.msra.mxu0 0.0
        %2712 = vmatprep.subr.mxu0 0.0
        %2713 = vmatpush1.msra.mxu0 0.0
        %2714 = vmatprep.subr.mxu0 0.0
        %2715 = vmatpush1.msra.mxu0 0.0
        %2716 = vmatprep.subr.mxu0 0.0
        %2717 = vmatpush1.msra.mxu0 0.0
        %2718 = vmatprep.subr.mxu0 0.0
        %2719 = vmatpush1.msra.mxu0 0.0
        %2720 = vmatprep.subr.mxu0 0.0
        %2721 = vmatpush1.msra.mxu0 0.0
        %2722 = vmatprep.subr.mxu0 0.0
        %2723 = vmatpush1.msra.mxu0 0.0
        %2724 = vmatprep.subr.mxu0 0.0
        %2725 = vmatpush1.msra.mxu0 0.0
        %2726 = vmatprep.subr.mxu0 0.0
        %2727 = vmatpush1.msra.mxu0 0.0
        %2728 = vmatprep.subr.mxu0 0.0
        %2729 = vmatpush1.msra.mxu0 0.0
        %2730 = vmatprep.subr.mxu0 0.0
        %2731 = vmatpush1.msra.mxu0 0.0
        %2732 = vmatprep.subr.mxu0 0.0
        %2733 = vmatpush1.msra.mxu0 0.0
        %2734 = vmatprep.subr.mxu0 0.0
        %2735 = vmatpush1.msra.mxu0 0.0
        %2736 = vmatprep.subr.mxu0 0.0
        %2737 = vmatpush1.msra.mxu0 0.0
        %2738 = vmatprep.subr.mxu0 0.0
        %v2739 = vand.u32 %v2329, 4294901760
        %2740 = vmatpush1.msra.mxu0 %v2739
        %2741 = vmatprep.subr.mxu0 0.0
        %2742 = vmatpush2.msra.mxu0 0.0
        %2743 = vmatprep.subr.mxu0 0.0
        %2744 = vmatpush2.msra.mxu0 0.0
        %2745 = vmatprep.subr.mxu0 0.0
        %2746 = vmatpush2.msra.mxu0 0.0
        %2747 = vmatprep.subr.mxu0 0.0
        %2748 = vmatpush2.msra.mxu0 0.0
        %2749 = vmatprep.subr.mxu0 0.0
        %2750 = vmatpush2.msra.mxu0 0.0
        %2751 = vmatprep.subr.mxu0 0.0
        %2752 = vmatpush2.msra.mxu0 0.0
        %2753 = vmatprep.subr.mxu0 0.0
        %2754 = vmatpush2.msra.mxu0 0.0
        %2755 = vmatprep.subr.mxu0 0.0
        %2756 = vmatpush2.msra.mxu0 0.0
        %2757 = vmatprep.subr.mxu0 0.0
        %2758 = vmatpush2.msra.mxu0 0.0
        %2759 = vmatprep.subr.mxu0 0.0
        %2760 = vmatpush2.msra.mxu0 0.0
        %2761 = vmatprep.subr.mxu0 0.0
        %2762 = vmatpush2.msra.mxu0 0.0
        %2763 = vmatprep.subr.mxu0 0.0
        %2764 = vmatpush2.msra.mxu0 0.0
        %2765 = vmatprep.subr.mxu0 0.0
        %2766 = vmatpush2.msra.mxu0 0.0
        %2767 = vmatprep.subr.mxu0 0.0
        %2768 = vmatpush2.msra.mxu0 0.0
        %2769 = vmatprep.subr.mxu0 0.0
        %2770 = vmatpush2.msra.mxu0 0.0
        %2771 = vmatprep.subr.mxu0 0.0
        %2772 = vmatpush2.msra.mxu0 0.0
        %2773 = vmatprep.mubr.f32.mxu0 0.0
        %v2774 = vand.u32 %v2332, 4294901760
        %2775 = vmatmul.mubr.f32.gmra.mxu0 %v2774
        %v2776 = vpop.f32.mrf.mxu0
        %v2777 = vadd.f32 %v2705, %v2776
        %v2778 = vpop.f32.mrf.mxu0
        %2779 = vdwg.mxu0
        %v2780 = vrcp.pop %v2327
        %v2781 = vmul.f32 %v2777, %v2780
        %2782 = vrot.lane.b32.xlu0 %v933, 112
        %v2783 = vpop.permute.xlu0 %2782
        %2784 = vrot.lane.b32.xlu0 %v930, 80
        %v2785 = vpop.permute.xlu0 %2784
        %v2786 = vsel %vm950, %v2783, 0
        %v2788 = vsel %vm950, %v2785, 0
        %2790 = vmatprep.subr.mxu0 0.0
        %2791 = vmatpush1.xpose.msra.mxu0 0.0
        %2792 = vmatprep.subr.mxu0 0.0
        %2793 = vmatpush1.xpose.msra.mxu0 0.0
        %2794 = vmatprep.subr.mxu0 0.0
        %2795 = vmatpush1.xpose.msra.mxu0 0.0
        %2796 = vmatprep.subr.mxu0 0.0
        %2797 = vmatpush1.xpose.msra.mxu0 0.0
        %2798 = vmatprep.subr.mxu0 0.0
        %2799 = vmatpush1.xpose.msra.mxu0 0.0
        %2800 = vmatprep.subr.mxu0 0.0
        %2801 = vmatpush1.xpose.msra.mxu0 0.0
        %2802 = vmatprep.subr.mxu0 0.0
        %2803 = vmatpush1.xpose.msra.mxu0 0.0
        %2804 = vmatprep.subr.mxu0 0.0
        %2805 = vmatpush1.xpose.msra.mxu0 0.0
        %2806 = vmatprep.subr.mxu0 0.0
        %2807 = vmatpush1.xpose.msra.mxu0 0.0
        %2808 = vmatprep.subr.mxu0 0.0
        %2809 = vmatpush1.xpose.msra.mxu0 0.0
        %2810 = vmatprep.subr.mxu0 0.0
        %2811 = vmatpush1.xpose.msra.mxu0 0.0
        %2812 = vmatprep.subr.mxu0 0.0
        %2813 = vmatpush1.xpose.msra.mxu0 0.0
        %2814 = vmatprep.subr.mxu0 0.0
        %2815 = vmatpush1.xpose.msra.mxu0 0.0
        %2816 = vmatprep.subr.mxu0 0.0
        %2817 = vmatpush1.xpose.msra.mxu0 0.0
        %2818 = vmatprep.subr.mxu0 0.0
        %2819 = vmatpush1.xpose.msra.mxu0 0.0
        %2820 = vmatprep.subr.mxu0 0.0
        %v2821 = vand.u32 %v2788, 4294901760
        %2822 = vmatpush1.xpose.msra.mxu0 %v2821
        %2823 = vmatprep.subr.mxu0 0.0
        %2824 = vmatpush2.xpose.msra.mxu0 0.0
        %2825 = vmatprep.subr.mxu0 0.0
        %2826 = vmatpush2.xpose.msra.mxu0 0.0
        %2827 = vmatprep.subr.mxu0 0.0
        %2828 = vmatpush2.xpose.msra.mxu0 0.0
        %2829 = vmatprep.subr.mxu0 0.0
        %2830 = vmatpush2.xpose.msra.mxu0 0.0
        %2831 = vmatprep.subr.mxu0 0.0
        %2832 = vmatpush2.xpose.msra.mxu0 0.0
        %2833 = vmatprep.subr.mxu0 0.0
        %2834 = vmatpush2.xpose.msra.mxu0 0.0
        %2835 = vmatprep.subr.mxu0 0.0
        %2836 = vmatpush2.xpose.msra.mxu0 0.0
        %2837 = vmatprep.subr.mxu0 0.0
        %2838 = vmatpush2.xpose.msra.mxu0 0.0
        %2839 = vmatprep.subr.mxu0 0.0
        %2840 = vmatpush2.xpose.msra.mxu0 0.0
        %2841 = vmatprep.subr.mxu0 0.0
        %2842 = vmatpush2.xpose.msra.mxu0 0.0
        %2843 = vmatprep.subr.mxu0 0.0
        %2844 = vmatpush2.xpose.msra.mxu0 0.0
        %2845 = vmatprep.subr.mxu0 0.0
        %2846 = vmatpush2.xpose.msra.mxu0 0.0
        %2847 = vmatprep.subr.mxu0 0.0
        %2848 = vmatpush2.xpose.msra.mxu0 0.0
        %2849 = vmatprep.subr.mxu0 0.0
        %2850 = vmatpush2.xpose.msra.mxu0 0.0
        %2851 = vmatprep.subr.mxu0 0.0
        %2852 = vmatpush2.xpose.msra.mxu0 0.0
        %2853 = vmatprep.subr.mxu0 0.0
        %2854 = vmatpush2.xpose.msra.mxu0 0.0
        %2855 = vmatprep.mubr.f32.mxu0 0.0
        %v2856 = vand.u32 %v2786, 4294901760
        %v2857 = vsub.f32 %v2786, %v2856
        %v2858 = vand.u32 %v2857, 4294901760
        %v2859 = vsub.f32 %v2857, %v2858
        %v2860 = vand.u32 %v2859, 4294901760
        %2861 = vmatmul.mubr.f32.gmra.mxu0 %v2860
        %v2862 = vpop.f32.mrf.mxu0
        %v2863 = vadd.f32 %v946, %v2862
        %v2864 = vpop.f32.mrf.mxu0
        %2865 = vdwg.mxu0
        %2866 = vmatprep.subr.mxu0 0.0
        %2867 = vmatpush1.xpose.msra.mxu0 0.0
        %2868 = vmatprep.subr.mxu0 0.0
        %2869 = vmatpush1.xpose.msra.mxu0 0.0
        %2870 = vmatprep.subr.mxu0 0.0
        %2871 = vmatpush1.xpose.msra.mxu0 0.0
        %2872 = vmatprep.subr.mxu0 0.0
        %2873 = vmatpush1.xpose.msra.mxu0 0.0
        %2874 = vmatprep.subr.mxu0 0.0
        %2875 = vmatpush1.xpose.msra.mxu0 0.0
        %2876 = vmatprep.subr.mxu0 0.0
        %2877 = vmatpush1.xpose.msra.mxu0 0.0
        %2878 = vmatprep.subr.mxu0 0.0
        %2879 = vmatpush1.xpose.msra.mxu0 0.0
        %2880 = vmatprep.subr.mxu0 0.0
        %2881 = vmatpush1.xpose.msra.mxu0 0.0
        %2882 = vmatprep.subr.mxu0 0.0
        %2883 = vmatpush1.xpose.msra.mxu0 0.0
        %2884 = vmatprep.subr.mxu0 0.0
        %2885 = vmatpush1.xpose.msra.mxu0 0.0
        %2886 = vmatprep.subr.mxu0 0.0
        %2887 = vmatpush1.xpose.msra.mxu0 0.0
        %2888 = vmatprep.subr.mxu0 0.0
        %2889 = vmatpush1.xpose.msra.mxu0 0.0
        %2890 = vmatprep.subr.mxu0 0.0
        %2891 = vmatpush1.xpose.msra.mxu0 0.0
        %2892 = vmatprep.subr.mxu0 0.0
        %2893 = vmatpush1.xpose.msra.mxu0 0.0
        %2894 = vmatprep.subr.mxu0 0.0
        %2895 = vmatpush1.xpose.msra.mxu0 0.0
        %2896 = vmatprep.subr.mxu0 0.0
        %v2897 = vand.u32 %v2788, 4294901760
        %v2898 = vsub.f32 %v2788, %v2897
        %v2899 = vand.u32 %v2898, 4294901760
        %v2900 = vsub.f32 %v2898, %v2899
        %v2901 = vand.u32 %v2900, 4294901760
        %2902 = vmatpush1.xpose.msra.mxu0 %v2901
        %2903 = vmatprep.subr.mxu0 0.0
        %2904 = vmatpush2.xpose.msra.mxu0 0.0
        %2905 = vmatprep.subr.mxu0 0.0
        %2906 = vmatpush2.xpose.msra.mxu0 0.0
        %2907 = vmatprep.subr.mxu0 0.0
        %2908 = vmatpush2.xpose.msra.mxu0 0.0
        %2909 = vmatprep.subr.mxu0 0.0
        %2910 = vmatpush2.xpose.msra.mxu0 0.0
        %2911 = vmatprep.subr.mxu0 0.0
        %2912 = vmatpush2.xpose.msra.mxu0 0.0
        %2913 = vmatprep.subr.mxu0 0.0
        %2914 = vmatpush2.xpose.msra.mxu0 0.0
        %2915 = vmatprep.subr.mxu0 0.0
        %2916 = vmatpush2.xpose.msra.mxu0 0.0
        %2917 = vmatprep.subr.mxu0 0.0
        %2918 = vmatpush2.xpose.msra.mxu0 0.0
        %2919 = vmatprep.subr.mxu0 0.0
        %2920 = vmatpush2.xpose.msra.mxu0 0.0
        %2921 = vmatprep.subr.mxu0 0.0
        %2922 = vmatpush2.xpose.msra.mxu0 0.0
        %2923 = vmatprep.subr.mxu0 0.0
        %2924 = vmatpush2.xpose.msra.mxu0 0.0
        %2925 = vmatprep.subr.mxu0 0.0
        %2926 = vmatpush2.xpose.msra.mxu0 0.0
        %2927 = vmatprep.subr.mxu0 0.0
        %2928 = vmatpush2.xpose.msra.mxu0 0.0
        %2929 = vmatprep.subr.mxu0 0.0
        %2930 = vmatpush2.xpose.msra.mxu0 0.0
        %2931 = vmatprep.subr.mxu0 0.0
        %2932 = vmatpush2.xpose.msra.mxu0 0.0
        %2933 = vmatprep.subr.mxu0 0.0
        %2934 = vmatpush2.xpose.msra.mxu0 0.0
        %2935 = vmatprep.mubr.f32.mxu0 0.0
        %v2936 = vand.u32 %v2786, 4294901760
        %2937 = vmatmul.mubr.f32.gmra.mxu0 %v2936
        %v2938 = vpop.f32.mrf.mxu0
        %v2939 = vadd.f32 %v2863, %v2938
        %v2940 = vpop.f32.mrf.mxu0
        %2941 = vdwg.mxu0
        %2942 = vmatprep.subr.mxu0 0.0
        %2943 = vmatpush1.xpose.msra.mxu0 0.0
        %2944 = vmatprep.subr.mxu0 0.0
        %2945 = vmatpush1.xpose.msra.mxu0 0.0
        %2946 = vmatprep.subr.mxu0 0.0
        %2947 = vmatpush1.xpose.msra.mxu0 0.0
        %2948 = vmatprep.subr.mxu0 0.0
        %2949 = vmatpush1.xpose.msra.mxu0 0.0
        %2950 = vmatprep.subr.mxu0 0.0
        %2951 = vmatpush1.xpose.msra.mxu0 0.0
        %2952 = vmatprep.subr.mxu0 0.0
        %2953 = vmatpush1.xpose.msra.mxu0 0.0
        %2954 = vmatprep.subr.mxu0 0.0
        %2955 = vmatpush1.xpose.msra.mxu0 0.0
        %2956 = vmatprep.subr.mxu0 0.0
        %2957 = vmatpush1.xpose.msra.mxu0 0.0
        %2958 = vmatprep.subr.mxu0 0.0
        %2959 = vmatpush1.xpose.msra.mxu0 0.0
        %2960 = vmatprep.subr.mxu0 0.0
        %2961 = vmatpush1.xpose.msra.mxu0 0.0
        %2962 = vmatprep.subr.mxu0 0.0
        %2963 = vmatpush1.xpose.msra.mxu0 0.0
        %2964 = vmatprep.subr.mxu0 0.0
        %2965 = vmatpush1.xpose.msra.mxu0 0.0
        %2966 = vmatprep.subr.mxu0 0.0
        %2967 = vmatpush1.xpose.msra.mxu0 0.0
        %2968 = vmatprep.subr.mxu0 0.0
        %2969 = vmatpush1.xpose.msra.mxu0 0.0
        %2970 = vmatprep.subr.mxu0 0.0
        %2971 = vmatpush1.xpose.msra.mxu0 0.0
        %2972 = vmatprep.subr.mxu0 0.0
        %v2973 = vand.u32 %v2788, 4294901760
        %v2974 = vsub.f32 %v2788, %v2973
        %2975 = vmatpush1.xpose.msra.mxu0 %v2974
        %2976 = vmatprep.subr.mxu0 0.0
        %2977 = vmatpush2.xpose.msra.mxu0 0.0
        %2978 = vmatprep.subr.mxu0 0.0
        %2979 = vmatpush2.xpose.msra.mxu0 0.0
        %2980 = vmatprep.subr.mxu0 0.0
        %2981 = vmatpush2.xpose.msra.mxu0 0.0
        %2982 = vmatprep.subr.mxu0 0.0
        %2983 = vmatpush2.xpose.msra.mxu0 0.0
        %2984 = vmatprep.subr.mxu0 0.0
        %2985 = vmatpush2.xpose.msra.mxu0 0.0
        %2986 = vmatprep.subr.mxu0 0.0
        %2987 = vmatpush2.xpose.msra.mxu0 0.0
        %2988 = vmatprep.subr.mxu0 0.0
        %2989 = vmatpush2.xpose.msra.mxu0 0.0
        %2990 = vmatprep.subr.mxu0 0.0
        %2991 = vmatpush2.xpose.msra.mxu0 0.0
        %2992 = vmatprep.subr.mxu0 0.0
        %2993 = vmatpush2.xpose.msra.mxu0 0.0
        %2994 = vmatprep.subr.mxu0 0.0
        %2995 = vmatpush2.xpose.msra.mxu0 0.0
        %2996 = vmatprep.subr.mxu0 0.0
        %2997 = vmatpush2.xpose.msra.mxu0 0.0
        %2998 = vmatprep.subr.mxu0 0.0
        %2999 = vmatpush2.xpose.msra.mxu0 0.0
        %3000 = vmatprep.subr.mxu0 0.0
        %3001 = vmatpush2.xpose.msra.mxu0 0.0
        %3002 = vmatprep.subr.mxu0 0.0
        %3003 = vmatpush2.xpose.msra.mxu0 0.0
        %3004 = vmatprep.subr.mxu0 0.0
        %3005 = vmatpush2.xpose.msra.mxu0 0.0
        %3006 = vmatprep.subr.mxu0 0.0
        %3007 = vmatpush2.xpose.msra.mxu0 0.0
        %3008 = vmatprep.mubr.f32.mxu0 0.0
        %v3009 = vand.u32 %v2786, 4294901760
        %v3010 = vsub.f32 %v2786, %v3009
        %3011 = vmatmul.mubr.f32.gmra.mxu0 %v3010
        %v3012 = vpop.f32.mrf.mxu0
        %v3013 = vadd.f32 %v2939, %v3012
        %v3014 = vpop.f32.mrf.mxu0
        %3015 = vdwg.mxu0
        %3016 = vmatprep.subr.mxu0 0.0
        %3017 = vmatpush1.xpose.msra.mxu0 0.0
        %3018 = vmatprep.subr.mxu0 0.0
        %3019 = vmatpush1.xpose.msra.mxu0 0.0
        %3020 = vmatprep.subr.mxu0 0.0
        %3021 = vmatpush1.xpose.msra.mxu0 0.0
        %3022 = vmatprep.subr.mxu0 0.0
        %3023 = vmatpush1.xpose.msra.mxu0 0.0
        %3024 = vmatprep.subr.mxu0 0.0
        %3025 = vmatpush1.xpose.msra.mxu0 0.0
        %3026 = vmatprep.subr.mxu0 0.0
        %3027 = vmatpush1.xpose.msra.mxu0 0.0
        %3028 = vmatprep.subr.mxu0 0.0
        %3029 = vmatpush1.xpose.msra.mxu0 0.0
        %3030 = vmatprep.subr.mxu0 0.0
        %3031 = vmatpush1.xpose.msra.mxu0 0.0
        %3032 = vmatprep.subr.mxu0 0.0
        %3033 = vmatpush1.xpose.msra.mxu0 0.0
        %3034 = vmatprep.subr.mxu0 0.0
        %3035 = vmatpush1.xpose.msra.mxu0 0.0
        %3036 = vmatprep.subr.mxu0 0.0
        %3037 = vmatpush1.xpose.msra.mxu0 0.0
        %3038 = vmatprep.subr.mxu0 0.0
        %3039 = vmatpush1.xpose.msra.mxu0 0.0
        %3040 = vmatprep.subr.mxu0 0.0
        %3041 = vmatpush1.xpose.msra.mxu0 0.0
        %3042 = vmatprep.subr.mxu0 0.0
        %3043 = vmatpush1.xpose.msra.mxu0 0.0
        %3044 = vmatprep.subr.mxu0 0.0
        %3045 = vmatpush1.xpose.msra.mxu0 0.0
        %3046 = vmatprep.subr.mxu0 0.0
        %v3047 = vand.u32 %v2788, 4294901760
        %3048 = vmatpush1.xpose.msra.mxu0 %v3047
        %3049 = vmatprep.subr.mxu0 0.0
        %3050 = vmatpush2.xpose.msra.mxu0 0.0
        %3051 = vmatprep.subr.mxu0 0.0
        %3052 = vmatpush2.xpose.msra.mxu0 0.0
        %3053 = vmatprep.subr.mxu0 0.0
        %3054 = vmatpush2.xpose.msra.mxu0 0.0
        %3055 = vmatprep.subr.mxu0 0.0
        %3056 = vmatpush2.xpose.msra.mxu0 0.0
        %3057 = vmatprep.subr.mxu0 0.0
        %3058 = vmatpush2.xpose.msra.mxu0 0.0
        %3059 = vmatprep.subr.mxu0 0.0
        %3060 = vmatpush2.xpose.msra.mxu0 0.0
        %3061 = vmatprep.subr.mxu0 0.0
        %3062 = vmatpush2.xpose.msra.mxu0 0.0
        %3063 = vmatprep.subr.mxu0 0.0
        %3064 = vmatpush2.xpose.msra.mxu0 0.0
        %3065 = vmatprep.subr.mxu0 0.0
        %3066 = vmatpush2.xpose.msra.mxu0 0.0
        %3067 = vmatprep.subr.mxu0 0.0
        %3068 = vmatpush2.xpose.msra.mxu0 0.0
        %3069 = vmatprep.subr.mxu0 0.0
        %3070 = vmatpush2.xpose.msra.mxu0 0.0
        %3071 = vmatprep.subr.mxu0 0.0
        %3072 = vmatpush2.xpose.msra.mxu0 0.0
        %3073 = vmatprep.subr.mxu0 0.0
        %3074 = vmatpush2.xpose.msra.mxu0 0.0
        %3075 = vmatprep.subr.mxu0 0.0
        %3076 = vmatpush2.xpose.msra.mxu0 0.0
        %3077 = vmatprep.subr.mxu0 0.0
        %3078 = vmatpush2.xpose.msra.mxu0 0.0
        %3079 = vmatprep.subr.mxu0 0.0
        %3080 = vmatpush2.xpose.msra.mxu0 0.0
        %3081 = vmatprep.mubr.f32.mxu0 0.0
        %v3082 = vand.u32 %v2786, 4294901760
        %v3083 = vsub.f32 %v2786, %v3082
        %v3084 = vand.u32 %v3083, 4294901760
        %3085 = vmatmul.mubr.f32.gmra.mxu0 %v3084
        %v3086 = vpop.f32.mrf.mxu0
        %v3087 = vadd.f32 %v3013, %v3086
        %v3088 = vpop.f32.mrf.mxu0
        %3089 = vdwg.mxu0
        %3090 = vmatprep.subr.mxu0 0.0
        %3091 = vmatpush1.xpose.msra.mxu0 0.0
        %3092 = vmatprep.subr.mxu0 0.0
        %3093 = vmatpush1.xpose.msra.mxu0 0.0
        %3094 = vmatprep.subr.mxu0 0.0
        %3095 = vmatpush1.xpose.msra.mxu0 0.0
        %3096 = vmatprep.subr.mxu0 0.0
        %3097 = vmatpush1.xpose.msra.mxu0 0.0
        %3098 = vmatprep.subr.mxu0 0.0
        %3099 = vmatpush1.xpose.msra.mxu0 0.0
        %3100 = vmatprep.subr.mxu0 0.0
        %3101 = vmatpush1.xpose.msra.mxu0 0.0
        %3102 = vmatprep.subr.mxu0 0.0
        %3103 = vmatpush1.xpose.msra.mxu0 0.0
        %3104 = vmatprep.subr.mxu0 0.0
        %3105 = vmatpush1.xpose.msra.mxu0 0.0
        %3106 = vmatprep.subr.mxu0 0.0
        %3107 = vmatpush1.xpose.msra.mxu0 0.0
        %3108 = vmatprep.subr.mxu0 0.0
        %3109 = vmatpush1.xpose.msra.mxu0 0.0
        %3110 = vmatprep.subr.mxu0 0.0
        %3111 = vmatpush1.xpose.msra.mxu0 0.0
        %3112 = vmatprep.subr.mxu0 0.0
        %3113 = vmatpush1.xpose.msra.mxu0 0.0
        %3114 = vmatprep.subr.mxu0 0.0
        %3115 = vmatpush1.xpose.msra.mxu0 0.0
        %3116 = vmatprep.subr.mxu0 0.0
        %3117 = vmatpush1.xpose.msra.mxu0 0.0
        %3118 = vmatprep.subr.mxu0 0.0
        %3119 = vmatpush1.xpose.msra.mxu0 0.0
        %3120 = vmatprep.subr.mxu0 0.0
        %v3121 = vand.u32 %v2788, 4294901760
        %v3122 = vsub.f32 %v2788, %v3121
        %v3123 = vand.u32 %v3122, 4294901760
        %3124 = vmatpush1.xpose.msra.mxu0 %v3123
        %3125 = vmatprep.subr.mxu0 0.0
        %3126 = vmatpush2.xpose.msra.mxu0 0.0
        %3127 = vmatprep.subr.mxu0 0.0
        %3128 = vmatpush2.xpose.msra.mxu0 0.0
        %3129 = vmatprep.subr.mxu0 0.0
        %3130 = vmatpush2.xpose.msra.mxu0 0.0
        %3131 = vmatprep.subr.mxu0 0.0
        %3132 = vmatpush2.xpose.msra.mxu0 0.0
        %3133 = vmatprep.subr.mxu0 0.0
        %3134 = vmatpush2.xpose.msra.mxu0 0.0
        %3135 = vmatprep.subr.mxu0 0.0
        %3136 = vmatpush2.xpose.msra.mxu0 0.0
        %3137 = vmatprep.subr.mxu0 0.0
        %3138 = vmatpush2.xpose.msra.mxu0 0.0
        %3139 = vmatprep.subr.mxu0 0.0
        %3140 = vmatpush2.xpose.msra.mxu0 0.0
        %3141 = vmatprep.subr.mxu0 0.0
        %3142 = vmatpush2.xpose.msra.mxu0 0.0
        %3143 = vmatprep.subr.mxu0 0.0
        %3144 = vmatpush2.xpose.msra.mxu0 0.0
        %3145 = vmatprep.subr.mxu0 0.0
        %3146 = vmatpush2.xpose.msra.mxu0 0.0
        %3147 = vmatprep.subr.mxu0 0.0
        %3148 = vmatpush2.xpose.msra.mxu0 0.0
        %3149 = vmatprep.subr.mxu0 0.0
        %3150 = vmatpush2.xpose.msra.mxu0 0.0
        %3151 = vmatprep.subr.mxu0 0.0
        %3152 = vmatpush2.xpose.msra.mxu0 0.0
        %3153 = vmatprep.subr.mxu0 0.0
        %3154 = vmatpush2.xpose.msra.mxu0 0.0
        %3155 = vmatprep.subr.mxu0 0.0
        %3156 = vmatpush2.xpose.msra.mxu0 0.0
        %3157 = vmatprep.mubr.f32.mxu0 0.0
        %v3158 = vand.u32 %v2786, 4294901760
        %3159 = vmatmul.mubr.f32.gmra.mxu0 %v3158
        %v3160 = vpop.f32.mrf.mxu0
        %v3161 = vadd.f32 %v3087, %v3160
        %v3162 = vpop.f32.mrf.mxu0
        %3163 = vdwg.mxu0
        %3164 = vmatprep.subr.mxu0 0.0
        %3165 = vmatpush1.xpose.msra.mxu0 0.0
        %3166 = vmatprep.subr.mxu0 0.0
        %3167 = vmatpush1.xpose.msra.mxu0 0.0
        %3168 = vmatprep.subr.mxu0 0.0
        %3169 = vmatpush1.xpose.msra.mxu0 0.0
        %3170 = vmatprep.subr.mxu0 0.0
        %3171 = vmatpush1.xpose.msra.mxu0 0.0
        %3172 = vmatprep.subr.mxu0 0.0
        %3173 = vmatpush1.xpose.msra.mxu0 0.0
        %3174 = vmatprep.subr.mxu0 0.0
        %3175 = vmatpush1.xpose.msra.mxu0 0.0
        %3176 = vmatprep.subr.mxu0 0.0
        %3177 = vmatpush1.xpose.msra.mxu0 0.0
        %3178 = vmatprep.subr.mxu0 0.0
        %3179 = vmatpush1.xpose.msra.mxu0 0.0
        %3180 = vmatprep.subr.mxu0 0.0
        %3181 = vmatpush1.xpose.msra.mxu0 0.0
        %3182 = vmatprep.subr.mxu0 0.0
        %3183 = vmatpush1.xpose.msra.mxu0 0.0
        %3184 = vmatprep.subr.mxu0 0.0
        %3185 = vmatpush1.xpose.msra.mxu0 0.0
        %3186 = vmatprep.subr.mxu0 0.0
        %3187 = vmatpush1.xpose.msra.mxu0 0.0
        %3188 = vmatprep.subr.mxu0 0.0
        %3189 = vmatpush1.xpose.msra.mxu0 0.0
        %3190 = vmatprep.subr.mxu0 0.0
        %3191 = vmatpush1.xpose.msra.mxu0 0.0
        %3192 = vmatprep.subr.mxu0 0.0
        %3193 = vmatpush1.xpose.msra.mxu0 0.0
        %3194 = vmatprep.subr.mxu0 0.0
        %v3195 = vand.u32 %v2788, 4294901760
        %3196 = vmatpush1.xpose.msra.mxu0 %v3195
        %3197 = vmatprep.subr.mxu0 0.0
        %3198 = vmatpush2.xpose.msra.mxu0 0.0
        %3199 = vmatprep.subr.mxu0 0.0
        %3200 = vmatpush2.xpose.msra.mxu0 0.0
        %3201 = vmatprep.subr.mxu0 0.0
        %3202 = vmatpush2.xpose.msra.mxu0 0.0
        %3203 = vmatprep.subr.mxu0 0.0
        %3204 = vmatpush2.xpose.msra.mxu0 0.0
        %3205 = vmatprep.subr.mxu0 0.0
        %3206 = vmatpush2.xpose.msra.mxu0 0.0
        %3207 = vmatprep.subr.mxu0 0.0
        %3208 = vmatpush2.xpose.msra.mxu0 0.0
        %3209 = vmatprep.subr.mxu0 0.0
        %3210 = vmatpush2.xpose.msra.mxu0 0.0
        %3211 = vmatprep.subr.mxu0 0.0
        %3212 = vmatpush2.xpose.msra.mxu0 0.0
        %3213 = vmatprep.subr.mxu0 0.0
        %3214 = vmatpush2.xpose.msra.mxu0 0.0
        %3215 = vmatprep.subr.mxu0 0.0
        %3216 = vmatpush2.xpose.msra.mxu0 0.0
        %3217 = vmatprep.subr.mxu0 0.0
        %3218 = vmatpush2.xpose.msra.mxu0 0.0
        %3219 = vmatprep.subr.mxu0 0.0
        %3220 = vmatpush2.xpose.msra.mxu0 0.0
        %3221 = vmatprep.subr.mxu0 0.0
        %3222 = vmatpush2.xpose.msra.mxu0 0.0
        %3223 = vmatprep.subr.mxu0 0.0
        %3224 = vmatpush2.xpose.msra.mxu0 0.0
        %3225 = vmatprep.subr.mxu0 0.0
        %3226 = vmatpush2.xpose.msra.mxu0 0.0
        %3227 = vmatprep.subr.mxu0 0.0
        %3228 = vmatpush2.xpose.msra.mxu0 0.0
        %3229 = vmatprep.mubr.f32.mxu0 0.0
        %v3230 = vand.u32 %v2786, 4294901760
        %3231 = vmatmul.mubr.f32.gmra.mxu0 %v3230
        %v3232 = vpop.f32.mrf.mxu0
        %v3233 = vadd.f32 %v3161, %v3232
        %v3234 = vpop.f32.mrf.mxu0
        %3235 = vdwg.mxu0
        %v3236 = vsel %vm950, %v3233, -inf
        %3237 = vmax.xlane.f32.xlu0 %v3236
        %v3238 = vpop.xlane.xlu0 %3237
        %v3239 = vsub.f32 %v3233, %v3238
        %v3240 = vmul.f32 %v3239, 1.442695
        %v3241 = vpow.pop %v3240
        %v3242 = vsel %vm950, %v3241, 0.0
        %3243 = vadd.xlane.f32.xlu0 %v3242
        %v3244 = vpop.xlane.xlu0 %3243
        %3245 = vrot.lane.b32.xlu0 %v930, 48
        %v3246 = vpop.permute.xlu0 %3245
        %v3249 = vsel %vm950, %v3241, 0
        %3251 = vmatprep.subr.mxu0 0.0
        %3252 = vmatpush1.msra.mxu0 0.0
        %3253 = vmatprep.subr.mxu0 0.0
        %3254 = vmatpush1.msra.mxu0 0.0
        %3255 = vmatprep.subr.mxu0 0.0
        %3256 = vmatpush1.msra.mxu0 0.0
        %3257 = vmatprep.subr.mxu0 0.0
        %3258 = vmatpush1.msra.mxu0 0.0
        %3259 = vmatprep.subr.mxu0 0.0
        %3260 = vmatpush1.msra.mxu0 0.0
        %3261 = vmatprep.subr.mxu0 0.0
        %3262 = vmatpush1.msra.mxu0 0.0
        %3263 = vmatprep.subr.mxu0 0.0
        %3264 = vmatpush1.msra.mxu0 0.0
        %3265 = vmatprep.subr.mxu0 0.0
        %3266 = vmatpush1.msra.mxu0 0.0
        %3267 = vmatprep.subr.mxu0 0.0
        %3268 = vmatpush1.msra.mxu0 0.0
        %3269 = vmatprep.subr.mxu0 0.0
        %3270 = vmatpush1.msra.mxu0 0.0
        %3271 = vmatprep.subr.mxu0 0.0
        %3272 = vmatpush1.msra.mxu0 0.0
        %3273 = vmatprep.subr.mxu0 0.0
        %3274 = vmatpush1.msra.mxu0 0.0
        %3275 = vmatprep.subr.mxu0 0.0
        %3276 = vmatpush1.msra.mxu0 0.0
        %3277 = vmatprep.subr.mxu0 0.0
        %3278 = vmatpush1.msra.mxu0 0.0
        %3279 = vmatprep.subr.mxu0 0.0
        %3280 = vmatpush1.msra.mxu0 0.0
        %3281 = vmatprep.subr.mxu0 0.0
        %v3282 = vand.u32 %v3246, 4294901760
        %3283 = vmatpush1.msra.mxu0 %v3282
        %3284 = vmatprep.subr.mxu0 0.0
        %3285 = vmatpush2.msra.mxu0 0.0
        %3286 = vmatprep.subr.mxu0 0.0
        %3287 = vmatpush2.msra.mxu0 0.0
        %3288 = vmatprep.subr.mxu0 0.0
        %3289 = vmatpush2.msra.mxu0 0.0
        %3290 = vmatprep.subr.mxu0 0.0
        %3291 = vmatpush2.msra.mxu0 0.0
        %3292 = vmatprep.subr.mxu0 0.0
        %3293 = vmatpush2.msra.mxu0 0.0
        %3294 = vmatprep.subr.mxu0 0.0
        %3295 = vmatpush2.msra.mxu0 0.0
        %3296 = vmatprep.subr.mxu0 0.0
        %3297 = vmatpush2.msra.mxu0 0.0
        %3298 = vmatprep.subr.mxu0 0.0
        %3299 = vmatpush2.msra.mxu0 0.0
        %3300 = vmatprep.subr.mxu0 0.0
        %3301 = vmatpush2.msra.mxu0 0.0
        %3302 = vmatprep.subr.mxu0 0.0
        %3303 = vmatpush2.msra.mxu0 0.0
        %3304 = vmatprep.subr.mxu0 0.0
        %3305 = vmatpush2.msra.mxu0 0.0
        %3306 = vmatprep.subr.mxu0 0.0
        %3307 = vmatpush2.msra.mxu0 0.0
        %3308 = vmatprep.subr.mxu0 0.0
        %3309 = vmatpush2.msra.mxu0 0.0
        %3310 = vmatprep.subr.mxu0 0.0
        %3311 = vmatpush2.msra.mxu0 0.0
        %3312 = vmatprep.subr.mxu0 0.0
        %3313 = vmatpush2.msra.mxu0 0.0
        %3314 = vmatprep.subr.mxu0 0.0
        %3315 = vmatpush2.msra.mxu0 0.0
        %3316 = vmatprep.mubr.f32.mxu0 0.0
        %v3317 = vand.u32 %v3249, 4294901760
        %v3318 = vsub.f32 %v3249, %v3317
        %v3319 = vand.u32 %v3318, 4294901760
        %v3320 = vsub.f32 %v3318, %v3319
        %v3321 = vand.u32 %v3320, 4294901760
        %3322 = vmatmul.mubr.f32.gmra.mxu0 %v3321
        %v3323 = vpop.f32.mrf.mxu0
        %v3324 = vadd.f32 0.0, %v3323
        %v3325 = vpop.f32.mrf.mxu0
        %3326 = vdwg.mxu0
        %3327 = vmatprep.subr.mxu0 0.0
        %3328 = vmatpush1.msra.mxu0 0.0
        %3329 = vmatprep.subr.mxu0 0.0
        %3330 = vmatpush1.msra.mxu0 0.0
        %3331 = vmatprep.subr.mxu0 0.0
        %3332 = vmatpush1.msra.mxu0 0.0
        %3333 = vmatprep.subr.mxu0 0.0
        %3334 = vmatpush1.msra.mxu0 0.0
        %3335 = vmatprep.subr.mxu0 0.0
        %3336 = vmatpush1.msra.mxu0 0.0
        %3337 = vmatprep.subr.mxu0 0.0
        %3338 = vmatpush1.msra.mxu0 0.0
        %3339 = vmatprep.subr.mxu0 0.0
        %3340 = vmatpush1.msra.mxu0 0.0
        %3341 = vmatprep.subr.mxu0 0.0
        %3342 = vmatpush1.msra.mxu0 0.0
        %3343 = vmatprep.subr.mxu0 0.0
        %3344 = vmatpush1.msra.mxu0 0.0
        %3345 = vmatprep.subr.mxu0 0.0
        %3346 = vmatpush1.msra.mxu0 0.0
        %3347 = vmatprep.subr.mxu0 0.0
        %3348 = vmatpush1.msra.mxu0 0.0
        %3349 = vmatprep.subr.mxu0 0.0
        %3350 = vmatpush1.msra.mxu0 0.0
        %3351 = vmatprep.subr.mxu0 0.0
        %3352 = vmatpush1.msra.mxu0 0.0
        %3353 = vmatprep.subr.mxu0 0.0
        %3354 = vmatpush1.msra.mxu0 0.0
        %3355 = vmatprep.subr.mxu0 0.0
        %3356 = vmatpush1.msra.mxu0 0.0
        %3357 = vmatprep.subr.mxu0 0.0
        %v3358 = vand.u32 %v3246, 4294901760
        %v3359 = vsub.f32 %v3246, %v3358
        %v3360 = vand.u32 %v3359, 4294901760
        %v3361 = vsub.f32 %v3359, %v3360
        %v3362 = vand.u32 %v3361, 4294901760
        %3363 = vmatpush1.msra.mxu0 %v3362
        %3364 = vmatprep.subr.mxu0 0.0
        %3365 = vmatpush2.msra.mxu0 0.0
        %3366 = vmatprep.subr.mxu0 0.0
        %3367 = vmatpush2.msra.mxu0 0.0
        %3368 = vmatprep.subr.mxu0 0.0
        %3369 = vmatpush2.msra.mxu0 0.0
        %3370 = vmatprep.subr.mxu0 0.0
        %3371 = vmatpush2.msra.mxu0 0.0
        %3372 = vmatprep.subr.mxu0 0.0
        %3373 = vmatpush2.msra.mxu0 0.0
        %3374 = vmatprep.subr.mxu0 0.0
        %3375 = vmatpush2.msra.mxu0 0.0
        %3376 = vmatprep.subr.mxu0 0.0
        %3377 = vmatpush2.msra.mxu0 0.0
        %3378 = vmatprep.subr.mxu0 0.0
        %3379 = vmatpush2.msra.mxu0 0.0
        %3380 = vmatprep.subr.mxu0 0.0
        %3381 = vmatpush2.msra.mxu0 0.0
        %3382 = vmatprep.subr.mxu0 0.0
        %3383 = vmatpush2.msra.mxu0 0.0
        %3384 = vmatprep.subr.mxu0 0.0
        %3385 = vmatpush2.msra.mxu0 0.0
        %3386 = vmatprep.subr.mxu0 0.0
        %3387 = vmatpush2.msra.mxu0 0.0
        %3388 = vmatprep.subr.mxu0 0.0
        %3389 = vmatpush2.msra.mxu0 0.0
        %3390 = vmatprep.subr.mxu0 0.0
        %3391 = vmatpush2.msra.mxu0 0.0
        %3392 = vmatprep.subr.mxu0 0.0
        %3393 = vmatpush2.msra.mxu0 0.0
        %3394 = vmatprep.subr.mxu0 0.0
        %3395 = vmatpush2.msra.mxu0 0.0
        %3396 = vmatprep.mubr.f32.mxu0 0.0
        %v3397 = vand.u32 %v3249, 4294901760
        %3398 = vmatmul.mubr.f32.gmra.mxu0 %v3397
        %v3399 = vpop.f32.mrf.mxu0
        %v3400 = vadd.f32 %v3324, %v3399
        %v3401 = vpop.f32.mrf.mxu0
        %3402 = vdwg.mxu0
        %3403 = vmatprep.subr.mxu0 0.0
        %3404 = vmatpush1.msra.mxu0 0.0
        %3405 = vmatprep.subr.mxu0 0.0
        %3406 = vmatpush1.msra.mxu0 0.0
        %3407 = vmatprep.subr.mxu0 0.0
        %3408 = vmatpush1.msra.mxu0 0.0
        %3409 = vmatprep.subr.mxu0 0.0
        %3410 = vmatpush1.msra.mxu0 0.0
        %3411 = vmatprep.subr.mxu0 0.0
        %3412 = vmatpush1.msra.mxu0 0.0
        %3413 = vmatprep.subr.mxu0 0.0
        %3414 = vmatpush1.msra.mxu0 0.0
        %3415 = vmatprep.subr.mxu0 0.0
        %3416 = vmatpush1.msra.mxu0 0.0
        %3417 = vmatprep.subr.mxu0 0.0
        %3418 = vmatpush1.msra.mxu0 0.0
        %3419 = vmatprep.subr.mxu0 0.0
        %3420 = vmatpush1.msra.mxu0 0.0
        %3421 = vmatprep.subr.mxu0 0.0
        %3422 = vmatpush1.msra.mxu0 0.0
        %3423 = vmatprep.subr.mxu0 0.0
        %3424 = vmatpush1.msra.mxu0 0.0
        %3425 = vmatprep.subr.mxu0 0.0
        %3426 = vmatpush1.msra.mxu0 0.0
        %3427 = vmatprep.subr.mxu0 0.0
        %3428 = vmatpush1.msra.mxu0 0.0
        %3429 = vmatprep.subr.mxu0 0.0
        %3430 = vmatpush1.msra.mxu0 0.0
        %3431 = vmatprep.subr.mxu0 0.0
        %3432 = vmatpush1.msra.mxu0 0.0
        %3433 = vmatprep.subr.mxu0 0.0
        %v3434 = vand.u32 %v3246, 4294901760
        %v3435 = vsub.f32 %v3246, %v3434
        %3436 = vmatpush1.msra.mxu0 %v3435
        %3437 = vmatprep.subr.mxu0 0.0
        %3438 = vmatpush2.msra.mxu0 0.0
        %3439 = vmatprep.subr.mxu0 0.0
        %3440 = vmatpush2.msra.mxu0 0.0
        %3441 = vmatprep.subr.mxu0 0.0
        %3442 = vmatpush2.msra.mxu0 0.0
        %3443 = vmatprep.subr.mxu0 0.0
        %3444 = vmatpush2.msra.mxu0 0.0
        %3445 = vmatprep.subr.mxu0 0.0
        %3446 = vmatpush2.msra.mxu0 0.0
        %3447 = vmatprep.subr.mxu0 0.0
        %3448 = vmatpush2.msra.mxu0 0.0
        %3449 = vmatprep.subr.mxu0 0.0
        %3450 = vmatpush2.msra.mxu0 0.0
        %3451 = vmatprep.subr.mxu0 0.0
        %3452 = vmatpush2.msra.mxu0 0.0
        %3453 = vmatprep.subr.mxu0 0.0
        %3454 = vmatpush2.msra.mxu0 0.0
        %3455 = vmatprep.subr.mxu0 0.0
        %3456 = vmatpush2.msra.mxu0 0.0
        %3457 = vmatprep.subr.mxu0 0.0
        %3458 = vmatpush2.msra.mxu0 0.0
        %3459 = vmatprep.subr.mxu0 0.0
        %3460 = vmatpush2.msra.mxu0 0.0
        %3461 = vmatprep.subr.mxu0 0.0
        %3462 = vmatpush2.msra.mxu0 0.0
        %3463 = vmatprep.subr.mxu0 0.0
        %3464 = vmatpush2.msra.mxu0 0.0
        %3465 = vmatprep.subr.mxu0 0.0
        %3466 = vmatpush2.msra.mxu0 0.0
        %3467 = vmatprep.subr.mxu0 0.0
        %3468 = vmatpush2.msra.mxu0 0.0
        %3469 = vmatprep.mubr.f32.mxu0 0.0
        %v3470 = vand.u32 %v3249, 4294901760
        %v3471 = vsub.f32 %v3249, %v3470
        %3472 = vmatmul.mubr.f32.gmra.mxu0 %v3471
        %v3473 = vpop.f32.mrf.mxu0
        %v3474 = vadd.f32 %v3400, %v3473
        %v3475 = vpop.f32.mrf.mxu0
        %3476 = vdwg.mxu0
        %3477 = vmatprep.subr.mxu0 0.0
        %3478 = vmatpush1.msra.mxu0 0.0
        %3479 = vmatprep.subr.mxu0 0.0
        %3480 = vmatpush1.msra.mxu0 0.0
        %3481 = vmatprep.subr.mxu0 0.0
        %3482 = vmatpush1.msra.mxu0 0.0
        %3483 = vmatprep.subr.mxu0 0.0
        %3484 = vmatpush1.msra.mxu0 0.0
        %3485 = vmatprep.subr.mxu0 0.0
        %3486 = vmatpush1.msra.mxu0 0.0
        %3487 = vmatprep.subr.mxu0 0.0
        %3488 = vmatpush1.msra.mxu0 0.0
        %3489 = vmatprep.subr.mxu0 0.0
        %3490 = vmatpush1.msra.mxu0 0.0
        %3491 = vmatprep.subr.mxu0 0.0
        %3492 = vmatpush1.msra.mxu0 0.0
        %3493 = vmatprep.subr.mxu0 0.0
        %3494 = vmatpush1.msra.mxu0 0.0
        %3495 = vmatprep.subr.mxu0 0.0
        %3496 = vmatpush1.msra.mxu0 0.0
        %3497 = vmatprep.subr.mxu0 0.0
        %3498 = vmatpush1.msra.mxu0 0.0
        %3499 = vmatprep.subr.mxu0 0.0
        %3500 = vmatpush1.msra.mxu0 0.0
        %3501 = vmatprep.subr.mxu0 0.0
        %3502 = vmatpush1.msra.mxu0 0.0
        %3503 = vmatprep.subr.mxu0 0.0
        %3504 = vmatpush1.msra.mxu0 0.0
        %3505 = vmatprep.subr.mxu0 0.0
        %3506 = vmatpush1.msra.mxu0 0.0
        %3507 = vmatprep.subr.mxu0 0.0
        %v3508 = vand.u32 %v3246, 4294901760
        %3509 = vmatpush1.msra.mxu0 %v3508
        %3510 = vmatprep.subr.mxu0 0.0
        %3511 = vmatpush2.msra.mxu0 0.0
        %3512 = vmatprep.subr.mxu0 0.0
        %3513 = vmatpush2.msra.mxu0 0.0
        %3514 = vmatprep.subr.mxu0 0.0
        %3515 = vmatpush2.msra.mxu0 0.0
        %3516 = vmatprep.subr.mxu0 0.0
        %3517 = vmatpush2.msra.mxu0 0.0
        %3518 = vmatprep.subr.mxu0 0.0
        %3519 = vmatpush2.msra.mxu0 0.0
        %3520 = vmatprep.subr.mxu0 0.0
        %3521 = vmatpush2.msra.mxu0 0.0
        %3522 = vmatprep.subr.mxu0 0.0
        %3523 = vmatpush2.msra.mxu0 0.0
        %3524 = vmatprep.subr.mxu0 0.0
        %3525 = vmatpush2.msra.mxu0 0.0
        %3526 = vmatprep.subr.mxu0 0.0
        %3527 = vmatpush2.msra.mxu0 0.0
        %3528 = vmatprep.subr.mxu0 0.0
        %3529 = vmatpush2.msra.mxu0 0.0
        %3530 = vmatprep.subr.mxu0 0.0
        %3531 = vmatpush2.msra.mxu0 0.0
        %3532 = vmatprep.subr.mxu0 0.0
        %3533 = vmatpush2.msra.mxu0 0.0
        %3534 = vmatprep.subr.mxu0 0.0
        %3535 = vmatpush2.msra.mxu0 0.0
        %3536 = vmatprep.subr.mxu0 0.0
        %3537 = vmatpush2.msra.mxu0 0.0
        %3538 = vmatprep.subr.mxu0 0.0
        %3539 = vmatpush2.msra.mxu0 0.0
        %3540 = vmatprep.subr.mxu0 0.0
        %3541 = vmatpush2.msra.mxu0 0.0
        %3542 = vmatprep.mubr.f32.mxu0 0.0
        %v3543 = vand.u32 %v3249, 4294901760
        %v3544 = vsub.f32 %v3249, %v3543
        %v3545 = vand.u32 %v3544, 4294901760
        %3546 = vmatmul.mubr.f32.gmra.mxu0 %v3545
        %v3547 = vpop.f32.mrf.mxu0
        %v3548 = vadd.f32 %v3474, %v3547
        %v3549 = vpop.f32.mrf.mxu0
        %3550 = vdwg.mxu0
        %3551 = vmatprep.subr.mxu0 0.0
        %3552 = vmatpush1.msra.mxu0 0.0
        %3553 = vmatprep.subr.mxu0 0.0
        %3554 = vmatpush1.msra.mxu0 0.0
        %3555 = vmatprep.subr.mxu0 0.0
        %3556 = vmatpush1.msra.mxu0 0.0
        %3557 = vmatprep.subr.mxu0 0.0
        %3558 = vmatpush1.msra.mxu0 0.0
        %3559 = vmatprep.subr.mxu0 0.0
        %3560 = vmatpush1.msra.mxu0 0.0
        %3561 = vmatprep.subr.mxu0 0.0
        %3562 = vmatpush1.msra.mxu0 0.0
        %3563 = vmatprep.subr.mxu0 0.0
        %3564 = vmatpush1.msra.mxu0 0.0
        %3565 = vmatprep.subr.mxu0 0.0
        %3566 = vmatpush1.msra.mxu0 0.0
        %3567 = vmatprep.subr.mxu0 0.0
        %3568 = vmatpush1.msra.mxu0 0.0
        %3569 = vmatprep.subr.mxu0 0.0
        %3570 = vmatpush1.msra.mxu0 0.0
        %3571 = vmatprep.subr.mxu0 0.0
        %3572 = vmatpush1.msra.mxu0 0.0
        %3573 = vmatprep.subr.mxu0 0.0
        %3574 = vmatpush1.msra.mxu0 0.0
        %3575 = vmatprep.subr.mxu0 0.0
        %3576 = vmatpush1.msra.mxu0 0.0
        %3577 = vmatprep.subr.mxu0 0.0
        %3578 = vmatpush1.msra.mxu0 0.0
        %3579 = vmatprep.subr.mxu0 0.0
        %3580 = vmatpush1.msra.mxu0 0.0
        %3581 = vmatprep.subr.mxu0 0.0
        %v3582 = vand.u32 %v3246, 4294901760
        %v3583 = vsub.f32 %v3246, %v3582
        %v3584 = vand.u32 %v3583, 4294901760
        %3585 = vmatpush1.msra.mxu0 %v3584
        %3586 = vmatprep.subr.mxu0 0.0
        %3587 = vmatpush2.msra.mxu0 0.0
        %3588 = vmatprep.subr.mxu0 0.0
        %3589 = vmatpush2.msra.mxu0 0.0
        %3590 = vmatprep.subr.mxu0 0.0
        %3591 = vmatpush2.msra.mxu0 0.0
        %3592 = vmatprep.subr.mxu0 0.0
        %3593 = vmatpush2.msra.mxu0 0.0
        %3594 = vmatprep.subr.mxu0 0.0
        %3595 = vmatpush2.msra.mxu0 0.0
        %3596 = vmatprep.subr.mxu0 0.0
        %3597 = vmatpush2.msra.mxu0 0.0
        %3598 = vmatprep.subr.mxu0 0.0
        %3599 = vmatpush2.msra.mxu0 0.0
        %3600 = vmatprep.subr.mxu0 0.0
        %3601 = vmatpush2.msra.mxu0 0.0
        %3602 = vmatprep.subr.mxu0 0.0
        %3603 = vmatpush2.msra.mxu0 0.0
        %3604 = vmatprep.subr.mxu0 0.0
        %3605 = vmatpush2.msra.mxu0 0.0
        %3606 = vmatprep.subr.mxu0 0.0
        %3607 = vmatpush2.msra.mxu0 0.0
        %3608 = vmatprep.subr.mxu0 0.0
        %3609 = vmatpush2.msra.mxu0 0.0
        %3610 = vmatprep.subr.mxu0 0.0
        %3611 = vmatpush2.msra.mxu0 0.0
        %3612 = vmatprep.subr.mxu0 0.0
        %3613 = vmatpush2.msra.mxu0 0.0
        %3614 = vmatprep.subr.mxu0 0.0
        %3615 = vmatpush2.msra.mxu0 0.0
        %3616 = vmatprep.subr.mxu0 0.0
        %3617 = vmatpush2.msra.mxu0 0.0
        %3618 = vmatprep.mubr.f32.mxu0 0.0
        %v3619 = vand.u32 %v3249, 4294901760
        %3620 = vmatmul.mubr.f32.gmra.mxu0 %v3619
        %v3621 = vpop.f32.mrf.mxu0
        %v3622 = vadd.f32 %v3548, %v3621
        %v3623 = vpop.f32.mrf.mxu0
        %3624 = vdwg.mxu0
        %3625 = vmatprep.subr.mxu0 0.0
        %3626 = vmatpush1.msra.mxu0 0.0
        %3627 = vmatprep.subr.mxu0 0.0
        %3628 = vmatpush1.msra.mxu0 0.0
        %3629 = vmatprep.subr.mxu0 0.0
        %3630 = vmatpush1.msra.mxu0 0.0
        %3631 = vmatprep.subr.mxu0 0.0
        %3632 = vmatpush1.msra.mxu0 0.0
        %3633 = vmatprep.subr.mxu0 0.0
        %3634 = vmatpush1.msra.mxu0 0.0
        %3635 = vmatprep.subr.mxu0 0.0
        %3636 = vmatpush1.msra.mxu0 0.0
        %3637 = vmatprep.subr.mxu0 0.0
        %3638 = vmatpush1.msra.mxu0 0.0
        %3639 = vmatprep.subr.mxu0 0.0
        %3640 = vmatpush1.msra.mxu0 0.0
        %3641 = vmatprep.subr.mxu0 0.0
        %3642 = vmatpush1.msra.mxu0 0.0
        %3643 = vmatprep.subr.mxu0 0.0
        %3644 = vmatpush1.msra.mxu0 0.0
        %3645 = vmatprep.subr.mxu0 0.0
        %3646 = vmatpush1.msra.mxu0 0.0
        %3647 = vmatprep.subr.mxu0 0.0
        %3648 = vmatpush1.msra.mxu0 0.0
        %3649 = vmatprep.subr.mxu0 0.0
        %3650 = vmatpush1.msra.mxu0 0.0
        %3651 = vmatprep.subr.mxu0 0.0
        %3652 = vmatpush1.msra.mxu0 0.0
        %3653 = vmatprep.subr.mxu0 0.0
        %3654 = vmatpush1.msra.mxu0 0.0
        %3655 = vmatprep.subr.mxu0 0.0
        %v3656 = vand.u32 %v3246, 4294901760
        %3657 = vmatpush1.msra.mxu0 %v3656
        %3658 = vmatprep.subr.mxu0 0.0
        %3659 = vmatpush2.msra.mxu0 0.0
        %3660 = vmatprep.subr.mxu0 0.0
        %3661 = vmatpush2.msra.mxu0 0.0
        %3662 = vmatprep.subr.mxu0 0.0
        %3663 = vmatpush2.msra.mxu0 0.0
        %3664 = vmatprep.subr.mxu0 0.0
        %3665 = vmatpush2.msra.mxu0 0.0
        %3666 = vmatprep.subr.mxu0 0.0
        %3667 = vmatpush2.msra.mxu0 0.0
        %3668 = vmatprep.subr.mxu0 0.0
        %3669 = vmatpush2.msra.mxu0 0.0
        %3670 = vmatprep.subr.mxu0 0.0
        %3671 = vmatpush2.msra.mxu0 0.0
        %3672 = vmatprep.subr.mxu0 0.0
        %3673 = vmatpush2.msra.mxu0 0.0
        %3674 = vmatprep.subr.mxu0 0.0
        %3675 = vmatpush2.msra.mxu0 0.0
        %3676 = vmatprep.subr.mxu0 0.0
        %3677 = vmatpush2.msra.mxu0 0.0
        %3678 = vmatprep.subr.mxu0 0.0
        %3679 = vmatpush2.msra.mxu0 0.0
        %3680 = vmatprep.subr.mxu0 0.0
        %3681 = vmatpush2.msra.mxu0 0.0
        %3682 = vmatprep.subr.mxu0 0.0
        %3683 = vmatpush2.msra.mxu0 0.0
        %3684 = vmatprep.subr.mxu0 0.0
        %3685 = vmatpush2.msra.mxu0 0.0
        %3686 = vmatprep.subr.mxu0 0.0
        %3687 = vmatpush2.msra.mxu0 0.0
        %3688 = vmatprep.subr.mxu0 0.0
        %3689 = vmatpush2.msra.mxu0 0.0
        %3690 = vmatprep.mubr.f32.mxu0 0.0
        %v3691 = vand.u32 %v3249, 4294901760
        %3692 = vmatmul.mubr.f32.gmra.mxu0 %v3691
        %v3693 = vpop.f32.mrf.mxu0
        %v3694 = vadd.f32 %v3622, %v3693
        %v3695 = vpop.f32.mrf.mxu0
        %3696 = vdwg.mxu0
        %v3697 = vrcp.pop %v3244
        %v3698 = vmul.f32 %v3694, %v3697
        %3699 = vrot.lane.b32.xlu0 %v933, 104
        %v3700 = vpop.permute.xlu0 %3699
        %3701 = vrot.lane.b32.xlu0 %v930, 72
        %v3702 = vpop.permute.xlu0 %3701
        %v3703 = vsel %vm950, %v3700, 0
        %v3705 = vsel %vm950, %v3702, 0
        %3707 = vmatprep.subr.mxu0 0.0
        %3708 = vmatpush1.xpose.msra.mxu0 0.0
        %3709 = vmatprep.subr.mxu0 0.0
        %3710 = vmatpush1.xpose.msra.mxu0 0.0
        %3711 = vmatprep.subr.mxu0 0.0
        %3712 = vmatpush1.xpose.msra.mxu0 0.0
        %3713 = vmatprep.subr.mxu0 0.0
        %3714 = vmatpush1.xpose.msra.mxu0 0.0
        %3715 = vmatprep.subr.mxu0 0.0
        %3716 = vmatpush1.xpose.msra.mxu0 0.0
        %3717 = vmatprep.subr.mxu0 0.0
        %3718 = vmatpush1.xpose.msra.mxu0 0.0
        %3719 = vmatprep.subr.mxu0 0.0
        %3720 = vmatpush1.xpose.msra.mxu0 0.0
        %3721 = vmatprep.subr.mxu0 0.0
        %3722 = vmatpush1.xpose.msra.mxu0 0.0
        %3723 = vmatprep.subr.mxu0 0.0
        %3724 = vmatpush1.xpose.msra.mxu0 0.0
        %3725 = vmatprep.subr.mxu0 0.0
        %3726 = vmatpush1.xpose.msra.mxu0 0.0
        %3727 = vmatprep.subr.mxu0 0.0
        %3728 = vmatpush1.xpose.msra.mxu0 0.0
        %3729 = vmatprep.subr.mxu0 0.0
        %3730 = vmatpush1.xpose.msra.mxu0 0.0
        %3731 = vmatprep.subr.mxu0 0.0
        %3732 = vmatpush1.xpose.msra.mxu0 0.0
        %3733 = vmatprep.subr.mxu0 0.0
        %3734 = vmatpush1.xpose.msra.mxu0 0.0
        %3735 = vmatprep.subr.mxu0 0.0
        %3736 = vmatpush1.xpose.msra.mxu0 0.0
        %3737 = vmatprep.subr.mxu0 0.0
        %v3738 = vand.u32 %v3705, 4294901760
        %3739 = vmatpush1.xpose.msra.mxu0 %v3738
        %3740 = vmatprep.subr.mxu0 0.0
        %3741 = vmatpush2.xpose.msra.mxu0 0.0
        %3742 = vmatprep.subr.mxu0 0.0
        %3743 = vmatpush2.xpose.msra.mxu0 0.0
        %3744 = vmatprep.subr.mxu0 0.0
        %3745 = vmatpush2.xpose.msra.mxu0 0.0
        %3746 = vmatprep.subr.mxu0 0.0
        %3747 = vmatpush2.xpose.msra.mxu0 0.0
        %3748 = vmatprep.subr.mxu0 0.0
        %3749 = vmatpush2.xpose.msra.mxu0 0.0
        %3750 = vmatprep.subr.mxu0 0.0
        %3751 = vmatpush2.xpose.msra.mxu0 0.0
        %3752 = vmatprep.subr.mxu0 0.0
        %3753 = vmatpush2.xpose.msra.mxu0 0.0
        %3754 = vmatprep.subr.mxu0 0.0
        %3755 = vmatpush2.xpose.msra.mxu0 0.0
        %3756 = vmatprep.subr.mxu0 0.0
        %3757 = vmatpush2.xpose.msra.mxu0 0.0
        %3758 = vmatprep.subr.mxu0 0.0
        %3759 = vmatpush2.xpose.msra.mxu0 0.0
        %3760 = vmatprep.subr.mxu0 0.0
        %3761 = vmatpush2.xpose.msra.mxu0 0.0
        %3762 = vmatprep.subr.mxu0 0.0
        %3763 = vmatpush2.xpose.msra.mxu0 0.0
        %3764 = vmatprep.subr.mxu0 0.0
        %3765 = vmatpush2.xpose.msra.mxu0 0.0
        %3766 = vmatprep.subr.mxu0 0.0
        %3767 = vmatpush2.xpose.msra.mxu0 0.0
        %3768 = vmatprep.subr.mxu0 0.0
        %3769 = vmatpush2.xpose.msra.mxu0 0.0
        %3770 = vmatprep.subr.mxu0 0.0
        %3771 = vmatpush2.xpose.msra.mxu0 0.0
        %3772 = vmatprep.mubr.f32.mxu0 0.0
        %v3773 = vand.u32 %v3703, 4294901760
        %v3774 = vsub.f32 %v3703, %v3773
        %v3775 = vand.u32 %v3774, 4294901760
        %v3776 = vsub.f32 %v3774, %v3775
        %v3777 = vand.u32 %v3776, 4294901760
        %3778 = vmatmul.mubr.f32.gmra.mxu0 %v3777
        %v3779 = vpop.f32.mrf.mxu0
        %v3780 = vadd.f32 %v946, %v3779
        %v3781 = vpop.f32.mrf.mxu0
        %3782 = vdwg.mxu0
        %3783 = vmatprep.subr.mxu0 0.0
        %3784 = vmatpush1.xpose.msra.mxu0 0.0
        %3785 = vmatprep.subr.mxu0 0.0
        %3786 = vmatpush1.xpose.msra.mxu0 0.0
        %3787 = vmatprep.subr.mxu0 0.0
        %3788 = vmatpush1.xpose.msra.mxu0 0.0
        %3789 = vmatprep.subr.mxu0 0.0
        %3790 = vmatpush1.xpose.msra.mxu0 0.0
        %3791 = vmatprep.subr.mxu0 0.0
        %3792 = vmatpush1.xpose.msra.mxu0 0.0
        %3793 = vmatprep.subr.mxu0 0.0
        %3794 = vmatpush1.xpose.msra.mxu0 0.0
        %3795 = vmatprep.subr.mxu0 0.0
        %3796 = vmatpush1.xpose.msra.mxu0 0.0
        %3797 = vmatprep.subr.mxu0 0.0
        %3798 = vmatpush1.xpose.msra.mxu0 0.0
        %3799 = vmatprep.subr.mxu0 0.0
        %3800 = vmatpush1.xpose.msra.mxu0 0.0
        %3801 = vmatprep.subr.mxu0 0.0
        %3802 = vmatpush1.xpose.msra.mxu0 0.0
        %3803 = vmatprep.subr.mxu0 0.0
        %3804 = vmatpush1.xpose.msra.mxu0 0.0
        %3805 = vmatprep.subr.mxu0 0.0
        %3806 = vmatpush1.xpose.msra.mxu0 0.0
        %3807 = vmatprep.subr.mxu0 0.0
        %3808 = vmatpush1.xpose.msra.mxu0 0.0
        %3809 = vmatprep.subr.mxu0 0.0
        %3810 = vmatpush1.xpose.msra.mxu0 0.0
        %3811 = vmatprep.subr.mxu0 0.0
        %3812 = vmatpush1.xpose.msra.mxu0 0.0
        %3813 = vmatprep.subr.mxu0 0.0
        %v3814 = vand.u32 %v3705, 4294901760
        %v3815 = vsub.f32 %v3705, %v3814
        %v3816 = vand.u32 %v3815, 4294901760
        %v3817 = vsub.f32 %v3815, %v3816
        %v3818 = vand.u32 %v3817, 4294901760
        %3819 = vmatpush1.xpose.msra.mxu0 %v3818
        %3820 = vmatprep.subr.mxu0 0.0
        %3821 = vmatpush2.xpose.msra.mxu0 0.0
        %3822 = vmatprep.subr.mxu0 0.0
        %3823 = vmatpush2.xpose.msra.mxu0 0.0
        %3824 = vmatprep.subr.mxu0 0.0
        %3825 = vmatpush2.xpose.msra.mxu0 0.0
        %3826 = vmatprep.subr.mxu0 0.0
        %3827 = vmatpush2.xpose.msra.mxu0 0.0
        %3828 = vmatprep.subr.mxu0 0.0
        %3829 = vmatpush2.xpose.msra.mxu0 0.0
        %3830 = vmatprep.subr.mxu0 0.0
        %3831 = vmatpush2.xpose.msra.mxu0 0.0
        %3832 = vmatprep.subr.mxu0 0.0
        %3833 = vmatpush2.xpose.msra.mxu0 0.0
        %3834 = vmatprep.subr.mxu0 0.0
        %3835 = vmatpush2.xpose.msra.mxu0 0.0
        %3836 = vmatprep.subr.mxu0 0.0
        %3837 = vmatpush2.xpose.msra.mxu0 0.0
        %3838 = vmatprep.subr.mxu0 0.0
        %3839 = vmatpush2.xpose.msra.mxu0 0.0
        %3840 = vmatprep.subr.mxu0 0.0
        %3841 = vmatpush2.xpose.msra.mxu0 0.0
        %3842 = vmatprep.subr.mxu0 0.0
        %3843 = vmatpush2.xpose.msra.mxu0 0.0
        %3844 = vmatprep.subr.mxu0 0.0
        %3845 = vmatpush2.xpose.msra.mxu0 0.0
        %3846 = vmatprep.subr.mxu0 0.0
        %3847 = vmatpush2.xpose.msra.mxu0 0.0
        %3848 = vmatprep.subr.mxu0 0.0
        %3849 = vmatpush2.xpose.msra.mxu0 0.0
        %3850 = vmatprep.subr.mxu0 0.0
        %3851 = vmatpush2.xpose.msra.mxu0 0.0
        %3852 = vmatprep.mubr.f32.mxu0 0.0
        %v3853 = vand.u32 %v3703, 4294901760
        %3854 = vmatmul.mubr.f32.gmra.mxu0 %v3853
        %v3855 = vpop.f32.mrf.mxu0
        %v3856 = vadd.f32 %v3780, %v3855
        %v3857 = vpop.f32.mrf.mxu0
        %3858 = vdwg.mxu0
        %3859 = vmatprep.subr.mxu0 0.0
        %3860 = vmatpush1.xpose.msra.mxu0 0.0
        %3861 = vmatprep.subr.mxu0 0.0
        %3862 = vmatpush1.xpose.msra.mxu0 0.0
        %3863 = vmatprep.subr.mxu0 0.0
        %3864 = vmatpush1.xpose.msra.mxu0 0.0
        %3865 = vmatprep.subr.mxu0 0.0
        %3866 = vmatpush1.xpose.msra.mxu0 0.0
        %3867 = vmatprep.subr.mxu0 0.0
        %3868 = vmatpush1.xpose.msra.mxu0 0.0
        %3869 = vmatprep.subr.mxu0 0.0
        %3870 = vmatpush1.xpose.msra.mxu0 0.0
        %3871 = vmatprep.subr.mxu0 0.0
        %3872 = vmatpush1.xpose.msra.mxu0 0.0
        %3873 = vmatprep.subr.mxu0 0.0
        %3874 = vmatpush1.xpose.msra.mxu0 0.0
        %3875 = vmatprep.subr.mxu0 0.0
        %3876 = vmatpush1.xpose.msra.mxu0 0.0
        %3877 = vmatprep.subr.mxu0 0.0
        %3878 = vmatpush1.xpose.msra.mxu0 0.0
        %3879 = vmatprep.subr.mxu0 0.0
        %3880 = vmatpush1.xpose.msra.mxu0 0.0
        %3881 = vmatprep.subr.mxu0 0.0
        %3882 = vmatpush1.xpose.msra.mxu0 0.0
        %3883 = vmatprep.subr.mxu0 0.0
        %3884 = vmatpush1.xpose.msra.mxu0 0.0
        %3885 = vmatprep.subr.mxu0 0.0
        %3886 = vmatpush1.xpose.msra.mxu0 0.0
        %3887 = vmatprep.subr.mxu0 0.0
        %3888 = vmatpush1.xpose.msra.mxu0 0.0
        %3889 = vmatprep.subr.mxu0 0.0
        %v3890 = vand.u32 %v3705, 4294901760
        %v3891 = vsub.f32 %v3705, %v3890
        %3892 = vmatpush1.xpose.msra.mxu0 %v3891
        %3893 = vmatprep.subr.mxu0 0.0
        %3894 = vmatpush2.xpose.msra.mxu0 0.0
        %3895 = vmatprep.subr.mxu0 0.0
        %3896 = vmatpush2.xpose.msra.mxu0 0.0
        %3897 = vmatprep.subr.mxu0 0.0
        %3898 = vmatpush2.xpose.msra.mxu0 0.0
        %3899 = vmatprep.subr.mxu0 0.0
        %3900 = vmatpush2.xpose.msra.mxu0 0.0
        %3901 = vmatprep.subr.mxu0 0.0
        %3902 = vmatpush2.xpose.msra.mxu0 0.0
        %3903 = vmatprep.subr.mxu0 0.0
        %3904 = vmatpush2.xpose.msra.mxu0 0.0
        %3905 = vmatprep.subr.mxu0 0.0
        %3906 = vmatpush2.xpose.msra.mxu0 0.0
        %3907 = vmatprep.subr.mxu0 0.0
        %3908 = vmatpush2.xpose.msra.mxu0 0.0
        %3909 = vmatprep.subr.mxu0 0.0
        %3910 = vmatpush2.xpose.msra.mxu0 0.0
        %3911 = vmatprep.subr.mxu0 0.0
        %3912 = vmatpush2.xpose.msra.mxu0 0.0
        %3913 = vmatprep.subr.mxu0 0.0
        %3914 = vmatpush2.xpose.msra.mxu0 0.0
        %3915 = vmatprep.subr.mxu0 0.0
        %3916 = vmatpush2.xpose.msra.mxu0 0.0
        %3917 = vmatprep.subr.mxu0 0.0
        %3918 = vmatpush2.xpose.msra.mxu0 0.0
        %3919 = vmatprep.subr.mxu0 0.0
        %3920 = vmatpush2.xpose.msra.mxu0 0.0
        %3921 = vmatprep.subr.mxu0 0.0
        %3922 = vmatpush2.xpose.msra.mxu0 0.0
        %3923 = vmatprep.subr.mxu0 0.0
        %3924 = vmatpush2.xpose.msra.mxu0 0.0
        %3925 = vmatprep.mubr.f32.mxu0 0.0
        %v3926 = vand.u32 %v3703, 4294901760
        %v3927 = vsub.f32 %v3703, %v3926
        %3928 = vmatmul.mubr.f32.gmra.mxu0 %v3927
        %v3929 = vpop.f32.mrf.mxu0
        %v3930 = vadd.f32 %v3856, %v3929
        %v3931 = vpop.f32.mrf.mxu0
        %3932 = vdwg.mxu0
        %3933 = vmatprep.subr.mxu0 0.0
        %3934 = vmatpush1.xpose.msra.mxu0 0.0
        %3935 = vmatprep.subr.mxu0 0.0
        %3936 = vmatpush1.xpose.msra.mxu0 0.0
        %3937 = vmatprep.subr.mxu0 0.0
        %3938 = vmatpush1.xpose.msra.mxu0 0.0
        %3939 = vmatprep.subr.mxu0 0.0
        %3940 = vmatpush1.xpose.msra.mxu0 0.0
        %3941 = vmatprep.subr.mxu0 0.0
        %3942 = vmatpush1.xpose.msra.mxu0 0.0
        %3943 = vmatprep.subr.mxu0 0.0
        %3944 = vmatpush1.xpose.msra.mxu0 0.0
        %3945 = vmatprep.subr.mxu0 0.0
        %3946 = vmatpush1.xpose.msra.mxu0 0.0
        %3947 = vmatprep.subr.mxu0 0.0
        %3948 = vmatpush1.xpose.msra.mxu0 0.0
        %3949 = vmatprep.subr.mxu0 0.0
        %3950 = vmatpush1.xpose.msra.mxu0 0.0
        %3951 = vmatprep.subr.mxu0 0.0
        %3952 = vmatpush1.xpose.msra.mxu0 0.0
        %3953 = vmatprep.subr.mxu0 0.0
        %3954 = vmatpush1.xpose.msra.mxu0 0.0
        %3955 = vmatprep.subr.mxu0 0.0
        %3956 = vmatpush1.xpose.msra.mxu0 0.0
        %3957 = vmatprep.subr.mxu0 0.0
        %3958 = vmatpush1.xpose.msra.mxu0 0.0
        %3959 = vmatprep.subr.mxu0 0.0
        %3960 = vmatpush1.xpose.msra.mxu0 0.0
        %3961 = vmatprep.subr.mxu0 0.0
        %3962 = vmatpush1.xpose.msra.mxu0 0.0
        %3963 = vmatprep.subr.mxu0 0.0
        %v3964 = vand.u32 %v3705, 4294901760
        %3965 = vmatpush1.xpose.msra.mxu0 %v3964
        %3966 = vmatprep.subr.mxu0 0.0
        %3967 = vmatpush2.xpose.msra.mxu0 0.0
        %3968 = vmatprep.subr.mxu0 0.0
        %3969 = vmatpush2.xpose.msra.mxu0 0.0
        %3970 = vmatprep.subr.mxu0 0.0
        %3971 = vmatpush2.xpose.msra.mxu0 0.0
        %3972 = vmatprep.subr.mxu0 0.0
        %3973 = vmatpush2.xpose.msra.mxu0 0.0
        %3974 = vmatprep.subr.mxu0 0.0
        %3975 = vmatpush2.xpose.msra.mxu0 0.0
        %3976 = vmatprep.subr.mxu0 0.0
        %3977 = vmatpush2.xpose.msra.mxu0 0.0
        %3978 = vmatprep.subr.mxu0 0.0
        %3979 = vmatpush2.xpose.msra.mxu0 0.0
        %3980 = vmatprep.subr.mxu0 0.0
        %3981 = vmatpush2.xpose.msra.mxu0 0.0
        %3982 = vmatprep.subr.mxu0 0.0
        %3983 = vmatpush2.xpose.msra.mxu0 0.0
        %3984 = vmatprep.subr.mxu0 0.0
        %3985 = vmatpush2.xpose.msra.mxu0 0.0
        %3986 = vmatprep.subr.mxu0 0.0
        %3987 = vmatpush2.xpose.msra.mxu0 0.0
        %3988 = vmatprep.subr.mxu0 0.0
        %3989 = vmatpush2.xpose.msra.mxu0 0.0
        %3990 = vmatprep.subr.mxu0 0.0
        %3991 = vmatpush2.xpose.msra.mxu0 0.0
        %3992 = vmatprep.subr.mxu0 0.0
        %3993 = vmatpush2.xpose.msra.mxu0 0.0
        %3994 = vmatprep.subr.mxu0 0.0
        %3995 = vmatpush2.xpose.msra.mxu0 0.0
        %3996 = vmatprep.subr.mxu0 0.0
        %3997 = vmatpush2.xpose.msra.mxu0 0.0
        %3998 = vmatprep.mubr.f32.mxu0 0.0
        %v3999 = vand.u32 %v3703, 4294901760
        %v4000 = vsub.f32 %v3703, %v3999
        %v4001 = vand.u32 %v4000, 4294901760
        %4002 = vmatmul.mubr.f32.gmra.mxu0 %v4001
        %v4003 = vpop.f32.mrf.mxu0
        %v4004 = vadd.f32 %v3930, %v4003
        %v4005 = vpop.f32.mrf.mxu0
        %4006 = vdwg.mxu0
        %4007 = vmatprep.subr.mxu0 0.0
        %4008 = vmatpush1.xpose.msra.mxu0 0.0
        %4009 = vmatprep.subr.mxu0 0.0
        %4010 = vmatpush1.xpose.msra.mxu0 0.0
        %4011 = vmatprep.subr.mxu0 0.0
        %4012 = vmatpush1.xpose.msra.mxu0 0.0
        %4013 = vmatprep.subr.mxu0 0.0
        %4014 = vmatpush1.xpose.msra.mxu0 0.0
        %4015 = vmatprep.subr.mxu0 0.0
        %4016 = vmatpush1.xpose.msra.mxu0 0.0
        %4017 = vmatprep.subr.mxu0 0.0
        %4018 = vmatpush1.xpose.msra.mxu0 0.0
        %4019 = vmatprep.subr.mxu0 0.0
        %4020 = vmatpush1.xpose.msra.mxu0 0.0
        %4021 = vmatprep.subr.mxu0 0.0
        %4022 = vmatpush1.xpose.msra.mxu0 0.0
        %4023 = vmatprep.subr.mxu0 0.0
        %4024 = vmatpush1.xpose.msra.mxu0 0.0
        %4025 = vmatprep.subr.mxu0 0.0
        %4026 = vmatpush1.xpose.msra.mxu0 0.0
        %4027 = vmatprep.subr.mxu0 0.0
        %4028 = vmatpush1.xpose.msra.mxu0 0.0
        %4029 = vmatprep.subr.mxu0 0.0
        %4030 = vmatpush1.xpose.msra.mxu0 0.0
        %4031 = vmatprep.subr.mxu0 0.0
        %4032 = vmatpush1.xpose.msra.mxu0 0.0
        %4033 = vmatprep.subr.mxu0 0.0
        %4034 = vmatpush1.xpose.msra.mxu0 0.0
        %4035 = vmatprep.subr.mxu0 0.0
        %4036 = vmatpush1.xpose.msra.mxu0 0.0
        %4037 = vmatprep.subr.mxu0 0.0
        %v4038 = vand.u32 %v3705, 4294901760
        %v4039 = vsub.f32 %v3705, %v4038
        %v4040 = vand.u32 %v4039, 4294901760
        %4041 = vmatpush1.xpose.msra.mxu0 %v4040
        %4042 = vmatprep.subr.mxu0 0.0
        %4043 = vmatpush2.xpose.msra.mxu0 0.0
        %4044 = vmatprep.subr.mxu0 0.0
        %4045 = vmatpush2.xpose.msra.mxu0 0.0
        %4046 = vmatprep.subr.mxu0 0.0
        %4047 = vmatpush2.xpose.msra.mxu0 0.0
        %4048 = vmatprep.subr.mxu0 0.0
        %4049 = vmatpush2.xpose.msra.mxu0 0.0
        %4050 = vmatprep.subr.mxu0 0.0
        %4051 = vmatpush2.xpose.msra.mxu0 0.0
        %4052 = vmatprep.subr.mxu0 0.0
        %4053 = vmatpush2.xpose.msra.mxu0 0.0
        %4054 = vmatprep.subr.mxu0 0.0
        %4055 = vmatpush2.xpose.msra.mxu0 0.0
        %4056 = vmatprep.subr.mxu0 0.0
        %4057 = vmatpush2.xpose.msra.mxu0 0.0
        %4058 = vmatprep.subr.mxu0 0.0
        %4059 = vmatpush2.xpose.msra.mxu0 0.0
        %4060 = vmatprep.subr.mxu0 0.0
        %4061 = vmatpush2.xpose.msra.mxu0 0.0
        %4062 = vmatprep.subr.mxu0 0.0
        %4063 = vmatpush2.xpose.msra.mxu0 0.0
        %4064 = vmatprep.subr.mxu0 0.0
        %4065 = vmatpush2.xpose.msra.mxu0 0.0
        %4066 = vmatprep.subr.mxu0 0.0
        %4067 = vmatpush2.xpose.msra.mxu0 0.0
        %4068 = vmatprep.subr.mxu0 0.0
        %4069 = vmatpush2.xpose.msra.mxu0 0.0
        %4070 = vmatprep.subr.mxu0 0.0
        %4071 = vmatpush2.xpose.msra.mxu0 0.0
        %4072 = vmatprep.subr.mxu0 0.0
        %4073 = vmatpush2.xpose.msra.mxu0 0.0
        %4074 = vmatprep.mubr.f32.mxu0 0.0
        %v4075 = vand.u32 %v3703, 4294901760
        %4076 = vmatmul.mubr.f32.gmra.mxu0 %v4075
        %v4077 = vpop.f32.mrf.mxu0
        %v4078 = vadd.f32 %v4004, %v4077
        %v4079 = vpop.f32.mrf.mxu0
        %4080 = vdwg.mxu0
        %4081 = vmatprep.subr.mxu0 0.0
        %4082 = vmatpush1.xpose.msra.mxu0 0.0
        %4083 = vmatprep.subr.mxu0 0.0
        %4084 = vmatpush1.xpose.msra.mxu0 0.0
        %4085 = vmatprep.subr.mxu0 0.0
        %4086 = vmatpush1.xpose.msra.mxu0 0.0
        %4087 = vmatprep.subr.mxu0 0.0
        %4088 = vmatpush1.xpose.msra.mxu0 0.0
        %4089 = vmatprep.subr.mxu0 0.0
        %4090 = vmatpush1.xpose.msra.mxu0 0.0
        %4091 = vmatprep.subr.mxu0 0.0
        %4092 = vmatpush1.xpose.msra.mxu0 0.0
        %4093 = vmatprep.subr.mxu0 0.0
        %4094 = vmatpush1.xpose.msra.mxu0 0.0
        %4095 = vmatprep.subr.mxu0 0.0
        %4096 = vmatpush1.xpose.msra.mxu0 0.0
        %4097 = vmatprep.subr.mxu0 0.0
        %4098 = vmatpush1.xpose.msra.mxu0 0.0
        %4099 = vmatprep.subr.mxu0 0.0
        %4100 = vmatpush1.xpose.msra.mxu0 0.0
        %4101 = vmatprep.subr.mxu0 0.0
        %4102 = vmatpush1.xpose.msra.mxu0 0.0
        %4103 = vmatprep.subr.mxu0 0.0
        %4104 = vmatpush1.xpose.msra.mxu0 0.0
        %4105 = vmatprep.subr.mxu0 0.0
        %4106 = vmatpush1.xpose.msra.mxu0 0.0
        %4107 = vmatprep.subr.mxu0 0.0
        %4108 = vmatpush1.xpose.msra.mxu0 0.0
        %4109 = vmatprep.subr.mxu0 0.0
        %4110 = vmatpush1.xpose.msra.mxu0 0.0
        %4111 = vmatprep.subr.mxu0 0.0
        %v4112 = vand.u32 %v3705, 4294901760
        %4113 = vmatpush1.xpose.msra.mxu0 %v4112
        %4114 = vmatprep.subr.mxu0 0.0
        %4115 = vmatpush2.xpose.msra.mxu0 0.0
        %4116 = vmatprep.subr.mxu0 0.0
        %4117 = vmatpush2.xpose.msra.mxu0 0.0
        %4118 = vmatprep.subr.mxu0 0.0
        %4119 = vmatpush2.xpose.msra.mxu0 0.0
        %4120 = vmatprep.subr.mxu0 0.0
        %4121 = vmatpush2.xpose.msra.mxu0 0.0
        %4122 = vmatprep.subr.mxu0 0.0
        %4123 = vmatpush2.xpose.msra.mxu0 0.0
        %4124 = vmatprep.subr.mxu0 0.0
        %4125 = vmatpush2.xpose.msra.mxu0 0.0
        %4126 = vmatprep.subr.mxu0 0.0
        %4127 = vmatpush2.xpose.msra.mxu0 0.0
        %4128 = vmatprep.subr.mxu0 0.0
        %4129 = vmatpush2.xpose.msra.mxu0 0.0
        %4130 = vmatprep.subr.mxu0 0.0
        %4131 = vmatpush2.xpose.msra.mxu0 0.0
        %4132 = vmatprep.subr.mxu0 0.0
        %4133 = vmatpush2.xpose.msra.mxu0 0.0
        %4134 = vmatprep.subr.mxu0 0.0
        %4135 = vmatpush2.xpose.msra.mxu0 0.0
        %4136 = vmatprep.subr.mxu0 0.0
        %4137 = vmatpush2.xpose.msra.mxu0 0.0
        %4138 = vmatprep.subr.mxu0 0.0
        %4139 = vmatpush2.xpose.msra.mxu0 0.0
        %4140 = vmatprep.subr.mxu0 0.0
        %4141 = vmatpush2.xpose.msra.mxu0 0.0
        %4142 = vmatprep.subr.mxu0 0.0
        %4143 = vmatpush2.xpose.msra.mxu0 0.0
        %4144 = vmatprep.subr.mxu0 0.0
        %4145 = vmatpush2.xpose.msra.mxu0 0.0
        %4146 = vmatprep.mubr.f32.mxu0 0.0
        %v4147 = vand.u32 %v3703, 4294901760
        %4148 = vmatmul.mubr.f32.gmra.mxu0 %v4147
        %v4149 = vpop.f32.mrf.mxu0
        %v4150 = vadd.f32 %v4078, %v4149
        %v4151 = vpop.f32.mrf.mxu0
        %4152 = vdwg.mxu0
        %v4153 = vsel %vm950, %v4150, -inf
        %4154 = vmax.xlane.f32.xlu0 %v4153
        %v4155 = vpop.xlane.xlu0 %4154
        %v4156 = vsub.f32 %v4150, %v4155
        %v4157 = vmul.f32 %v4156, 1.442695
        %v4158 = vpow.pop %v4157
        %v4159 = vsel %vm950, %v4158, 0.0
        %4160 = vadd.xlane.f32.xlu0 %v4159
        %v4161 = vpop.xlane.xlu0 %4160
        %4162 = vrot.lane.b32.xlu0 %v930, 40
        %v4163 = vpop.permute.xlu0 %4162
        %v4166 = vsel %vm950, %v4158, 0
        %4168 = vmatprep.subr.mxu0 0.0
        %4169 = vmatpush1.msra.mxu0 0.0
        %4170 = vmatprep.subr.mxu0 0.0
        %4171 = vmatpush1.msra.mxu0 0.0
        %4172 = vmatprep.subr.mxu0 0.0
        %4173 = vmatpush1.msra.mxu0 0.0
        %4174 = vmatprep.subr.mxu0 0.0
        %4175 = vmatpush1.msra.mxu0 0.0
        %4176 = vmatprep.subr.mxu0 0.0
        %4177 = vmatpush1.msra.mxu0 0.0
        %4178 = vmatprep.subr.mxu0 0.0
        %4179 = vmatpush1.msra.mxu0 0.0
        %4180 = vmatprep.subr.mxu0 0.0
        %4181 = vmatpush1.msra.mxu0 0.0
        %4182 = vmatprep.subr.mxu0 0.0
        %4183 = vmatpush1.msra.mxu0 0.0
        %4184 = vmatprep.subr.mxu0 0.0
        %4185 = vmatpush1.msra.mxu0 0.0
        %4186 = vmatprep.subr.mxu0 0.0
        %4187 = vmatpush1.msra.mxu0 0.0
        %4188 = vmatprep.subr.mxu0 0.0
        %4189 = vmatpush1.msra.mxu0 0.0
        %4190 = vmatprep.subr.mxu0 0.0
        %4191 = vmatpush1.msra.mxu0 0.0
        %4192 = vmatprep.subr.mxu0 0.0
        %4193 = vmatpush1.msra.mxu0 0.0
        %4194 = vmatprep.subr.mxu0 0.0
        %4195 = vmatpush1.msra.mxu0 0.0
        %4196 = vmatprep.subr.mxu0 0.0
        %4197 = vmatpush1.msra.mxu0 0.0
        %4198 = vmatprep.subr.mxu0 0.0
        %v4199 = vand.u32 %v4163, 4294901760
        %4200 = vmatpush1.msra.mxu0 %v4199
        %4201 = vmatprep.subr.mxu0 0.0
        %4202 = vmatpush2.msra.mxu0 0.0
        %4203 = vmatprep.subr.mxu0 0.0
        %4204 = vmatpush2.msra.mxu0 0.0
        %4205 = vmatprep.subr.mxu0 0.0
        %4206 = vmatpush2.msra.mxu0 0.0
        %4207 = vmatprep.subr.mxu0 0.0
        %4208 = vmatpush2.msra.mxu0 0.0
        %4209 = vmatprep.subr.mxu0 0.0
        %4210 = vmatpush2.msra.mxu0 0.0
        %4211 = vmatprep.subr.mxu0 0.0
        %4212 = vmatpush2.msra.mxu0 0.0
        %4213 = vmatprep.subr.mxu0 0.0
        %4214 = vmatpush2.msra.mxu0 0.0
        %4215 = vmatprep.subr.mxu0 0.0
        %4216 = vmatpush2.msra.mxu0 0.0
        %4217 = vmatprep.subr.mxu0 0.0
        %4218 = vmatpush2.msra.mxu0 0.0
        %4219 = vmatprep.subr.mxu0 0.0
        %4220 = vmatpush2.msra.mxu0 0.0
        %4221 = vmatprep.subr.mxu0 0.0
        %4222 = vmatpush2.msra.mxu0 0.0
        %4223 = vmatprep.subr.mxu0 0.0
        %4224 = vmatpush2.msra.mxu0 0.0
        %4225 = vmatprep.subr.mxu0 0.0
        %4226 = vmatpush2.msra.mxu0 0.0
        %4227 = vmatprep.subr.mxu0 0.0
        %4228 = vmatpush2.msra.mxu0 0.0
        %4229 = vmatprep.subr.mxu0 0.0
        %4230 = vmatpush2.msra.mxu0 0.0
        %4231 = vmatprep.subr.mxu0 0.0
        %4232 = vmatpush2.msra.mxu0 0.0
        %4233 = vmatprep.mubr.f32.mxu0 0.0
        %v4234 = vand.u32 %v4166, 4294901760
        %v4235 = vsub.f32 %v4166, %v4234
        %v4236 = vand.u32 %v4235, 4294901760
        %v4237 = vsub.f32 %v4235, %v4236
        %v4238 = vand.u32 %v4237, 4294901760
        %4239 = vmatmul.mubr.f32.gmra.mxu0 %v4238
        %v4240 = vpop.f32.mrf.mxu0
        %v4241 = vadd.f32 0.0, %v4240
        %v4242 = vpop.f32.mrf.mxu0
        %4243 = vdwg.mxu0
        %4244 = vmatprep.subr.mxu0 0.0
        %4245 = vmatpush1.msra.mxu0 0.0
        %4246 = vmatprep.subr.mxu0 0.0
        %4247 = vmatpush1.msra.mxu0 0.0
        %4248 = vmatprep.subr.mxu0 0.0
        %4249 = vmatpush1.msra.mxu0 0.0
        %4250 = vmatprep.subr.mxu0 0.0
        %4251 = vmatpush1.msra.mxu0 0.0
        %4252 = vmatprep.subr.mxu0 0.0
        %4253 = vmatpush1.msra.mxu0 0.0
        %4254 = vmatprep.subr.mxu0 0.0
        %4255 = vmatpush1.msra.mxu0 0.0
        %4256 = vmatprep.subr.mxu0 0.0
        %4257 = vmatpush1.msra.mxu0 0.0
        %4258 = vmatprep.subr.mxu0 0.0
        %4259 = vmatpush1.msra.mxu0 0.0
        %4260 = vmatprep.subr.mxu0 0.0
        %4261 = vmatpush1.msra.mxu0 0.0
        %4262 = vmatprep.subr.mxu0 0.0
        %4263 = vmatpush1.msra.mxu0 0.0
        %4264 = vmatprep.subr.mxu0 0.0
        %4265 = vmatpush1.msra.mxu0 0.0
        %4266 = vmatprep.subr.mxu0 0.0
        %4267 = vmatpush1.msra.mxu0 0.0
        %4268 = vmatprep.subr.mxu0 0.0
        %4269 = vmatpush1.msra.mxu0 0.0
        %4270 = vmatprep.subr.mxu0 0.0
        %4271 = vmatpush1.msra.mxu0 0.0
        %4272 = vmatprep.subr.mxu0 0.0
        %4273 = vmatpush1.msra.mxu0 0.0
        %4274 = vmatprep.subr.mxu0 0.0
        %v4275 = vand.u32 %v4163, 4294901760
        %v4276 = vsub.f32 %v4163, %v4275
        %v4277 = vand.u32 %v4276, 4294901760
        %v4278 = vsub.f32 %v4276, %v4277
        %v4279 = vand.u32 %v4278, 4294901760
        %4280 = vmatpush1.msra.mxu0 %v4279
        %4281 = vmatprep.subr.mxu0 0.0
        %4282 = vmatpush2.msra.mxu0 0.0
        %4283 = vmatprep.subr.mxu0 0.0
        %4284 = vmatpush2.msra.mxu0 0.0
        %4285 = vmatprep.subr.mxu0 0.0
        %4286 = vmatpush2.msra.mxu0 0.0
        %4287 = vmatprep.subr.mxu0 0.0
        %4288 = vmatpush2.msra.mxu0 0.0
        %4289 = vmatprep.subr.mxu0 0.0
        %4290 = vmatpush2.msra.mxu0 0.0
        %4291 = vmatprep.subr.mxu0 0.0
        %4292 = vmatpush2.msra.mxu0 0.0
        %4293 = vmatprep.subr.mxu0 0.0
        %4294 = vmatpush2.msra.mxu0 0.0
        %4295 = vmatprep.subr.mxu0 0.0
        %4296 = vmatpush2.msra.mxu0 0.0
        %4297 = vmatprep.subr.mxu0 0.0
        %4298 = vmatpush2.msra.mxu0 0.0
        %4299 = vmatprep.subr.mxu0 0.0
        %4300 = vmatpush2.msra.mxu0 0.0
        %4301 = vmatprep.subr.mxu0 0.0
        %4302 = vmatpush2.msra.mxu0 0.0
        %4303 = vmatprep.subr.mxu0 0.0
        %4304 = vmatpush2.msra.mxu0 0.0
        %4305 = vmatprep.subr.mxu0 0.0
        %4306 = vmatpush2.msra.mxu0 0.0
        %4307 = vmatprep.subr.mxu0 0.0
        %4308 = vmatpush2.msra.mxu0 0.0
        %4309 = vmatprep.subr.mxu0 0.0
        %4310 = vmatpush2.msra.mxu0 0.0
        %4311 = vmatprep.subr.mxu0 0.0
        %4312 = vmatpush2.msra.mxu0 0.0
        %4313 = vmatprep.mubr.f32.mxu0 0.0
        %v4314 = vand.u32 %v4166, 4294901760
        %4315 = vmatmul.mubr.f32.gmra.mxu0 %v4314
        %v4316 = vpop.f32.mrf.mxu0
        %v4317 = vadd.f32 %v4241, %v4316
        %v4318 = vpop.f32.mrf.mxu0
        %4319 = vdwg.mxu0
        %4320 = vmatprep.subr.mxu0 0.0
        %4321 = vmatpush1.msra.mxu0 0.0
        %4322 = vmatprep.subr.mxu0 0.0
        %4323 = vmatpush1.msra.mxu0 0.0
        %4324 = vmatprep.subr.mxu0 0.0
        %4325 = vmatpush1.msra.mxu0 0.0
        %4326 = vmatprep.subr.mxu0 0.0
        %4327 = vmatpush1.msra.mxu0 0.0
        %4328 = vmatprep.subr.mxu0 0.0
        %4329 = vmatpush1.msra.mxu0 0.0
        %4330 = vmatprep.subr.mxu0 0.0
        %4331 = vmatpush1.msra.mxu0 0.0
        %4332 = vmatprep.subr.mxu0 0.0
        %4333 = vmatpush1.msra.mxu0 0.0
        %4334 = vmatprep.subr.mxu0 0.0
        %4335 = vmatpush1.msra.mxu0 0.0
        %4336 = vmatprep.subr.mxu0 0.0
        %4337 = vmatpush1.msra.mxu0 0.0
        %4338 = vmatprep.subr.mxu0 0.0
        %4339 = vmatpush1.msra.mxu0 0.0
        %4340 = vmatprep.subr.mxu0 0.0
        %4341 = vmatpush1.msra.mxu0 0.0
        %4342 = vmatprep.subr.mxu0 0.0
        %4343 = vmatpush1.msra.mxu0 0.0
        %4344 = vmatprep.subr.mxu0 0.0
        %4345 = vmatpush1.msra.mxu0 0.0
        %4346 = vmatprep.subr.mxu0 0.0
        %4347 = vmatpush1.msra.mxu0 0.0
        %4348 = vmatprep.subr.mxu0 0.0
        %4349 = vmatpush1.msra.mxu0 0.0
        %4350 = vmatprep.subr.mxu0 0.0
        %v4351 = vand.u32 %v4163, 4294901760
        %v4352 = vsub.f32 %v4163, %v4351
        %4353 = vmatpush1.msra.mxu0 %v4352
        %4354 = vmatprep.subr.mxu0 0.0
        %4355 = vmatpush2.msra.mxu0 0.0
        %4356 = vmatprep.subr.mxu0 0.0
        %4357 = vmatpush2.msra.mxu0 0.0
        %4358 = vmatprep.subr.mxu0 0.0
        %4359 = vmatpush2.msra.mxu0 0.0
        %4360 = vmatprep.subr.mxu0 0.0
        %4361 = vmatpush2.msra.mxu0 0.0
        %4362 = vmatprep.subr.mxu0 0.0
        %4363 = vmatpush2.msra.mxu0 0.0
        %4364 = vmatprep.subr.mxu0 0.0
        %4365 = vmatpush2.msra.mxu0 0.0
        %4366 = vmatprep.subr.mxu0 0.0
        %4367 = vmatpush2.msra.mxu0 0.0
        %4368 = vmatprep.subr.mxu0 0.0
        %4369 = vmatpush2.msra.mxu0 0.0
        %4370 = vmatprep.subr.mxu0 0.0
        %4371 = vmatpush2.msra.mxu0 0.0
        %4372 = vmatprep.subr.mxu0 0.0
        %4373 = vmatpush2.msra.mxu0 0.0
        %4374 = vmatprep.subr.mxu0 0.0
        %4375 = vmatpush2.msra.mxu0 0.0
        %4376 = vmatprep.subr.mxu0 0.0
        %4377 = vmatpush2.msra.mxu0 0.0
        %4378 = vmatprep.subr.mxu0 0.0
        %4379 = vmatpush2.msra.mxu0 0.0
        %4380 = vmatprep.subr.mxu0 0.0
        %4381 = vmatpush2.msra.mxu0 0.0
        %4382 = vmatprep.subr.mxu0 0.0
        %4383 = vmatpush2.msra.mxu0 0.0
        %4384 = vmatprep.subr.mxu0 0.0
        %4385 = vmatpush2.msra.mxu0 0.0
        %4386 = vmatprep.mubr.f32.mxu0 0.0
        %v4387 = vand.u32 %v4166, 4294901760
        %v4388 = vsub.f32 %v4166, %v4387
        %4389 = vmatmul.mubr.f32.gmra.mxu0 %v4388
        %v4390 = vpop.f32.mrf.mxu0
        %v4391 = vadd.f32 %v4317, %v4390
        %v4392 = vpop.f32.mrf.mxu0
        %4393 = vdwg.mxu0
        %4394 = vmatprep.subr.mxu0 0.0
        %4395 = vmatpush1.msra.mxu0 0.0
        %4396 = vmatprep.subr.mxu0 0.0
        %4397 = vmatpush1.msra.mxu0 0.0
        %4398 = vmatprep.subr.mxu0 0.0
        %4399 = vmatpush1.msra.mxu0 0.0
        %4400 = vmatprep.subr.mxu0 0.0
        %4401 = vmatpush1.msra.mxu0 0.0
        %4402 = vmatprep.subr.mxu0 0.0
        %4403 = vmatpush1.msra.mxu0 0.0
        %4404 = vmatprep.subr.mxu0 0.0
        %4405 = vmatpush1.msra.mxu0 0.0
        %4406 = vmatprep.subr.mxu0 0.0
        %4407 = vmatpush1.msra.mxu0 0.0
        %4408 = vmatprep.subr.mxu0 0.0
        %4409 = vmatpush1.msra.mxu0 0.0
        %4410 = vmatprep.subr.mxu0 0.0
        %4411 = vmatpush1.msra.mxu0 0.0
        %4412 = vmatprep.subr.mxu0 0.0
        %4413 = vmatpush1.msra.mxu0 0.0
        %4414 = vmatprep.subr.mxu0 0.0
        %4415 = vmatpush1.msra.mxu0 0.0
        %4416 = vmatprep.subr.mxu0 0.0
        %4417 = vmatpush1.msra.mxu0 0.0
        %4418 = vmatprep.subr.mxu0 0.0
        %4419 = vmatpush1.msra.mxu0 0.0
        %4420 = vmatprep.subr.mxu0 0.0
        %4421 = vmatpush1.msra.mxu0 0.0
        %4422 = vmatprep.subr.mxu0 0.0
        %4423 = vmatpush1.msra.mxu0 0.0
        %4424 = vmatprep.subr.mxu0 0.0
        %v4425 = vand.u32 %v4163, 4294901760
        %4426 = vmatpush1.msra.mxu0 %v4425
        %4427 = vmatprep.subr.mxu0 0.0
        %4428 = vmatpush2.msra.mxu0 0.0
        %4429 = vmatprep.subr.mxu0 0.0
        %4430 = vmatpush2.msra.mxu0 0.0
        %4431 = vmatprep.subr.mxu0 0.0
        %4432 = vmatpush2.msra.mxu0 0.0
        %4433 = vmatprep.subr.mxu0 0.0
        %4434 = vmatpush2.msra.mxu0 0.0
        %4435 = vmatprep.subr.mxu0 0.0
        %4436 = vmatpush2.msra.mxu0 0.0
        %4437 = vmatprep.subr.mxu0 0.0
        %4438 = vmatpush2.msra.mxu0 0.0
        %4439 = vmatprep.subr.mxu0 0.0
        %4440 = vmatpush2.msra.mxu0 0.0
        %4441 = vmatprep.subr.mxu0 0.0
        %4442 = vmatpush2.msra.mxu0 0.0
        %4443 = vmatprep.subr.mxu0 0.0
        %4444 = vmatpush2.msra.mxu0 0.0
        %4445 = vmatprep.subr.mxu0 0.0
        %4446 = vmatpush2.msra.mxu0 0.0
        %4447 = vmatprep.subr.mxu0 0.0
        %4448 = vmatpush2.msra.mxu0 0.0
        %4449 = vmatprep.subr.mxu0 0.0
        %4450 = vmatpush2.msra.mxu0 0.0
        %4451 = vmatprep.subr.mxu0 0.0
        %4452 = vmatpush2.msra.mxu0 0.0
        %4453 = vmatprep.subr.mxu0 0.0
        %4454 = vmatpush2.msra.mxu0 0.0
        %4455 = vmatprep.subr.mxu0 0.0
        %4456 = vmatpush2.msra.mxu0 0.0
        %4457 = vmatprep.subr.mxu0 0.0
        %4458 = vmatpush2.msra.mxu0 0.0
        %4459 = vmatprep.mubr.f32.mxu0 0.0
        %v4460 = vand.u32 %v4166, 4294901760
        %v4461 = vsub.f32 %v4166, %v4460
        %v4462 = vand.u32 %v4461, 4294901760
        %4463 = vmatmul.mubr.f32.gmra.mxu0 %v4462
        %v4464 = vpop.f32.mrf.mxu0
        %v4465 = vadd.f32 %v4391, %v4464
        %v4466 = vpop.f32.mrf.mxu0
        %4467 = vdwg.mxu0
        %4468 = vmatprep.subr.mxu0 0.0
        %4469 = vmatpush1.msra.mxu0 0.0
        %4470 = vmatprep.subr.mxu0 0.0
        %4471 = vmatpush1.msra.mxu0 0.0
        %4472 = vmatprep.subr.mxu0 0.0
        %4473 = vmatpush1.msra.mxu0 0.0
        %4474 = vmatprep.subr.mxu0 0.0
        %4475 = vmatpush1.msra.mxu0 0.0
        %4476 = vmatprep.subr.mxu0 0.0
        %4477 = vmatpush1.msra.mxu0 0.0
        %4478 = vmatprep.subr.mxu0 0.0
        %4479 = vmatpush1.msra.mxu0 0.0
        %4480 = vmatprep.subr.mxu0 0.0
        %4481 = vmatpush1.msra.mxu0 0.0
        %4482 = vmatprep.subr.mxu0 0.0
        %4483 = vmatpush1.msra.mxu0 0.0
        %4484 = vmatprep.subr.mxu0 0.0
        %4485 = vmatpush1.msra.mxu0 0.0
        %4486 = vmatprep.subr.mxu0 0.0
        %4487 = vmatpush1.msra.mxu0 0.0
        %4488 = vmatprep.subr.mxu0 0.0
        %4489 = vmatpush1.msra.mxu0 0.0
        %4490 = vmatprep.subr.mxu0 0.0
        %4491 = vmatpush1.msra.mxu0 0.0
        %4492 = vmatprep.subr.mxu0 0.0
        %4493 = vmatpush1.msra.mxu0 0.0
        %4494 = vmatprep.subr.mxu0 0.0
        %4495 = vmatpush1.msra.mxu0 0.0
        %4496 = vmatprep.subr.mxu0 0.0
        %4497 = vmatpush1.msra.mxu0 0.0
        %4498 = vmatprep.subr.mxu0 0.0
        %v4499 = vand.u32 %v4163, 4294901760
        %v4500 = vsub.f32 %v4163, %v4499
        %v4501 = vand.u32 %v4500, 4294901760
        %4502 = vmatpush1.msra.mxu0 %v4501
        %4503 = vmatprep.subr.mxu0 0.0
        %4504 = vmatpush2.msra.mxu0 0.0
        %4505 = vmatprep.subr.mxu0 0.0
        %4506 = vmatpush2.msra.mxu0 0.0
        %4507 = vmatprep.subr.mxu0 0.0
        %4508 = vmatpush2.msra.mxu0 0.0
        %4509 = vmatprep.subr.mxu0 0.0
        %4510 = vmatpush2.msra.mxu0 0.0
        %4511 = vmatprep.subr.mxu0 0.0
        %4512 = vmatpush2.msra.mxu0 0.0
        %4513 = vmatprep.subr.mxu0 0.0
        %4514 = vmatpush2.msra.mxu0 0.0
        %4515 = vmatprep.subr.mxu0 0.0
        %4516 = vmatpush2.msra.mxu0 0.0
        %4517 = vmatprep.subr.mxu0 0.0
        %4518 = vmatpush2.msra.mxu0 0.0
        %4519 = vmatprep.subr.mxu0 0.0
        %4520 = vmatpush2.msra.mxu0 0.0
        %4521 = vmatprep.subr.mxu0 0.0
        %4522 = vmatpush2.msra.mxu0 0.0
        %4523 = vmatprep.subr.mxu0 0.0
        %4524 = vmatpush2.msra.mxu0 0.0
        %4525 = vmatprep.subr.mxu0 0.0
        %4526 = vmatpush2.msra.mxu0 0.0
        %4527 = vmatprep.subr.mxu0 0.0
        %4528 = vmatpush2.msra.mxu0 0.0
        %4529 = vmatprep.subr.mxu0 0.0
        %4530 = vmatpush2.msra.mxu0 0.0
        %4531 = vmatprep.subr.mxu0 0.0
        %4532 = vmatpush2.msra.mxu0 0.0
        %4533 = vmatprep.subr.mxu0 0.0
        %4534 = vmatpush2.msra.mxu0 0.0
        %4535 = vmatprep.mubr.f32.mxu0 0.0
        %v4536 = vand.u32 %v4166, 4294901760
        %4537 = vmatmul.mubr.f32.gmra.mxu0 %v4536
        %v4538 = vpop.f32.mrf.mxu0
        %v4539 = vadd.f32 %v4465, %v4538
        %v4540 = vpop.f32.mrf.mxu0
        %4541 = vdwg.mxu0
        %4542 = vmatprep.subr.mxu0 0.0
        %4543 = vmatpush1.msra.mxu0 0.0
        %4544 = vmatprep.subr.mxu0 0.0
        %4545 = vmatpush1.msra.mxu0 0.0
        %4546 = vmatprep.subr.mxu0 0.0
        %4547 = vmatpush1.msra.mxu0 0.0
        %4548 = vmatprep.subr.mxu0 0.0
        %4549 = vmatpush1.msra.mxu0 0.0
        %4550 = vmatprep.subr.mxu0 0.0
        %4551 = vmatpush1.msra.mxu0 0.0
        %4552 = vmatprep.subr.mxu0 0.0
        %4553 = vmatpush1.msra.mxu0 0.0
        %4554 = vmatprep.subr.mxu0 0.0
        %4555 = vmatpush1.msra.mxu0 0.0
        %4556 = vmatprep.subr.mxu0 0.0
        %4557 = vmatpush1.msra.mxu0 0.0
        %4558 = vmatprep.subr.mxu0 0.0
        %4559 = vmatpush1.msra.mxu0 0.0
        %4560 = vmatprep.subr.mxu0 0.0
        %4561 = vmatpush1.msra.mxu0 0.0
        %4562 = vmatprep.subr.mxu0 0.0
        %4563 = vmatpush1.msra.mxu0 0.0
        %4564 = vmatprep.subr.mxu0 0.0
        %4565 = vmatpush1.msra.mxu0 0.0
        %4566 = vmatprep.subr.mxu0 0.0
        %4567 = vmatpush1.msra.mxu0 0.0
        %4568 = vmatprep.subr.mxu0 0.0
        %4569 = vmatpush1.msra.mxu0 0.0
        %4570 = vmatprep.subr.mxu0 0.0
        %4571 = vmatpush1.msra.mxu0 0.0
        %4572 = vmatprep.subr.mxu0 0.0
        %v4573 = vand.u32 %v4163, 4294901760
        %4574 = vmatpush1.msra.mxu0 %v4573
        %4575 = vmatprep.subr.mxu0 0.0
        %4576 = vmatpush2.msra.mxu0 0.0
        %4577 = vmatprep.subr.mxu0 0.0
        %4578 = vmatpush2.msra.mxu0 0.0
        %4579 = vmatprep.subr.mxu0 0.0
        %4580 = vmatpush2.msra.mxu0 0.0
        %4581 = vmatprep.subr.mxu0 0.0
        %4582 = vmatpush2.msra.mxu0 0.0
        %4583 = vmatprep.subr.mxu0 0.0
        %4584 = vmatpush2.msra.mxu0 0.0
        %4585 = vmatprep.subr.mxu0 0.0
        %4586 = vmatpush2.msra.mxu0 0.0
        %4587 = vmatprep.subr.mxu0 0.0
        %4588 = vmatpush2.msra.mxu0 0.0
        %4589 = vmatprep.subr.mxu0 0.0
        %4590 = vmatpush2.msra.mxu0 0.0
        %4591 = vmatprep.subr.mxu0 0.0
        %4592 = vmatpush2.msra.mxu0 0.0
        %4593 = vmatprep.subr.mxu0 0.0
        %4594 = vmatpush2.msra.mxu0 0.0
        %4595 = vmatprep.subr.mxu0 0.0
        %4596 = vmatpush2.msra.mxu0 0.0
        %4597 = vmatprep.subr.mxu0 0.0
        %4598 = vmatpush2.msra.mxu0 0.0
        %4599 = vmatprep.subr.mxu0 0.0
        %4600 = vmatpush2.msra.mxu0 0.0
        %4601 = vmatprep.subr.mxu0 0.0
        %4602 = vmatpush2.msra.mxu0 0.0
        %4603 = vmatprep.subr.mxu0 0.0
        %4604 = vmatpush2.msra.mxu0 0.0
        %4605 = vmatprep.subr.mxu0 0.0
        %4606 = vmatpush2.msra.mxu0 0.0
        %4607 = vmatprep.mubr.f32.mxu0 0.0
        %v4608 = vand.u32 %v4166, 4294901760
        %4609 = vmatmul.mubr.f32.gmra.mxu0 %v4608
        %v4610 = vpop.f32.mrf.mxu0
        %v4611 = vadd.f32 %v4539, %v4610
        %v4612 = vpop.f32.mrf.mxu0
        %4613 = vdwg.mxu0
        %v4614 = vrcp.pop %v4161
        %v4615 = vmul.f32 %v4611, %v4614
        %4617 = vrot.lane.b32.xlu0 %v2781, 8
        %v4618 = vpop.permute.xlu0 %4617
        %4621 = vrot.lane.b32.xlu0 %v3698, 16
        %v4622 = vpop.permute.xlu0 %4621
        %4625 = vrot.lane.b32.xlu0 %v4615, 24
        %v4626 = vpop.permute.xlu0 %4625
        %v4628 = vsel %vm950, %v1864, %v4618
        %vm4629 = vcmask 130048
        %v4630 = vsel %vm4629, %v4628, %v4622
        %vm4631 = vcmask 195584
        %v4632 = vsel %vm4631, %v4630, %v4626
        %v4633 = vld [vmem:[#allocation11] sm:$0xff]
        %v4634 = vld [vmem:[#allocation11 + $0x8] sm:$0xff]
        %v4635 = vld [vmem:[#allocation11 + $0x10] sm:$0xff]
        %v4636 = vld [vmem:[#allocation11 + $0x18] sm:$0xff]
        %v4638 = vsel %vm403, %v4632, 0
        %4640 = vmatprep.subr.mxu0 0.0
        %4641 = vmatpush1.msra.mxu0 0.0
        %4642 = vmatprep.subr.mxu0 0.0
        %4643 = vmatpush1.msra.mxu0 0.0
        %4644 = vmatprep.subr.mxu0 0.0
        %4645 = vmatpush1.msra.mxu0 0.0
        %4646 = vmatprep.subr.mxu0 0.0
        %4647 = vmatpush1.msra.mxu0 0.0
        %4648 = vmatprep.subr.mxu0 0.0
        %4649 = vmatpush1.msra.mxu0 0.0
        %4650 = vmatprep.subr.mxu0 0.0
        %4651 = vmatpush1.msra.mxu0 0.0
        %4652 = vmatprep.subr.mxu0 0.0
        %4653 = vmatpush1.msra.mxu0 0.0
        %4654 = vmatprep.subr.mxu0 0.0
        %4655 = vmatpush1.msra.mxu0 0.0
        %4656 = vmatprep.subr.mxu0 0.0
        %4657 = vmatpush1.msra.mxu0 0.0
        %4658 = vmatprep.subr.mxu0 0.0
        %4659 = vmatpush1.msra.mxu0 0.0
        %4660 = vmatprep.subr.mxu0 0.0
        %4661 = vmatpush1.msra.mxu0 0.0
        %4662 = vmatprep.subr.mxu0 0.0
        %4663 = vmatpush1.msra.mxu0 0.0
        %4664 = vmatprep.subr.mxu0 0.0
        %v4665 = vand.u32 %v4636, 4294901760
        %4666 = vmatpush1.msra.mxu0 %v4665
        %4667 = vmatprep.subr.mxu0 0.0
        %v4668 = vand.u32 %v4635, 4294901760
        %4669 = vmatpush1.msra.mxu0 %v4668
        %4670 = vmatprep.subr.mxu0 0.0
        %v4671 = vand.u32 %v4634, 4294901760
        %4672 = vmatpush1.msra.mxu0 %v4671
        %4673 = vmatprep.subr.mxu0 0.0
        %v4674 = vand.u32 %v4633, 4294901760
        %4675 = vmatpush1.msra.mxu0 %v4674
        %4676 = vmatprep.subr.mxu0 0.0
        %4677 = vmatpush2.msra.mxu0 0.0
        %4678 = vmatprep.subr.mxu0 0.0
        %4679 = vmatpush2.msra.mxu0 0.0
        %4680 = vmatprep.subr.mxu0 0.0
        %4681 = vmatpush2.msra.mxu0 0.0
        %4682 = vmatprep.subr.mxu0 0.0
        %4683 = vmatpush2.msra.mxu0 0.0
        %4684 = vmatprep.subr.mxu0 0.0
        %4685 = vmatpush2.msra.mxu0 0.0
        %4686 = vmatprep.subr.mxu0 0.0
        %4687 = vmatpush2.msra.mxu0 0.0
        %4688 = vmatprep.subr.mxu0 0.0
        %4689 = vmatpush2.msra.mxu0 0.0
        %4690 = vmatprep.subr.mxu0 0.0
        %4691 = vmatpush2.msra.mxu0 0.0
        %4692 = vmatprep.subr.mxu0 0.0
        %4693 = vmatpush2.msra.mxu0 0.0
        %4694 = vmatprep.subr.mxu0 0.0
        %4695 = vmatpush2.msra.mxu0 0.0
        %4696 = vmatprep.subr.mxu0 0.0
        %4697 = vmatpush2.msra.mxu0 0.0
        %4698 = vmatprep.subr.mxu0 0.0
        %4699 = vmatpush2.msra.mxu0 0.0
        %4700 = vmatprep.subr.mxu0 0.0
        %4701 = vmatpush2.msra.mxu0 0.0
        %4702 = vmatprep.subr.mxu0 0.0
        %4703 = vmatpush2.msra.mxu0 0.0
        %4704 = vmatprep.subr.mxu0 0.0
        %4705 = vmatpush2.msra.mxu0 0.0
        %4706 = vmatprep.subr.mxu0 0.0
        %4707 = vmatpush2.msra.mxu0 0.0
        %4708 = vmatprep.mubr.f32.mxu0 0.0
        %v4709 = vand.u32 %v4638, 4294901760
        %v4710 = vsub.f32 %v4638, %v4709
        %v4711 = vand.u32 %v4710, 4294901760
        %v4712 = vsub.f32 %v4710, %v4711
        %v4713 = vand.u32 %v4712, 4294901760
        %4714 = vmatmul.mubr.f32.gmra.mxu0 %v4713
        %v4715 = vpop.f32.mrf.mxu0
        %v4716 = vadd.f32 0.0, %v4715
        %v4717 = vpop.f32.mrf.mxu0
        %4718 = vdwg.mxu0
        %4719 = vmatprep.subr.mxu0 0.0
        %4720 = vmatpush1.msra.mxu0 0.0
        %4721 = vmatprep.subr.mxu0 0.0
        %4722 = vmatpush1.msra.mxu0 0.0
        %4723 = vmatprep.subr.mxu0 0.0
        %4724 = vmatpush1.msra.mxu0 0.0
        %4725 = vmatprep.subr.mxu0 0.0
        %4726 = vmatpush1.msra.mxu0 0.0
        %4727 = vmatprep.subr.mxu0 0.0
        %4728 = vmatpush1.msra.mxu0 0.0
        %4729 = vmatprep.subr.mxu0 0.0
        %4730 = vmatpush1.msra.mxu0 0.0
        %4731 = vmatprep.subr.mxu0 0.0
        %4732 = vmatpush1.msra.mxu0 0.0
        %4733 = vmatprep.subr.mxu0 0.0
        %4734 = vmatpush1.msra.mxu0 0.0
        %4735 = vmatprep.subr.mxu0 0.0
        %4736 = vmatpush1.msra.mxu0 0.0
        %4737 = vmatprep.subr.mxu0 0.0
        %4738 = vmatpush1.msra.mxu0 0.0
        %4739 = vmatprep.subr.mxu0 0.0
        %4740 = vmatpush1.msra.mxu0 0.0
        %4741 = vmatprep.subr.mxu0 0.0
        %4742 = vmatpush1.msra.mxu0 0.0
        %4743 = vmatprep.subr.mxu0 0.0
        %v4744 = vand.u32 %v4636, 4294901760
        %v4745 = vsub.f32 %v4636, %v4744
        %v4746 = vand.u32 %v4745, 4294901760
        %v4747 = vsub.f32 %v4745, %v4746
        %v4748 = vand.u32 %v4747, 4294901760
        %4749 = vmatpush1.msra.mxu0 %v4748
        %4750 = vmatprep.subr.mxu0 0.0
        %v4751 = vand.u32 %v4635, 4294901760
        %v4752 = vsub.f32 %v4635, %v4751
        %v4753 = vand.u32 %v4752, 4294901760
        %v4754 = vsub.f32 %v4752, %v4753
        %v4755 = vand.u32 %v4754, 4294901760
        %4756 = vmatpush1.msra.mxu0 %v4755
        %4757 = vmatprep.subr.mxu0 0.0
        %v4758 = vand.u32 %v4634, 4294901760
        %v4759 = vsub.f32 %v4634, %v4758
        %v4760 = vand.u32 %v4759, 4294901760
        %v4761 = vsub.f32 %v4759, %v4760
        %v4762 = vand.u32 %v4761, 4294901760
        %4763 = vmatpush1.msra.mxu0 %v4762
        %4764 = vmatprep.subr.mxu0 0.0
        %v4765 = vand.u32 %v4633, 4294901760
        %v4766 = vsub.f32 %v4633, %v4765
        %v4767 = vand.u32 %v4766, 4294901760
        %v4768 = vsub.f32 %v4766, %v4767
        %v4769 = vand.u32 %v4768, 4294901760
        %4770 = vmatpush1.msra.mxu0 %v4769
        %4771 = vmatprep.subr.mxu0 0.0
        %4772 = vmatpush2.msra.mxu0 0.0
        %4773 = vmatprep.subr.mxu0 0.0
        %4774 = vmatpush2.msra.mxu0 0.0
        %4775 = vmatprep.subr.mxu0 0.0
        %4776 = vmatpush2.msra.mxu0 0.0
        %4777 = vmatprep.subr.mxu0 0.0
        %4778 = vmatpush2.msra.mxu0 0.0
        %4779 = vmatprep.subr.mxu0 0.0
        %4780 = vmatpush2.msra.mxu0 0.0
        %4781 = vmatprep.subr.mxu0 0.0
        %4782 = vmatpush2.msra.mxu0 0.0
        %4783 = vmatprep.subr.mxu0 0.0
        %4784 = vmatpush2.msra.mxu0 0.0
        %4785 = vmatprep.subr.mxu0 0.0
        %4786 = vmatpush2.msra.mxu0 0.0
        %4787 = vmatprep.subr.mxu0 0.0
        %4788 = vmatpush2.msra.mxu0 0.0
        %4789 = vmatprep.subr.mxu0 0.0
        %4790 = vmatpush2.msra.mxu0 0.0
        %4791 = vmatprep.subr.mxu0 0.0
        %4792 = vmatpush2.msra.mxu0 0.0
        %4793 = vmatprep.subr.mxu0 0.0
        %4794 = vmatpush2.msra.mxu0 0.0
        %4795 = vmatprep.subr.mxu0 0.0
        %4796 = vmatpush2.msra.mxu0 0.0
        %4797 = vmatprep.subr.mxu0 0.0
        %4798 = vmatpush2.msra.mxu0 0.0
        %4799 = vmatprep.subr.mxu0 0.0
        %4800 = vmatpush2.msra.mxu0 0.0
        %4801 = vmatprep.subr.mxu0 0.0
        %4802 = vmatpush2.msra.mxu0 0.0
        %4803 = vmatprep.mubr.f32.mxu0 0.0
        %v4804 = vand.u32 %v4638, 4294901760
        %4805 = vmatmul.mubr.f32.gmra.mxu0 %v4804
        %v4806 = vpop.f32.mrf.mxu0
        %v4807 = vadd.f32 %v4716, %v4806
        %v4808 = vpop.f32.mrf.mxu0
        %4809 = vdwg.mxu0
        %4810 = vmatprep.subr.mxu0 0.0
        %4811 = vmatpush1.msra.mxu0 0.0
        %4812 = vmatprep.subr.mxu0 0.0
        %4813 = vmatpush1.msra.mxu0 0.0
        %4814 = vmatprep.subr.mxu0 0.0
        %4815 = vmatpush1.msra.mxu0 0.0
        %4816 = vmatprep.subr.mxu0 0.0
        %4817 = vmatpush1.msra.mxu0 0.0
        %4818 = vmatprep.subr.mxu0 0.0
        %4819 = vmatpush1.msra.mxu0 0.0
        %4820 = vmatprep.subr.mxu0 0.0
        %4821 = vmatpush1.msra.mxu0 0.0
        %4822 = vmatprep.subr.mxu0 0.0
        %4823 = vmatpush1.msra.mxu0 0.0
        %4824 = vmatprep.subr.mxu0 0.0
        %4825 = vmatpush1.msra.mxu0 0.0
        %4826 = vmatprep.subr.mxu0 0.0
        %4827 = vmatpush1.msra.mxu0 0.0
        %4828 = vmatprep.subr.mxu0 0.0
        %4829 = vmatpush1.msra.mxu0 0.0
        %4830 = vmatprep.subr.mxu0 0.0
        %4831 = vmatpush1.msra.mxu0 0.0
        %4832 = vmatprep.subr.mxu0 0.0
        %4833 = vmatpush1.msra.mxu0 0.0
        %4834 = vmatprep.subr.mxu0 0.0
        %v4835 = vand.u32 %v4636, 4294901760
        %v4836 = vsub.f32 %v4636, %v4835
        %4837 = vmatpush1.msra.mxu0 %v4836
        %4838 = vmatprep.subr.mxu0 0.0
        %v4839 = vand.u32 %v4635, 4294901760
        %v4840 = vsub.f32 %v4635, %v4839
        %4841 = vmatpush1.msra.mxu0 %v4840
        %4842 = vmatprep.subr.mxu0 0.0
        %v4843 = vand.u32 %v4634, 4294901760
        %v4844 = vsub.f32 %v4634, %v4843
        %4845 = vmatpush1.msra.mxu0 %v4844
        %4846 = vmatprep.subr.mxu0 0.0
        %v4847 = vand.u32 %v4633, 4294901760
        %v4848 = vsub.f32 %v4633, %v4847
        %4849 = vmatpush1.msra.mxu0 %v4848
        %4850 = vmatprep.subr.mxu0 0.0
        %4851 = vmatpush2.msra.mxu0 0.0
        %4852 = vmatprep.subr.mxu0 0.0
        %4853 = vmatpush2.msra.mxu0 0.0
        %4854 = vmatprep.subr.mxu0 0.0
        %4855 = vmatpush2.msra.mxu0 0.0
        %4856 = vmatprep.subr.mxu0 0.0
        %4857 = vmatpush2.msra.mxu0 0.0
        %4858 = vmatprep.subr.mxu0 0.0
        %4859 = vmatpush2.msra.mxu0 0.0
        %4860 = vmatprep.subr.mxu0 0.0
        %4861 = vmatpush2.msra.mxu0 0.0
        %4862 = vmatprep.subr.mxu0 0.0
        %4863 = vmatpush2.msra.mxu0 0.0
        %4864 = vmatprep.subr.mxu0 0.0
        %4865 = vmatpush2.msra.mxu0 0.0
        %4866 = vmatprep.subr.mxu0 0.0
        %4867 = vmatpush2.msra.mxu0 0.0
        %4868 = vmatprep.subr.mxu0 0.0
        %4869 = vmatpush2.msra.mxu0 0.0
        %4870 = vmatprep.subr.mxu0 0.0
        %4871 = vmatpush2.msra.mxu0 0.0
        %4872 = vmatprep.subr.mxu0 0.0
        %4873 = vmatpush2.msra.mxu0 0.0
        %4874 = vmatprep.subr.mxu0 0.0
        %4875 = vmatpush2.msra.mxu0 0.0
        %4876 = vmatprep.subr.mxu0 0.0
        %4877 = vmatpush2.msra.mxu0 0.0
        %4878 = vmatprep.subr.mxu0 0.0
        %4879 = vmatpush2.msra.mxu0 0.0
        %4880 = vmatprep.subr.mxu0 0.0
        %4881 = vmatpush2.msra.mxu0 0.0
        %4882 = vmatprep.mubr.f32.mxu0 0.0
        %v4883 = vand.u32 %v4638, 4294901760
        %v4884 = vsub.f32 %v4638, %v4883
        %4885 = vmatmul.mubr.f32.gmra.mxu0 %v4884
        %v4886 = vpop.f32.mrf.mxu0
        %v4887 = vadd.f32 %v4807, %v4886
        %v4888 = vpop.f32.mrf.mxu0
        %4889 = vdwg.mxu0
        %4890 = vmatprep.subr.mxu0 0.0
        %4891 = vmatpush1.msra.mxu0 0.0
        %4892 = vmatprep.subr.mxu0 0.0
        %4893 = vmatpush1.msra.mxu0 0.0
        %4894 = vmatprep.subr.mxu0 0.0
        %4895 = vmatpush1.msra.mxu0 0.0
        %4896 = vmatprep.subr.mxu0 0.0
        %4897 = vmatpush1.msra.mxu0 0.0
        %4898 = vmatprep.subr.mxu0 0.0
        %4899 = vmatpush1.msra.mxu0 0.0
        %4900 = vmatprep.subr.mxu0 0.0
        %4901 = vmatpush1.msra.mxu0 0.0
        %4902 = vmatprep.subr.mxu0 0.0
        %4903 = vmatpush1.msra.mxu0 0.0
        %4904 = vmatprep.subr.mxu0 0.0
        %4905 = vmatpush1.msra.mxu0 0.0
        %4906 = vmatprep.subr.mxu0 0.0
        %4907 = vmatpush1.msra.mxu0 0.0
        %4908 = vmatprep.subr.mxu0 0.0
        %4909 = vmatpush1.msra.mxu0 0.0
        %4910 = vmatprep.subr.mxu0 0.0
        %4911 = vmatpush1.msra.mxu0 0.0
        %4912 = vmatprep.subr.mxu0 0.0
        %4913 = vmatpush1.msra.mxu0 0.0
        %4914 = vmatprep.subr.mxu0 0.0
        %v4915 = vand.u32 %v4636, 4294901760
        %4916 = vmatpush1.msra.mxu0 %v4915
        %4917 = vmatprep.subr.mxu0 0.0
        %v4918 = vand.u32 %v4635, 4294901760
        %4919 = vmatpush1.msra.mxu0 %v4918
        %4920 = vmatprep.subr.mxu0 0.0
        %v4921 = vand.u32 %v4634, 4294901760
        %4922 = vmatpush1.msra.mxu0 %v4921
        %4923 = vmatprep.subr.mxu0 0.0
        %v4924 = vand.u32 %v4633, 4294901760
        %4925 = vmatpush1.msra.mxu0 %v4924
        %4926 = vmatprep.subr.mxu0 0.0
        %4927 = vmatpush2.msra.mxu0 0.0
        %4928 = vmatprep.subr.mxu0 0.0
        %4929 = vmatpush2.msra.mxu0 0.0
        %4930 = vmatprep.subr.mxu0 0.0
        %4931 = vmatpush2.msra.mxu0 0.0
        %4932 = vmatprep.subr.mxu0 0.0
        %4933 = vmatpush2.msra.mxu0 0.0
        %4934 = vmatprep.subr.mxu0 0.0
        %4935 = vmatpush2.msra.mxu0 0.0
        %4936 = vmatprep.subr.mxu0 0.0
        %4937 = vmatpush2.msra.mxu0 0.0
        %4938 = vmatprep.subr.mxu0 0.0
        %4939 = vmatpush2.msra.mxu0 0.0
        %4940 = vmatprep.subr.mxu0 0.0
        %4941 = vmatpush2.msra.mxu0 0.0
        %4942 = vmatprep.subr.mxu0 0.0
        %4943 = vmatpush2.msra.mxu0 0.0
        %4944 = vmatprep.subr.mxu0 0.0
        %4945 = vmatpush2.msra.mxu0 0.0
        %4946 = vmatprep.subr.mxu0 0.0
        %4947 = vmatpush2.msra.mxu0 0.0
        %4948 = vmatprep.subr.mxu0 0.0
        %4949 = vmatpush2.msra.mxu0 0.0
        %4950 = vmatprep.subr.mxu0 0.0
        %4951 = vmatpush2.msra.mxu0 0.0
        %4952 = vmatprep.subr.mxu0 0.0
        %4953 = vmatpush2.msra.mxu0 0.0
        %4954 = vmatprep.subr.mxu0 0.0
        %4955 = vmatpush2.msra.mxu0 0.0
        %4956 = vmatprep.subr.mxu0 0.0
        %4957 = vmatpush2.msra.mxu0 0.0
        %4958 = vmatprep.mubr.f32.mxu0 0.0
        %v4959 = vand.u32 %v4638, 4294901760
        %v4960 = vsub.f32 %v4638, %v4959
        %v4961 = vand.u32 %v4960, 4294901760
        %4962 = vmatmul.mubr.f32.gmra.mxu0 %v4961
        %v4963 = vpop.f32.mrf.mxu0
        %v4964 = vadd.f32 %v4887, %v4963
        %v4965 = vpop.f32.mrf.mxu0
        %4966 = vdwg.mxu0
        %4967 = vmatprep.subr.mxu0 0.0
        %4968 = vmatpush1.msra.mxu0 0.0
        %4969 = vmatprep.subr.mxu0 0.0
        %4970 = vmatpush1.msra.mxu0 0.0
        %4971 = vmatprep.subr.mxu0 0.0
        %4972 = vmatpush1.msra.mxu0 0.0
        %4973 = vmatprep.subr.mxu0 0.0
        %4974 = vmatpush1.msra.mxu0 0.0
        %4975 = vmatprep.subr.mxu0 0.0
        %4976 = vmatpush1.msra.mxu0 0.0
        %4977 = vmatprep.subr.mxu0 0.0
        %4978 = vmatpush1.msra.mxu0 0.0
        %4979 = vmatprep.subr.mxu0 0.0
        %4980 = vmatpush1.msra.mxu0 0.0
        %4981 = vmatprep.subr.mxu0 0.0
        %4982 = vmatpush1.msra.mxu0 0.0
        %4983 = vmatprep.subr.mxu0 0.0
        %4984 = vmatpush1.msra.mxu0 0.0
        %4985 = vmatprep.subr.mxu0 0.0
        %4986 = vmatpush1.msra.mxu0 0.0
        %4987 = vmatprep.subr.mxu0 0.0
        %4988 = vmatpush1.msra.mxu0 0.0
        %4989 = vmatprep.subr.mxu0 0.0
        %4990 = vmatpush1.msra.mxu0 0.0
        %4991 = vmatprep.subr.mxu0 0.0
        %v4992 = vand.u32 %v4636, 4294901760
        %v4993 = vsub.f32 %v4636, %v4992
        %v4994 = vand.u32 %v4993, 4294901760
        %4995 = vmatpush1.msra.mxu0 %v4994
        %4996 = vmatprep.subr.mxu0 0.0
        %v4997 = vand.u32 %v4635, 4294901760
        %v4998 = vsub.f32 %v4635, %v4997
        %v4999 = vand.u32 %v4998, 4294901760
        %5000 = vmatpush1.msra.mxu0 %v4999
        %5001 = vmatprep.subr.mxu0 0.0
        %v5002 = vand.u32 %v4634, 4294901760
        %v5003 = vsub.f32 %v4634, %v5002
        %v5004 = vand.u32 %v5003, 4294901760
        %5005 = vmatpush1.msra.mxu0 %v5004
        %5006 = vmatprep.subr.mxu0 0.0
        %v5007 = vand.u32 %v4633, 4294901760
        %v5008 = vsub.f32 %v4633, %v5007
        %v5009 = vand.u32 %v5008, 4294901760
        %5010 = vmatpush1.msra.mxu0 %v5009
        %5011 = vmatprep.subr.mxu0 0.0
        %5012 = vmatpush2.msra.mxu0 0.0
        %5013 = vmatprep.subr.mxu0 0.0
        %5014 = vmatpush2.msra.mxu0 0.0
        %5015 = vmatprep.subr.mxu0 0.0
        %5016 = vmatpush2.msra.mxu0 0.0
        %5017 = vmatprep.subr.mxu0 0.0
        %5018 = vmatpush2.msra.mxu0 0.0
        %5019 = vmatprep.subr.mxu0 0.0
        %5020 = vmatpush2.msra.mxu0 0.0
        %5021 = vmatprep.subr.mxu0 0.0
        %5022 = vmatpush2.msra.mxu0 0.0
        %5023 = vmatprep.subr.mxu0 0.0
        %5024 = vmatpush2.msra.mxu0 0.0
        %5025 = vmatprep.subr.mxu0 0.0
        %5026 = vmatpush2.msra.mxu0 0.0
        %5027 = vmatprep.subr.mxu0 0.0
        %5028 = vmatpush2.msra.mxu0 0.0
        %5029 = vmatprep.subr.mxu0 0.0
        %5030 = vmatpush2.msra.mxu0 0.0
        %5031 = vmatprep.subr.mxu0 0.0
        %5032 = vmatpush2.msra.mxu0 0.0
        %5033 = vmatprep.subr.mxu0 0.0
        %5034 = vmatpush2.msra.mxu0 0.0
        %5035 = vmatprep.subr.mxu0 0.0
        %5036 = vmatpush2.msra.mxu0 0.0
        %5037 = vmatprep.subr.mxu0 0.0
        %5038 = vmatpush2.msra.mxu0 0.0
        %5039 = vmatprep.subr.mxu0 0.0
        %5040 = vmatpush2.msra.mxu0 0.0
        %5041 = vmatprep.subr.mxu0 0.0
        %5042 = vmatpush2.msra.mxu0 0.0
        %5043 = vmatprep.mubr.f32.mxu0 0.0
        %v5044 = vand.u32 %v4638, 4294901760
        %5045 = vmatmul.mubr.f32.gmra.mxu0 %v5044
        %v5046 = vpop.f32.mrf.mxu0
        %v5047 = vadd.f32 %v4964, %v5046
        %v5048 = vpop.f32.mrf.mxu0
        %5049 = vdwg.mxu0
        %5050 = vmatprep.subr.mxu0 0.0
        %5051 = vmatpush1.msra.mxu0 0.0
        %5052 = vmatprep.subr.mxu0 0.0
        %5053 = vmatpush1.msra.mxu0 0.0
        %5054 = vmatprep.subr.mxu0 0.0
        %5055 = vmatpush1.msra.mxu0 0.0
        %5056 = vmatprep.subr.mxu0 0.0
        %5057 = vmatpush1.msra.mxu0 0.0
        %5058 = vmatprep.subr.mxu0 0.0
        %5059 = vmatpush1.msra.mxu0 0.0
        %5060 = vmatprep.subr.mxu0 0.0
        %5061 = vmatpush1.msra.mxu0 0.0
        %5062 = vmatprep.subr.mxu0 0.0
        %5063 = vmatpush1.msra.mxu0 0.0
        %5064 = vmatprep.subr.mxu0 0.0
        %5065 = vmatpush1.msra.mxu0 0.0
        %5066 = vmatprep.subr.mxu0 0.0
        %5067 = vmatpush1.msra.mxu0 0.0
        %5068 = vmatprep.subr.mxu0 0.0
        %5069 = vmatpush1.msra.mxu0 0.0
        %5070 = vmatprep.subr.mxu0 0.0
        %5071 = vmatpush1.msra.mxu0 0.0
        %5072 = vmatprep.subr.mxu0 0.0
        %5073 = vmatpush1.msra.mxu0 0.0
        %5074 = vmatprep.subr.mxu0 0.0
        %v5075 = vand.u32 %v4636, 4294901760
        %5076 = vmatpush1.msra.mxu0 %v5075
        %5077 = vmatprep.subr.mxu0 0.0
        %v5078 = vand.u32 %v4635, 4294901760
        %5079 = vmatpush1.msra.mxu0 %v5078
        %5080 = vmatprep.subr.mxu0 0.0
        %v5081 = vand.u32 %v4634, 4294901760
        %5082 = vmatpush1.msra.mxu0 %v5081
        %5083 = vmatprep.subr.mxu0 0.0
        %v5084 = vand.u32 %v4633, 4294901760
        %5085 = vmatpush1.msra.mxu0 %v5084
        %5086 = vmatprep.subr.mxu0 0.0
        %5087 = vmatpush2.msra.mxu0 0.0
        %5088 = vmatprep.subr.mxu0 0.0
        %5089 = vmatpush2.msra.mxu0 0.0
        %5090 = vmatprep.subr.mxu0 0.0
        %5091 = vmatpush2.msra.mxu0 0.0
        %5092 = vmatprep.subr.mxu0 0.0
        %5093 = vmatpush2.msra.mxu0 0.0
        %5094 = vmatprep.subr.mxu0 0.0
        %5095 = vmatpush2.msra.mxu0 0.0
        %5096 = vmatprep.subr.mxu0 0.0
        %5097 = vmatpush2.msra.mxu0 0.0
        %5098 = vmatprep.subr.mxu0 0.0
        %5099 = vmatpush2.msra.mxu0 0.0
        %5100 = vmatprep.subr.mxu0 0.0
        %5101 = vmatpush2.msra.mxu0 0.0
        %5102 = vmatprep.subr.mxu0 0.0
        %5103 = vmatpush2.msra.mxu0 0.0
        %5104 = vmatprep.subr.mxu0 0.0
        %5105 = vmatpush2.msra.mxu0 0.0
        %5106 = vmatprep.subr.mxu0 0.0
        %5107 = vmatpush2.msra.mxu0 0.0
        %5108 = vmatprep.subr.mxu0 0.0
        %5109 = vmatpush2.msra.mxu0 0.0
        %5110 = vmatprep.subr.mxu0 0.0
        %5111 = vmatpush2.msra.mxu0 0.0
        %5112 = vmatprep.subr.mxu0 0.0
        %5113 = vmatpush2.msra.mxu0 0.0
        %5114 = vmatprep.subr.mxu0 0.0
        %5115 = vmatpush2.msra.mxu0 0.0
        %5116 = vmatprep.subr.mxu0 0.0
        %5117 = vmatpush2.msra.mxu0 0.0
        %5118 = vmatprep.mubr.f32.mxu0 0.0
        %v5119 = vand.u32 %v4638, 4294901760
        %5120 = vmatmul.mubr.f32.gmra.mxu0 %v5119
        %v5121 = vpop.f32.mrf.mxu0
        %v5122 = vadd.f32 %v5047, %v5121
        %v5123 = vpop.f32.mrf.mxu0
        %5124 = vdwg.mxu0
        %v5125 = vadd.f32 %v402, %v5122
        %5126 = vst.msk [vmem:[%s398] sm:$0xff] %vm403, %v5125
        %s5127 = sand.u32 %s214, 1
        %s5128 = scalar_lea.sflag [#allocation4], %s5127
        %s5129 = sand.u32 %s214, 1
        %s5130 = smul.addr %s5129, 8
        %s5131 = scalar_lea.vmem [#allocation13], %s5130
        // Predicated region
        $region77: #{tpu_custom_call.1} parent=51 // pred_check
          %p5132 = pneg %p224
        $region78: #{tpu_custom_call.1} parent=51 // pred_check_branch
          %5134 = sbr.rel (%p5132) target = $region80
        $region79: #{tpu_custom_call.1} parent=51 // pred_region
          %s5136 = ssub.s32 128, 128
          %5137 = vsyncadd %s5128, %s5136
          %s5138 = smul.addr %s28, 128
          %s5139 = scalar_lea.hbm %s8, %s5138
          %s5141 = sshll.u32 %s5131, 4
          %s5142 = int_to_ptr.vmem [resolvable:$true] %s5141
          %5144 = dma.vmem_to_hbm [thread:$0]  %s5142, 128, %s5139, %s5128
        $region80: #{tpu_custom_call.1} parent=51 // pred_fallthru
          _
      $region52: #{tpu_custom_call.1} parent=5 // pred_fallthru
        _
      %p5145 = scmp.le.s32.totalorder 2, %s23
      // Predicated region
      $region81: #{tpu_custom_call.1} parent=5 // pred_check
        %p5146 = pneg %p5145
      $region82: #{tpu_custom_call.1} parent=5 // pred_check_branch
        %5148 = sbr.rel (%p5146) target = $region84
      $region83: #{tpu_custom_call.1} parent=5 // pred_region
        %s5149 = ssub.s32 %s23, 2
        // Predicated region
        $region85: #{tpu_custom_call.1} parent=83 // pred_check
          %p5150 = pneg %p230
        $region86: #{tpu_custom_call.1} parent=83 // pred_check_branch
          %5152 = sbr.rel (%p5150) target = $region88
        $region87: #{tpu_custom_call.1} parent=83 // pred_region
          %s5153 = sand.u32 %s215, 1
          %s5154 = scalar_lea.sflag [#allocation4], %s5153
          %s5155 = sand.u32 %s215, 1
          %s5156 = smul.addr %s5155, 8
          %s5157 = scalar_lea.vmem [#allocation13], %s5156
          %5158 = dma.done %s5154, 128
        $region88: #{tpu_custom_call.1} parent=83 // pred_fallthru
          _
      $region84: #{tpu_custom_call.1} parent=5 // pred_fallthru
        _
    $region6: #{tpu_custom_call.1} parent=1 // loop_footer
      %s27 = sadd.s32 1, %s23
    $region7: #{tpu_custom_call.1} parent=1 // loop_footer_branch
      %22 = sbr.rel target = $region3
    $region8: #{tpu_custom_call.1} parent=1 // loop_exit
      _
    %5159 = vsyncpa [#allocation3], 1
    %s5160 = scalar_lea.sflag [#allocation3], 1
    %5161 = vsyncpa %s5160, 1
    %5162 = vsyncpa [#allocation6], 1
    %5163 = vsyncpa [#allocation9], 1
    %5164 = vsyncpa [#allocation12], 1
    %5165 = vsyncpa [#allocation4], 1
    %s5166 = scalar_lea.sflag [#allocation4], 1
    %5167 = vsyncpa %s5166, 1

</llo_original>
